<compile_context>
chip_gen: v7x
topology: tpu7x:2x2x1
jax: 0.10.0
libtpu: 0.0.40
codegen_flags: <defaults>
</compile_context>

<pallas_src>
import jax
import jax.numpy as jnp
from jax.experimental import pallas as pl
from jax.experimental.pallas import tpu as pltpu

# --- model hyperparameters ---------------------------------------------------
LATENT_DIM = 32
CHANNELS = 1
IMG_SIZE = 16
IMG_AREA = CHANNELS * IMG_SIZE * IMG_SIZE  # 256
BATCH = 64            # full batch in one call; keep it a multiple of 8

BN_EPS = 0.8          # BatchNorm1d(out_feat, 0.8) -> eps = 0.8 (intentional)
LRELU_SLOPE = 0.2

LAYER_DIMS = [(LATENT_DIM, 128), (128, 256), (256, 512), (512, 1024),
              (1024, IMG_AREA)]

# Packed per-feature f32 params, kernel slicing order:
#   b1, g2, be2, g3, be3, g4, be4, b5
# Every offset is a multiple of 128 (lane-aligned), so static slices are free.
_P_SIZES = (128, 256, 256, 512, 512, 1024, 1024, IMG_AREA)
_P_OFFS = []
_off = 0
for _s in _P_SIZES:
    _P_OFFS.append(_off)
    _off += _s
PACKED_LEN = _off      # 3968 = 31 * 128


def _leaky_relu(x):
    # slope in (0, 1)  =>  leaky_relu(x) == max(x, slope * x)
    return jnp.maximum(x, LRELU_SLOPE * x)


def _batchnorm_train(x, gamma, beta):
    # Training-mode BatchNorm1d over the full batch (biased variance), folded
    # so the per-element path is a single FMA on the already-computed d.
    mean = jnp.mean(x, axis=0, keepdims=True)
    d = x - mean
    var = jnp.mean(d * d, axis=0, keepdims=True)
    scale = jax.lax.rsqrt(var + BN_EPS) * gamma
    return d * scale + beta


def _pvec(p_ref, idx):
    o, s = _P_OFFS[idx], _P_SIZES[idx]
    return p_ref[:, o:o + s]          # static lane-aligned slice, (1, s) f32


def generator_kernel(z_ref, w1_ref, w2_ref, w3_hbm, w4_hbm, w5_hbm, p_ref,
                     out_ref, w3_v, w4_v, w5_v, sems):
    # Kick off the deep-layer weight DMAs immediately: the 1.75 MB HBM->VMEM
    # traffic overlaps the layer-1/2 matmuls and BN/LeakyReLU math.
    c3 = pltpu.make_async_copy(w3_hbm, w3_v, sems.at[0]); c3.start()
    c4 = pltpu.make_async_copy(w4_hbm, w4_v, sems.at[1]); c4.start()
    c5 = pltpu.make_async_copy(w5_hbm, w5_v, sems.at[2]); c5.start()

    b1, g2, be2, g3, be3, g4, be4, b5 = (_pvec(p_ref, i) for i in range(8))

    # block(latent_dim, 128, normalize=False)
    z = z_ref[...].astype(jnp.bfloat16)
    h = jnp.dot(z, w1_ref[...], preferred_element_type=jnp.float32) + b1
    h = _leaky_relu(h)

    # block(128, 256): Linear bias dropped (cancels under batch-mean sub)
    h = jnp.dot(h.astype(jnp.bfloat16), w2_ref[...],
                preferred_element_type=jnp.float32)
    h = _leaky_relu(_batchnorm_train(h, g2, be2))

    # block(256, 512)
    c3.wait()
    h = jnp.dot(h.astype(jnp.bfloat16), w3_v[...],
                preferred_element_type=jnp.float32)
    h = _leaky_relu(_batchnorm_train(h, g3, be3))

    # block(512, 1024)
    c4.wait()
    h = jnp.dot(h.astype(jnp.bfloat16), w4_v[...],
                preferred_element_type=jnp.float32)
    h = _leaky_relu(_batchnorm_train(h, g4, be4))

    # Linear(1024, img_area) + Tanh
    c5.wait()
    h = jnp.dot(h.astype(jnp.bfloat16), w5_v[...],
                preferred_element_type=jnp.float32) + b5
    out_ref[...] = jnp.tanh(h)


def generator_forward(z, params):
    """z: (B, LATENT_DIM) f32 -> imgs: (B, CHANNELS, IMG_SIZE, IMG_SIZE) f32.

    The whole batch runs in one fused call; BatchNorm statistics are computed
    over the full batch, exactly matching PyTorch training-mode semantics.
    """
    B = z.shape[0]
    w1, w2, w3, w4, w5, packed = params

    vmem = pl.BlockSpec(memory_space=pltpu.MemorySpace.VMEM)
    hbm = pl.BlockSpec(memory_space=pl.ANY)  # raw ref; DMA'd manually in-kernel

    out_flat = pl.pallas_call(
        generator_kernel,
        out_shape=jax.ShapeDtypeStruct((B, IMG_AREA), jnp.float32),
        in_specs=[vmem, vmem, vmem, hbm, hbm, hbm, vmem],
        out_specs=vmem,
        scratch_shapes=[
            pltpu.VMEM(w3.shape, jnp.bfloat16),
            pltpu.VMEM(w4.shape, jnp.bfloat16),
            pltpu.VMEM(w5.shape, jnp.bfloat16),
            pltpu.SemaphoreType.DMA((3,)),
        ],
    )(z, w1, w2, w3, w4, w5, packed)

    # matches imgs.view(B, C, H, W) in PyTorch (row-major NCHW)
    return out_flat.reshape(B, CHANNELS, IMG_SIZE, IMG_SIZE)


def init_params(key):
    """PyTorch-style U(-1/sqrt(fin), 1/sqrt(fin)) init.

    Returns [w1, w2, w3, w4, w5, packed]:
      * Linear weights stored (in, out) as bf16 (MXU operands, half HBM bytes).
      * Linear biases of layers 2-4 omitted (redundant before training-mode BN).
      * b1, BN gammas/betas, b5 packed into one (1, PACKED_LEN) f32 array.
    """
    weights, smalls = [], []
    for i, (fin, fout) in enumerate(LAYER_DIMS):
        key, kw, kb = jax.random.split(key, 3)
        bound = 1.0 / (fin ** 0.5)
        w = jax.random.uniform(kw, (fin, fout), minval=-bound, maxval=bound,
                               dtype=jnp.float32).astype(jnp.bfloat16)
        weights.append(w)
        if i in (1, 2, 3):
            smalls.append(jnp.ones((fout,), jnp.float32))    # BN gamma
            smalls.append(jnp.zeros((fout,), jnp.float32))   # BN beta
        else:
            smalls.append(jax.random.uniform(kb, (fout,), minval=-bound,
                                             maxval=bound, dtype=jnp.float32))
    packed = jnp.concatenate(smalls).reshape(1, PACKED_LEN)
    return weights + [packed]


def generator_reference(z, params):
    """Pure-JAX (XLA) reference with identical numerics for validation."""
    w1, w2, w3, w4, w5, packed = params
    pv = lambda i: packed[:, _P_OFFS[i]:_P_OFFS[i] + _P_SIZES[i]]
    b1, g2, be2, g3, be3, g4, be4, b5 = (pv(i) for i in range(8))

    h = _leaky_relu(jnp.dot(z.astype(jnp.bfloat16), w1,
                            preferred_element_type=jnp.float32) + b1)
    h = jnp.dot(h.astype(jnp.bfloat16), w2, preferred_element_type=jnp.float32)
    h = _leaky_relu(_batchnorm_train(h, g2, be2))
    h = jnp.dot(h.astype(jnp.bfloat16), w3, preferred_element_type=jnp.float32)
    h = _leaky_relu(_batchnorm_train(h, g3, be3))
    h = jnp.dot(h.astype(jnp.bfloat16), w4, preferred_element_type=jnp.float32)
    h = _leaky_relu(_batchnorm_train(h, g4, be4))
    h = jnp.dot(h.astype(jnp.bfloat16), w5, preferred_element_type=jnp.float32) + b5
    return jnp.tanh(h).reshape(z.shape[0], CHANNELS, IMG_SIZE, IMG_SIZE)


if __name__ == "__main__":
    key = jax.random.PRNGKey(0)
    kz, kp = jax.random.split(key)
    z = jax.random.normal(kz, (BATCH, LATENT_DIM), dtype=jnp.float32)
    params = init_params(kp)

    imgs = jax.block_until_ready(generator_forward(z, params))

    assert imgs.shape == (BATCH, CHANNELS, IMG_SIZE, IMG_SIZE)
    assert imgs.dtype == jnp.float32
    # tanh output range sanity check
    assert bool(jnp.all(jnp.abs(imgs) <= 1.0))

    # correctness vs. a pure-JAX reference with the same dtype path
    ref = jax.block_until_ready(generator_reference(z, params))
    max_err = float(jnp.max(jnp.abs(imgs - ref)))
    assert max_err < 2e-2, f"max abs error vs reference: {max_err}"

    print("KERNEL_OK")
</pallas_src>

<mosaic_0001>
module attributes {stable_mosaic.version = 11 : i64} {
  func.func @generator_kernel(%arg0: memref<64x32xf32, #tpu.memory_space<vmem>>, %arg1: memref<32x128xbf16, #tpu.memory_space<vmem>>, %arg2: memref<128x256xbf16, #tpu.memory_space<vmem>>, %arg3: memref<256x512xbf16, #tpu.memory_space<any>>, %arg4: memref<512x1024xbf16, #tpu.memory_space<any>>, %arg5: memref<1024x256xbf16, #tpu.memory_space<any>>, %arg6: memref<1x3968xf32, #tpu.memory_space<vmem>>, %arg7: memref<64x256xf32, #tpu.memory_space<vmem>>, %arg8: memref<256x512xbf16, #tpu.memory_space<vmem>>, %arg9: memref<512x1024xbf16, #tpu.memory_space<vmem>>, %arg10: memref<1024x256xbf16, #tpu.memory_space<vmem>>, %arg11: memref<3x!tpu.dma_semaphore, #tpu.memory_space<semaphore_mem>>) attributes {dimension_semantics = [], scalar_prefetch = 0 : i64, scratch_operands = 4 : i64, tpu.core_type = #tpu.core_type<tc>} {
    %c0_i32 = arith.constant 0 : i32
    %0 = tpu.memref_slice %arg11[%c0_i32] : memref<3x!tpu.dma_semaphore, #tpu.memory_space<semaphore_mem>> -> memref<1x!tpu.dma_semaphore, #tpu.memory_space<semaphore_mem>>
    %1 = tpu.memref_squeeze %0 : memref<1x!tpu.dma_semaphore, #tpu.memory_space<semaphore_mem>> -> memref<!tpu.dma_semaphore, #tpu.memory_space<semaphore_mem>>
    tpu.enqueue_dma source(%arg3 : memref<256x512xbf16, #tpu.memory_space<any>>) target(%arg8 : memref<256x512xbf16, #tpu.memory_space<vmem>>) target_semaphore(%1 : memref<!tpu.dma_semaphore, #tpu.memory_space<semaphore_mem>>)
    %c1_i32 = arith.constant 1 : i32
    %2 = tpu.memref_slice %arg11[%c1_i32] : memref<3x!tpu.dma_semaphore, #tpu.memory_space<semaphore_mem>> -> memref<1x!tpu.dma_semaphore, #tpu.memory_space<semaphore_mem>>
    %3 = tpu.memref_squeeze %2 : memref<1x!tpu.dma_semaphore, #tpu.memory_space<semaphore_mem>> -> memref<!tpu.dma_semaphore, #tpu.memory_space<semaphore_mem>>
    tpu.enqueue_dma source(%arg4 : memref<512x1024xbf16, #tpu.memory_space<any>>) target(%arg9 : memref<512x1024xbf16, #tpu.memory_space<vmem>>) target_semaphore(%3 : memref<!tpu.dma_semaphore, #tpu.memory_space<semaphore_mem>>)
    %c2_i32 = arith.constant 2 : i32
    %4 = tpu.memref_slice %arg11[%c2_i32] : memref<3x!tpu.dma_semaphore, #tpu.memory_space<semaphore_mem>> -> memref<1x!tpu.dma_semaphore, #tpu.memory_space<semaphore_mem>>
    %5 = tpu.memref_squeeze %4 : memref<1x!tpu.dma_semaphore, #tpu.memory_space<semaphore_mem>> -> memref<!tpu.dma_semaphore, #tpu.memory_space<semaphore_mem>>
    tpu.enqueue_dma source(%arg5 : memref<1024x256xbf16, #tpu.memory_space<any>>) target(%arg10 : memref<1024x256xbf16, #tpu.memory_space<vmem>>) target_semaphore(%5 : memref<!tpu.dma_semaphore, #tpu.memory_space<semaphore_mem>>)
    %c0 = arith.constant 0 : index
    %c0_0 = arith.constant 0 : index
    %6 = vector.load %arg6[%c0, %c0_0] : memref<1x3968xf32, #tpu.memory_space<vmem>>, vector<1x128xf32>
    %c0_1 = arith.constant 0 : index
    %c128 = arith.constant 128 : index
    %7 = vector.load %arg6[%c0_1, %c128] : memref<1x3968xf32, #tpu.memory_space<vmem>>, vector<1x256xf32>
    %c0_2 = arith.constant 0 : index
    %c384 = arith.constant 384 : index
    %8 = vector.load %arg6[%c0_2, %c384] : memref<1x3968xf32, #tpu.memory_space<vmem>>, vector<1x256xf32>
    %c0_3 = arith.constant 0 : index
    %c640 = arith.constant 640 : index
    %9 = vector.load %arg6[%c0_3, %c640] : memref<1x3968xf32, #tpu.memory_space<vmem>>, vector<1x512xf32>
    %c0_4 = arith.constant 0 : index
    %c1152 = arith.constant 1152 : index
    %10 = vector.load %arg6[%c0_4, %c1152] : memref<1x3968xf32, #tpu.memory_space<vmem>>, vector<1x512xf32>
    %c0_5 = arith.constant 0 : index
    %c1664 = arith.constant 1664 : index
    %11 = vector.load %arg6[%c0_5, %c1664] : memref<1x3968xf32, #tpu.memory_space<vmem>>, vector<1x1024xf32>
    %c0_6 = arith.constant 0 : index
    %c2688 = arith.constant 2688 : index
    %12 = vector.load %arg6[%c0_6, %c2688] : memref<1x3968xf32, #tpu.memory_space<vmem>>, vector<1x1024xf32>
    %c0_7 = arith.constant 0 : index
    %c3712 = arith.constant 3712 : index
    %13 = vector.load %arg6[%c0_7, %c3712] : memref<1x3968xf32, #tpu.memory_space<vmem>>, vector<1x256xf32>
    %c0_8 = arith.constant 0 : index
    %c0_9 = arith.constant 0 : index
    %14 = vector.load %arg0[%c0_8, %c0_9] : memref<64x32xf32, #tpu.memory_space<vmem>>, vector<64x32xf32>
    %15 = arith.truncf %14 : vector<64x32xf32> to vector<64x32xbf16>
    %c0_10 = arith.constant 0 : index
    %c0_11 = arith.constant 0 : index
    %16 = vector.load %arg1[%c0_10, %c0_11] : memref<32x128xbf16, #tpu.memory_space<vmem>>, vector<32x128xbf16>
    %cst = arith.constant dense<0.000000e+00> : vector<64x128xf32>
    %17 = tpu.matmul %15, %16, %cst {dimension_numbers = #tpu.dot_dimension_numbers<[1], [0], [0], [1], [0, 0, 1, 1], [], []>} : vector<64x32xbf16>, vector<32x128xbf16>, vector<64x128xf32> -> vector<64x128xf32>
    %18 = vector.broadcast %6 : vector<1x128xf32> to vector<64x128xf32>
    %19 = arith.addf %17, %18 : vector<64x128xf32>
    %cst_12 = arith.constant 2.000000e-01 : f32
    %20 = vector.broadcast %cst_12 : f32 to vector<64x128xf32>
    %21 = arith.mulf %20, %19 : vector<64x128xf32>
    %22 = arith.maximumf %19, %21 : vector<64x128xf32>
    %23 = arith.truncf %22 : vector<64x128xf32> to vector<64x128xbf16>
    %c0_13 = arith.constant 0 : index
    %c0_14 = arith.constant 0 : index
    %24 = vector.load %arg2[%c0_13, %c0_14] : memref<128x256xbf16, #tpu.memory_space<vmem>>, vector<128x256xbf16>
    %cst_15 = arith.constant dense<0.000000e+00> : vector<64x256xf32>
    %25 = tpu.matmul %23, %24, %cst_15 {dimension_numbers = #tpu.dot_dimension_numbers<[1], [0], [0], [1], [0, 0, 1, 1], [], []>} : vector<64x128xbf16>, vector<128x256xbf16>, vector<64x256xf32> -> vector<64x256xf32>
    %cst_16 = arith.constant dense<0.000000e+00> : vector<256xf32>
    %26 = vector.multi_reduction <add>, %25, %cst_16 [0] : vector<64x256xf32> to vector<256xf32>
    %27 = vector.shape_cast %26 : vector<256xf32> to vector<1x256xf32>
    %cst_17 = arith.constant 6.400000e+01 : f32
    %28 = vector.broadcast %cst_17 : f32 to vector<1x256xf32>
    %29 = arith.divf %27, %28 : vector<1x256xf32>
    %30 = vector.broadcast %29 : vector<1x256xf32> to vector<64x256xf32>
    %31 = arith.subf %25, %30 : vector<64x256xf32>
    %32 = arith.mulf %31, %31 : vector<64x256xf32>
    %cst_18 = arith.constant dense<0.000000e+00> : vector<256xf32>
    %33 = vector.multi_reduction <add>, %32, %cst_18 [0] : vector<64x256xf32> to vector<256xf32>
    %34 = vector.shape_cast %33 : vector<256xf32> to vector<1x256xf32>
    %cst_19 = arith.constant 6.400000e+01 : f32
    %35 = vector.broadcast %cst_19 : f32 to vector<1x256xf32>
    %36 = arith.divf %34, %35 : vector<1x256xf32>
    %cst_20 = arith.constant 8.000000e-01 : f32
    %37 = vector.broadcast %cst_20 : f32 to vector<1x256xf32>
    %38 = arith.addf %36, %37 : vector<1x256xf32>
    %39 = math.rsqrt %38 : vector<1x256xf32>
    %40 = arith.mulf %39, %7 : vector<1x256xf32>
    %41 = vector.broadcast %40 : vector<1x256xf32> to vector<64x256xf32>
    %42 = arith.mulf %31, %41 : vector<64x256xf32>
    %43 = vector.broadcast %8 : vector<1x256xf32> to vector<64x256xf32>
    %44 = arith.addf %42, %43 : vector<64x256xf32>
    %cst_21 = arith.constant 2.000000e-01 : f32
    %45 = vector.broadcast %cst_21 : f32 to vector<64x256xf32>
    %46 = arith.mulf %45, %44 : vector<64x256xf32>
    %47 = arith.maximumf %44, %46 : vector<64x256xf32>
    %c0_i32_22 = arith.constant 0 : i32
    %48 = tpu.memref_slice %arg11[%c0_i32_22] : memref<3x!tpu.dma_semaphore, #tpu.memory_space<semaphore_mem>> -> memref<1x!tpu.dma_semaphore, #tpu.memory_space<semaphore_mem>>
    %49 = tpu.memref_squeeze %48 : memref<1x!tpu.dma_semaphore, #tpu.memory_space<semaphore_mem>> -> memref<!tpu.dma_semaphore, #tpu.memory_space<semaphore_mem>>
    tpu.wait_dma2 semaphore(%49 : memref<!tpu.dma_semaphore, #tpu.memory_space<semaphore_mem>>) src(%arg3 : memref<256x512xbf16, #tpu.memory_space<any>>) dst(%arg8 : memref<256x512xbf16, #tpu.memory_space<vmem>>)
    %50 = arith.truncf %47 : vector<64x256xf32> to vector<64x256xbf16>
    %c0_23 = arith.constant 0 : index
    %c0_24 = arith.constant 0 : index
    %51 = vector.load %arg8[%c0_23, %c0_24] : memref<256x512xbf16, #tpu.memory_space<vmem>>, vector<256x512xbf16>
    %cst_25 = arith.constant dense<0.000000e+00> : vector<64x512xf32>
    %52 = tpu.matmul %50, %51, %cst_25 {dimension_numbers = #tpu.dot_dimension_numbers<[1], [0], [0], [1], [0, 0, 1, 1], [], []>} : vector<64x256xbf16>, vector<256x512xbf16>, vector<64x512xf32> -> vector<64x512xf32>
    %cst_26 = arith.constant dense<0.000000e+00> : vector<512xf32>
    %53 = vector.multi_reduction <add>, %52, %cst_26 [0] : vector<64x512xf32> to vector<512xf32>
    %54 = vector.shape_cast %53 : vector<512xf32> to vector<1x512xf32>
    %cst_27 = arith.constant 6.400000e+01 : f32
    %55 = vector.broadcast %cst_27 : f32 to vector<1x512xf32>
    %56 = arith.divf %54, %55 : vector<1x512xf32>
    %57 = vector.broadcast %56 : vector<1x512xf32> to vector<64x512xf32>
    %58 = arith.subf %52, %57 : vector<64x512xf32>
    %59 = arith.mulf %58, %58 : vector<64x512xf32>
    %cst_28 = arith.constant dense<0.000000e+00> : vector<512xf32>
    %60 = vector.multi_reduction <add>, %59, %cst_28 [0] : vector<64x512xf32> to vector<512xf32>
    %61 = vector.shape_cast %60 : vector<512xf32> to vector<1x512xf32>
    %cst_29 = arith.constant 6.400000e+01 : f32
    %62 = vector.broadcast %cst_29 : f32 to vector<1x512xf32>
    %63 = arith.divf %61, %62 : vector<1x512xf32>
    %cst_30 = arith.constant 8.000000e-01 : f32
    %64 = vector.broadcast %cst_30 : f32 to vector<1x512xf32>
    %65 = arith.addf %63, %64 : vector<1x512xf32>
    %66 = math.rsqrt %65 : vector<1x512xf32>
    %67 = arith.mulf %66, %9 : vector<1x512xf32>
    %68 = vector.broadcast %67 : vector<1x512xf32> to vector<64x512xf32>
    %69 = arith.mulf %58, %68 : vector<64x512xf32>
    %70 = vector.broadcast %10 : vector<1x512xf32> to vector<64x512xf32>
    %71 = arith.addf %69, %70 : vector<64x512xf32>
    %cst_31 = arith.constant 2.000000e-01 : f32
    %72 = vector.broadcast %cst_31 : f32 to vector<64x512xf32>
    %73 = arith.mulf %72, %71 : vector<64x512xf32>
    %74 = arith.maximumf %71, %73 : vector<64x512xf32>
    %c1_i32_32 = arith.constant 1 : i32
    %75 = tpu.memref_slice %arg11[%c1_i32_32] : memref<3x!tpu.dma_semaphore, #tpu.memory_space<semaphore_mem>> -> memref<1x!tpu.dma_semaphore, #tpu.memory_space<semaphore_mem>>
    %76 = tpu.memref_squeeze %75 : memref<1x!tpu.dma_semaphore, #tpu.memory_space<semaphore_mem>> -> memref<!tpu.dma_semaphore, #tpu.memory_space<semaphore_mem>>
    tpu.wait_dma2 semaphore(%76 : memref<!tpu.dma_semaphore, #tpu.memory_space<semaphore_mem>>) src(%arg4 : memref<512x1024xbf16, #tpu.memory_space<any>>) dst(%arg9 : memref<512x1024xbf16, #tpu.memory_space<vmem>>)
    %77 = arith.truncf %74 : vector<64x512xf32> to vector<64x512xbf16>
    %c0_33 = arith.constant 0 : index
    %c0_34 = arith.constant 0 : index
    %78 = vector.load %arg9[%c0_33, %c0_34] : memref<512x1024xbf16, #tpu.memory_space<vmem>>, vector<512x1024xbf16>
    %cst_35 = arith.constant dense<0.000000e+00> : vector<64x1024xf32>
    %79 = tpu.matmul %77, %78, %cst_35 {dimension_numbers = #tpu.dot_dimension_numbers<[1], [0], [0], [1], [0, 0, 1, 1], [], []>} : vector<64x512xbf16>, vector<512x1024xbf16>, vector<64x1024xf32> -> vector<64x1024xf32>
    %cst_36 = arith.constant dense<0.000000e+00> : vector<1024xf32>
    %80 = vector.multi_reduction <add>, %79, %cst_36 [0] : vector<64x1024xf32> to vector<1024xf32>
    %81 = vector.shape_cast %80 : vector<1024xf32> to vector<1x1024xf32>
    %cst_37 = arith.constant 6.400000e+01 : f32
    %82 = vector.broadcast %cst_37 : f32 to vector<1x1024xf32>
    %83 = arith.divf %81, %82 : vector<1x1024xf32>
    %84 = vector.broadcast %83 : vector<1x1024xf32> to vector<64x1024xf32>
    %85 = arith.subf %79, %84 : vector<64x1024xf32>
    %86 = arith.mulf %85, %85 : vector<64x1024xf32>
    %cst_38 = arith.constant dense<0.000000e+00> : vector<1024xf32>
    %87 = vector.multi_reduction <add>, %86, %cst_38 [0] : vector<64x1024xf32> to vector<1024xf32>
    %88 = vector.shape_cast %87 : vector<1024xf32> to vector<1x1024xf32>
    %cst_39 = arith.constant 6.400000e+01 : f32
    %89 = vector.broadcast %cst_39 : f32 to vector<1x1024xf32>
    %90 = arith.divf %88, %89 : vector<1x1024xf32>
    %cst_40 = arith.constant 8.000000e-01 : f32
    %91 = vector.broadcast %cst_40 : f32 to vector<1x1024xf32>
    %92 = arith.addf %90, %91 : vector<1x1024xf32>
    %93 = math.rsqrt %92 : vector<1x1024xf32>
    %94 = arith.mulf %93, %11 : vector<1x1024xf32>
    %95 = vector.broadcast %94 : vector<1x1024xf32> to vector<64x1024xf32>
    %96 = arith.mulf %85, %95 : vector<64x1024xf32>
    %97 = vector.broadcast %12 : vector<1x1024xf32> to vector<64x1024xf32>
    %98 = arith.addf %96, %97 : vector<64x1024xf32>
    %cst_41 = arith.constant 2.000000e-01 : f32
    %99 = vector.broadcast %cst_41 : f32 to vector<64x1024xf32>
    %100 = arith.mulf %99, %98 : vector<64x1024xf32>
    %101 = arith.maximumf %98, %100 : vector<64x1024xf32>
    %c2_i32_42 = arith.constant 2 : i32
    %102 = tpu.memref_slice %arg11[%c2_i32_42] : memref<3x!tpu.dma_semaphore, #tpu.memory_space<semaphore_mem>> -> memref<1x!tpu.dma_semaphore, #tpu.memory_space<semaphore_mem>>
    %103 = tpu.memref_squeeze %102 : memref<1x!tpu.dma_semaphore, #tpu.memory_space<semaphore_mem>> -> memref<!tpu.dma_semaphore, #tpu.memory_space<semaphore_mem>>
    tpu.wait_dma2 semaphore(%103 : memref<!tpu.dma_semaphore, #tpu.memory_space<semaphore_mem>>) src(%arg5 : memref<1024x256xbf16, #tpu.memory_space<any>>) dst(%arg10 : memref<1024x256xbf16, #tpu.memory_space<vmem>>)
    %104 = arith.truncf %101 : vector<64x1024xf32> to vector<64x1024xbf16>
    %c0_43 = arith.constant 0 : index
    %c0_44 = arith.constant 0 : index
    %105 = vector.load %arg10[%c0_43, %c0_44] : memref<1024x256xbf16, #tpu.memory_space<vmem>>, vector<1024x256xbf16>
    %cst_45 = arith.constant dense<0.000000e+00> : vector<64x256xf32>
    %106 = tpu.matmul %104, %105, %cst_45 {dimension_numbers = #tpu.dot_dimension_numbers<[1], [0], [0], [1], [0, 0, 1, 1], [], []>} : vector<64x1024xbf16>, vector<1024x256xbf16>, vector<64x256xf32> -> vector<64x256xf32>
    %107 = vector.broadcast %13 : vector<1x256xf32> to vector<64x256xf32>
    %108 = arith.addf %106, %107 : vector<64x256xf32>
    %109 = math.tanh %108 : vector<64x256xf32>
    %c0_46 = arith.constant 0 : index
    %c0_47 = arith.constant 0 : index
    %110 = vector.load %arg7[%c0_46, %c0_47] : memref<64x256xf32, #tpu.memory_space<vmem>>, vector<64x256xf32>
    tpu.vector_store %arg7[%c0_46, %c0_47], %109 {strides = array<i32>} : memref<64x256xf32, #tpu.memory_space<vmem>>, vector<64x256xf32>,
    return
  }
}

</mosaic_0001>

<llo_original>
// kernel: tpu_custom_call.1
$region0: #{tpu_custom_call.1}
  #allocation0 [shape = 'u32[]', space=smem, size = 0x4, offset = 0x4, fixed_abs, tag = 'smem constant byte address 0x4 - core index']
  #allocation1 [shape = 'u32[144,128]{1,0:T(1,128)}', space=vmem, size = 0x12000, scoped, tag = 'internal scratch']
  #allocation2 [shape = 'bf16[256,512]{1,0:T(16,128)(2,1)}', space=vmem, size = 0x40000, scoped, tag = 'scratch operand']
  #allocation3 [shape = 'bf16[512,1024]{1,0:T(16,128)(2,1)}', space=vmem, size = 0x100000, scoped, tag = 'scratch operand']
  #allocation4 [shape = 'bf16[1024,256]{1,0:T(16,128)(2,1)}', space=vmem, size = 0x80000, scoped, tag = 'scratch operand']
  #allocation5 [shape = 's32[3]{0}', space=sflag, size = 0xc, scoped, tag = 'scratch operand']
  #allocation10 [shape = 's32[]', space=sflag, size = 0x4, offset = 0, fixed_abs, tag = 'sflag constant byte address 0x0 - dummy sync flag']
  #allocation12 [shape = 's32[]', space=sflag, size = 0x4, offset = 0, fixed_abs, tag = 'sflag constant byte address 0x0 - dummy sync flag']
  #allocation14 [shape = 's32[]', space=sflag, size = 0x4, offset = 0, fixed_abs, tag = 'sflag constant byte address 0x0 - dummy sync flag']
  %s0 = inlined_call_operand.vmem [shape: f32[64,32], index: 0, kind: input, shape index: {}]
  %s1 = inlined_call_operand.vmem [shape: bf16[32,128], index: 1, kind: input, shape index: {}]
  %s2 = inlined_call_operand.hbm [shape: bf16[128,256], index: 2, kind: input, shape index: {}]
  %s3 = inlined_call_operand.hbm [shape: bf16[256,512], index: 3, kind: input, shape index: {}]
  %s4 = inlined_call_operand.hbm [shape: bf16[512,1024], index: 4, kind: input, shape index: {}]
  %s5 = inlined_call_operand.hbm [shape: bf16[1024,256], index: 5, kind: input, shape index: {}]
  %s6 = inlined_call_operand.vmem [shape: f32[1,3968], index: 6, kind: input, shape index: {}]
  %s7 = inlined_call_operand.hbm [shape: f32[64,256], index: 7, kind: output, shape index: {}]
  %s8 = sld [smem:[#allocation0]]
  $region30: #{tpu_custom_call.1} parent=0
    _
  %s10 = ssub.s32 1, %s8
  %s11 = scalar_select 0, %s10, %s8
  $region1: #{tpu_custom_call.1} parent=0
    #allocation6 [shape = 'u8[65536]{0}', space=vmem, size = 0x10000, scoped, tag = 'input window, operand 2, single buffered']
    #allocation7 [shape = 's32[1]{0}', space=sflag, size = 0x4, scoped, tag = 'scoped memory for tpu_custom_call.1']
    #allocation8 [shape = 's32[1]{0}', space=sflag, size = 0x4, scoped, tag = 'scoped memory for tpu_custom_call.1']
    #allocation9 [shape = 'u8[65536]{0}', space=vmem, size = 0x10000, scoped, tag = 'output window, operand 0, single buffered']
    #allocation11 [shape = 'u32[9]{0}', space=smem, size = 0x24, scoped, tag = 'DMA stride descriptor']
    #allocation13 [shape = 'u32[9]{0}', space=smem, size = 0x24, scoped, tag = 'DMA stride descriptor']
    #allocation15 [shape = 'u32[9]{0}', space=smem, size = 0x24, scoped, tag = 'DMA stride descriptor']
    %12 = vsyncpa [#allocation7], 0
    %13 = vsyncpa [#allocation8], 0
    // Predicated region
    $region2: #{tpu_custom_call.1} parent=1 // pred_check
      _
    $region3: #{tpu_custom_call.1} parent=1 // pred_check_branch
      %15 = sbr.rel (0) target = $region5
    $region4: #{tpu_custom_call.1} parent=1 // pred_region
      _
    $region5: #{tpu_custom_call.1} parent=1 // pred_fallthru
      _
    // Predicated region
    $region6: #{tpu_custom_call.1} parent=1 // pred_check
      _
    $region7: #{tpu_custom_call.1} parent=1 // pred_check_branch
      %17 = sbr.rel (0) target = $region9
    $region8: #{tpu_custom_call.1} parent=1 // pred_region
      _
    $region9: #{tpu_custom_call.1} parent=1 // pred_fallthru
      _
    // Predicated region
    $region10: #{tpu_custom_call.1} parent=1 // pred_check
      _
    $region11: #{tpu_custom_call.1} parent=1 // pred_check_branch
      %19 = sbr.rel (0) target = $region13
    $region12: #{tpu_custom_call.1} parent=1 // pred_region
      %s21 = ssub.s32 2048, 2048
      %22 = vsyncadd [#allocation7], %s21
      %s23 = sshll.u32 [#allocation6], 4
      %s24 = int_to_ptr.vmem [resolvable:$true] %s23
      %29 = dma.hbm_to_vmem [thread:$0]  %s2, 2048, %s24, [#allocation7], 128, 128, 8
    $region13: #{tpu_custom_call.1} parent=1 // pred_fallthru
      _
    // Predicated region
    $region14: #{tpu_custom_call.1} parent=1 // pred_check
      _
    $region15: #{tpu_custom_call.1} parent=1 // pred_check_branch
      %31 = sbr.rel (0) target = $region17
    $region16: #{tpu_custom_call.1} parent=1 // pred_region
      _
    $region17: #{tpu_custom_call.1} parent=1 // pred_fallthru
      _
    // Predicated region
    $region18: #{tpu_custom_call.1} parent=1 // pred_check
      _
    $region19: #{tpu_custom_call.1} parent=1 // pred_check_branch
      %33 = sbr.rel (0) target = $region21
    $region20: #{tpu_custom_call.1} parent=1 // pred_region
      %34 = dma.done [#allocation7], 2048
    $region21: #{tpu_custom_call.1} parent=1 // pred_fallthru
      _
    %s37 = sshll.u32 1, 14
    %s38 = sxor.u32 4294967295, %s37
    %s40 = sld [smem:[#allocation0]]
    %s41 = sadd.s32 2, %s40
    %s43 = sshll.u32 7, 26
    %s44 = sxor.u32 4294967295, %s43
    %s45 = sand.u32 0, %s44
    %s46 = sshll.u32 %s41, 26
    %s47 = sor.u32 %s45, %s46
    %s48 = sshll.u32 [#allocation2], 4
    %s49 = int_to_ptr.vmem [resolvable:$true] %s48
    %52 = sst [smem:[#allocation11]] 512
    %s53 = scalar_lea.smem [#allocation11], 1
    %54 = sst [smem:[%s53]] 512
    %s55 = scalar_lea.smem [#allocation11], 2
    %56 = sst [smem:[%s55]] 4
    %s57 = scalar_lea.smem [#allocation11], 3
    %58 = sst [smem:[%s57]] 64
    %s59 = scalar_lea.smem [#allocation11], 4
    %60 = sst [smem:[%s59]] 128
    %s61 = scalar_lea.smem [#allocation11], 5
    %62 = sst [smem:[%s61]] 2
    %s63 = scalar_lea.smem [#allocation11], 6
    %64 = sst [smem:[%s63]] 256
    %s65 = scalar_lea.smem [#allocation11], 7
    %66 = sst [smem:[%s65]] 64
    %s67 = scalar_lea.smem [#allocation11], 8
    %68 = sst [smem:[%s67]] 4
    %70 = dma.general %s3, 8192, %s49, [#allocation5], [#allocation10], [#allocation11], %s47, 0
    %s71 = scalar_lea.sflag [#allocation5], 1
    %s73 = sshll.u32 1, 14
    %s74 = sxor.u32 4294967295, %s73
    %s76 = sadd.s32 2, %s40
    %s78 = sshll.u32 7, 26
    %s79 = sxor.u32 4294967295, %s78
    %s80 = sand.u32 0, %s79
    %s81 = sshll.u32 %s76, 26
    %s82 = sor.u32 %s80, %s81
    %s83 = sshll.u32 [#allocation3], 4
    %s84 = int_to_ptr.vmem [resolvable:$true] %s83
    %87 = sst [smem:[#allocation13]] 1024
    %s88 = scalar_lea.smem [#allocation13], 1
    %89 = sst [smem:[%s88]] 1024
    %s90 = scalar_lea.smem [#allocation13], 2
    %91 = sst [smem:[%s90]] 8
    %s92 = scalar_lea.smem [#allocation13], 3
    %93 = sst [smem:[%s92]] 64
    %s94 = scalar_lea.smem [#allocation13], 4
    %95 = sst [smem:[%s94]] 128
    %s96 = scalar_lea.smem [#allocation13], 5
    %97 = sst [smem:[%s96]] 2
    %s98 = scalar_lea.smem [#allocation13], 6
    %99 = sst [smem:[%s98]] 512
    %s100 = scalar_lea.smem [#allocation13], 7
    %101 = sst [smem:[%s100]] 64
    %s102 = scalar_lea.smem [#allocation13], 8
    %103 = sst [smem:[%s102]] 4
    %105 = dma.general %s4, 32768, %s84, %s71, [#allocation12], [#allocation13], %s82, 0
    %s106 = scalar_lea.sflag [#allocation5], 2
    %s108 = sshll.u32 1, 14
    %s109 = sxor.u32 4294967295, %s108
    %s111 = sadd.s32 2, %s40
    %s113 = sshll.u32 7, 26
    %s114 = sxor.u32 4294967295, %s113
    %s115 = sand.u32 0, %s114
    %s116 = sshll.u32 %s111, 26
    %s117 = sor.u32 %s115, %s116
    %s118 = sshll.u32 [#allocation4], 4
    %s119 = int_to_ptr.vmem [resolvable:$true] %s118
    %122 = sst [smem:[#allocation15]] 256
    %s123 = scalar_lea.smem [#allocation15], 1
    %124 = sst [smem:[%s123]] 256
    %s125 = scalar_lea.smem [#allocation15], 2
    %126 = sst [smem:[%s125]] 2
    %s127 = scalar_lea.smem [#allocation15], 3
    %128 = sst [smem:[%s127]] 64
    %s129 = scalar_lea.smem [#allocation15], 4
    %130 = sst [smem:[%s129]] 128
    %s131 = scalar_lea.smem [#allocation15], 5
    %132 = sst [smem:[%s131]] 2
    %s133 = scalar_lea.smem [#allocation15], 6
    %134 = sst [smem:[%s133]] 128
    %s135 = scalar_lea.smem [#allocation15], 7
    %136 = sst [smem:[%s135]] 64
    %s137 = scalar_lea.smem [#allocation15], 8
    %138 = sst [smem:[%s137]] 4
    %140 = dma.general %s5, 16384, %s119, %s106, [#allocation14], [#allocation15], %s117, 0
    %v141 = vld [vmem:[%s6] sm:$0x1]
    %v142 = vld [vmem:[%s6 + $0x1] sm:$0x3]
    %v143 = vld [vmem:[%s6 + $0x3] sm:$0x3]
    %v144 = vld [vmem:[%s6 + $0x5] sm:$0xf]
    %v145 = vld [vmem:[%s6 + $0x9] sm:$0xf]
    %v146 = vld [vmem:[%s6 + $0xd] sm:$0xff]
    %v147 = vld [vmem:[%s6 + $0x15] sm:$0xff]
    %v148 = vld [vmem:[%s6 + $0x1d] sm:$0x3]
    %v149 = vld [vmem:[%s0] sm:$0xff]
    %v150 = vld [vmem:[%s0 + $0x8] sm:$0xff]
    %v151 = vld [vmem:[%s0 + $0x10] sm:$0xff]
    %v152 = vld [vmem:[%s0 + $0x18] sm:$0xff]
    %v153 = vld [vmem:[%s0 + $0x20] sm:$0xff]
    %v154 = vld [vmem:[%s0 + $0x28] sm:$0xff]
    %v155 = vld [vmem:[%s0 + $0x30] sm:$0xff]
    %v156 = vld [vmem:[%s0 + $0x38] sm:$0xff]
    %v157 = vpack.c.bf16 %v150, %v149
    %v158 = vpack.c.bf16 %v152, %v151
    %v159 = vpack.c.bf16 %v154, %v153
    %v160 = vpack.c.bf16 %v156, %v155
    %v161 = vld [vmem:[%s1] sm:$0xf]
    %v162 = vld [vmem:[%s1 + $0x4] sm:$0xf]
    %v163 = vld [vmem:[%s1 + $0x8] sm:$0xf]
    %v164 = vld [vmem:[%s1 + $0xc] sm:$0xf]
    %v166 = vlaneseq
    %v167 = vshrl.u32 %v166, 7
    %v168 = vsub.s32 0, %v167
    %v169 = vrot.slane %v141, %v168
    %v175 = vunpack.c.l.b16 %v161
    %v176 = vunpack.c.l.b16 %v162
    %v177 = vunpack.c.l.b16 %v163
    %v178 = vunpack.c.l.b16 %v164
    %v179 = vpack.c.b16 %v176, %v175
    %v180 = vpack.c.b16 %v178, %v177
    %vm183 = vcmask 261120
    %v185 = vsel %vm183, %v157, 0
    %v188 = vsel %vm183, %v158, 0
    %v191 = vsel %vm183, %v159, 0
    %v194 = vsel %vm183, %v160, 0
    %196 = vmatprep.subr.bf16.mxu0 0
    %197 = vmatpush1.bf16.msra.mxu0 %v179
    %198 = vmatprep.subr.bf16.mxu0 0
    %199 = vmatpush1.bf16.msra.mxu0 %v180
    %200 = vmatprep.subr.bf16.mxu0 0
    %201 = vmatpush1.bf16.msra.mxu0 0
    %202 = vmatprep.subr.bf16.mxu0 0
    %203 = vmatpush1.bf16.msra.mxu0 0
    %204 = vmatprep.subr.bf16.mxu0 0
    %205 = vmatpush1.bf16.msra.mxu0 0
    %206 = vmatprep.subr.bf16.mxu0 0
    %207 = vmatpush1.bf16.msra.mxu0 0
    %208 = vmatprep.subr.bf16.mxu0 0
    %209 = vmatpush1.bf16.msra.mxu0 0
    %210 = vmatprep.subr.bf16.mxu0 0
    %211 = vmatpush1.bf16.msra.mxu0 0
    %212 = vmatprep.subr.bf16.mxu0 0
    %213 = vmatpush1.bf16.msra.mxu0 0
    %214 = vmatprep.subr.bf16.mxu0 0
    %215 = vmatpush1.bf16.msra.mxu0 0
    %216 = vmatprep.subr.bf16.mxu0 0
    %217 = vmatpush1.bf16.msra.mxu0 0
    %218 = vmatprep.subr.bf16.mxu0 0
    %219 = vmatpush1.bf16.msra.mxu0 0
    %220 = vmatprep.subr.bf16.mxu0 0
    %221 = vmatpush1.bf16.msra.mxu0 0
    %222 = vmatprep.subr.bf16.mxu0 0
    %223 = vmatpush1.bf16.msra.mxu0 0
    %224 = vmatprep.subr.bf16.mxu0 0
    %225 = vmatpush1.bf16.msra.mxu0 0
    %226 = vmatprep.subr.bf16.mxu0 0
    %227 = vmatpush1.bf16.msra.mxu0 0
    %228 = vmatprep.mubr.bf16.mxu0 0
    %229 = vmatmul.mubr.bf16.gmra.mrb[0].mxu0 %v185
    %v230 = vpop.f32.mrb[0].mxu0
    %v231 = vadd.f32 %v169, %v230
    %v232 = vpop.f32.mrb[0].mxu0
    %v233 = vpop.f32.mrb[0].mxu0
    %v234 = vadd.f32 %v169, %v233
    %v235 = vpop.f32.mrb[0].mxu0
    %236 = vmatprep.mubr.bf16.mxu0 0
    %237 = vmatmul.mubr.bf16.gmra.mrb[0].mxu0 %v188
    %v238 = vpop.f32.mrb[0].mxu0
    %v239 = vadd.f32 %v169, %v238
    %v240 = vpop.f32.mrb[0].mxu0
    %v241 = vpop.f32.mrb[0].mxu0
    %v242 = vadd.f32 %v169, %v241
    %v243 = vpop.f32.mrb[0].mxu0
    %244 = vmatprep.mubr.bf16.mxu0 0
    %245 = vmatmul.mubr.bf16.gmra.mrb[0].mxu0 %v191
    %v246 = vpop.f32.mrb[0].mxu0
    %v247 = vadd.f32 %v169, %v246
    %v248 = vpop.f32.mrb[0].mxu0
    %v249 = vpop.f32.mrb[0].mxu0
    %v250 = vadd.f32 %v169, %v249
    %v251 = vpop.f32.mrb[0].mxu0
    %252 = vmatprep.mubr.bf16.mxu0 0
    %253 = vmatmul.mubr.bf16.gmra.mrb[0].mxu0 %v194
    %v254 = vpop.f32.mrb[0].mxu0
    %v255 = vadd.f32 %v169, %v254
    %v256 = vpop.f32.mrb[0].mxu0
    %v257 = vpop.f32.mrb[0].mxu0
    %v258 = vadd.f32 %v169, %v257
    %v259 = vpop.f32.mrb[0].mxu0
    %260 = vdwg.mxu0
    %v261 = vmul.f32 %v231, 0.2
    %v262 = vmul.f32 %v234, 0.2
    %v263 = vmul.f32 %v239, 0.2
    %v264 = vmul.f32 %v242, 0.2
    %v265 = vmul.f32 %v247, 0.2
    %v266 = vmul.f32 %v250, 0.2
    %v267 = vmul.f32 %v255, 0.2
    %v268 = vmul.f32 %v258, 0.2
    %v269 = vmax.f32 %v231, %v261
    %v270 = vmax.f32 %v234, %v262
    %v271 = vmax.f32 %v239, %v263
    %v272 = vmax.f32 %v242, %v264
    %v273 = vmax.f32 %v247, %v265
    %v274 = vmax.f32 %v250, %v266
    %v275 = vmax.f32 %v255, %v267
    %v276 = vmax.f32 %v258, %v268
    %v277 = vpack.c.bf16 %v270, %v269
    %v278 = vpack.c.bf16 %v272, %v271
    %v279 = vpack.c.bf16 %v274, %v273
    %v280 = vpack.c.bf16 %v276, %v275
    %v281 = vld [vmem:[#allocation6] sm:$0xff]
    %v282 = vld [vmem:[#allocation6 + $0x8] sm:$0xff]
    %v283 = vld [vmem:[#allocation6 + $0x10] sm:$0xff]
    %v284 = vld [vmem:[#allocation6 + $0x18] sm:$0xff]
    %v285 = vld [vmem:[#allocation6 + $0x20] sm:$0xff]
    %v286 = vld [vmem:[#allocation6 + $0x28] sm:$0xff]
    %v287 = vld [vmem:[#allocation6 + $0x30] sm:$0xff]
    %v288 = vld [vmem:[#allocation6 + $0x38] sm:$0xff]
    %v289 = vld [vmem:[#allocation6 + $0x40] sm:$0xff]
    %v290 = vld [vmem:[#allocation6 + $0x48] sm:$0xff]
    %v291 = vld [vmem:[#allocation6 + $0x50] sm:$0xff]
    %v292 = vld [vmem:[#allocation6 + $0x58] sm:$0xff]
    %v293 = vld [vmem:[#allocation6 + $0x60] sm:$0xff]
    %v294 = vld [vmem:[#allocation6 + $0x68] sm:$0xff]
    %v295 = vld [vmem:[#allocation6 + $0x70] sm:$0xff]
    %v296 = vld [vmem:[#allocation6 + $0x78] sm:$0xff]
    %v313 = vunpack.c.l.b16 %v281
    %v314 = vunpack.c.h.b16 %v281
    %v315 = vunpack.c.l.b16 %v282
    %v316 = vunpack.c.h.b16 %v282
    %v317 = vunpack.c.l.b16 %v283
    %v318 = vunpack.c.h.b16 %v283
    %v319 = vunpack.c.l.b16 %v284
    %v320 = vunpack.c.h.b16 %v284
    %v321 = vunpack.c.l.b16 %v285
    %v322 = vunpack.c.h.b16 %v285
    %v323 = vunpack.c.l.b16 %v286
    %v324 = vunpack.c.h.b16 %v286
    %v325 = vunpack.c.l.b16 %v287
    %v326 = vunpack.c.h.b16 %v287
    %v327 = vunpack.c.l.b16 %v288
    %v328 = vunpack.c.h.b16 %v288
    %v329 = vunpack.c.l.b16 %v289
    %v330 = vunpack.c.h.b16 %v289
    %v331 = vunpack.c.l.b16 %v290
    %v332 = vunpack.c.h.b16 %v290
    %v333 = vunpack.c.l.b16 %v291
    %v334 = vunpack.c.h.b16 %v291
    %v335 = vunpack.c.l.b16 %v292
    %v336 = vunpack.c.h.b16 %v292
    %v337 = vunpack.c.l.b16 %v293
    %v338 = vunpack.c.h.b16 %v293
    %v339 = vunpack.c.l.b16 %v294
    %v340 = vunpack.c.h.b16 %v294
    %v341 = vunpack.c.l.b16 %v295
    %v342 = vunpack.c.h.b16 %v295
    %v343 = vunpack.c.l.b16 %v296
    %v344 = vunpack.c.h.b16 %v296
    %v345 = vpack.c.b16 %v315, %v313
    %v346 = vpack.c.b16 %v316, %v314
    %v347 = vpack.c.b16 %v319, %v317
    %v348 = vpack.c.b16 %v320, %v318
    %v349 = vpack.c.b16 %v323, %v321
    %v350 = vpack.c.b16 %v324, %v322
    %v351 = vpack.c.b16 %v327, %v325
    %v352 = vpack.c.b16 %v328, %v326
    %v353 = vpack.c.b16 %v331, %v329
    %v354 = vpack.c.b16 %v332, %v330
    %v355 = vpack.c.b16 %v335, %v333
    %v356 = vpack.c.b16 %v336, %v334
    %v357 = vpack.c.b16 %v339, %v337
    %v358 = vpack.c.b16 %v340, %v338
    %v359 = vpack.c.b16 %v343, %v341
    %v360 = vpack.c.b16 %v344, %v342
    %377 = vmatprep.subr.bf16.mxu0 %v346
    %378 = vmatpush1.bf16.msra.mxu0 %v345
    %379 = vmatprep.subr.bf16.mxu0 %v348
    %380 = vmatpush1.bf16.msra.mxu0 %v347
    %381 = vmatprep.subr.bf16.mxu0 %v350
    %382 = vmatpush1.bf16.msra.mxu0 %v349
    %383 = vmatprep.subr.bf16.mxu0 %v352
    %384 = vmatpush1.bf16.msra.mxu0 %v351
    %385 = vmatprep.subr.bf16.mxu0 %v354
    %386 = vmatpush1.bf16.msra.mxu0 %v353
    %387 = vmatprep.subr.bf16.mxu0 %v356
    %388 = vmatpush1.bf16.msra.mxu0 %v355
    %389 = vmatprep.subr.bf16.mxu0 %v358
    %390 = vmatpush1.bf16.msra.mxu0 %v357
    %391 = vmatprep.subr.bf16.mxu0 %v360
    %392 = vmatpush1.bf16.msra.mxu0 %v359
    %393 = vmatprep.subr.bf16.mxu0 0
    %394 = vmatpush1.bf16.msra.mxu0 0
    %395 = vmatprep.subr.bf16.mxu0 0
    %396 = vmatpush1.bf16.msra.mxu0 0
    %397 = vmatprep.subr.bf16.mxu0 0
    %398 = vmatpush1.bf16.msra.mxu0 0
    %399 = vmatprep.subr.bf16.mxu0 0
    %400 = vmatpush1.bf16.msra.mxu0 0
    %401 = vmatprep.subr.bf16.mxu0 0
    %402 = vmatpush1.bf16.msra.mxu0 0
    %403 = vmatprep.subr.bf16.mxu0 0
    %404 = vmatpush1.bf16.msra.mxu0 0
    %405 = vmatprep.subr.bf16.mxu0 0
    %406 = vmatpush1.bf16.msra.mxu0 0
    %407 = vmatprep.subr.bf16.mxu0 0
    %408 = vmatpush1.bf16.msra.mxu0 0
    %409 = vmatprep.mubr.bf16.mxu0 0
    %410 = vmatmul.mubr.bf16.gmra.mrb[0].mxu0 %v277
    %v411 = vpop.f32.mrb[0].mxu0
    %v412 = vadd.f32 0.0, %v411
    %v413 = vpop.f32.mrb[0].mxu0
    %v414 = vadd.f32 0.0, %v413
    %v415 = vpop.f32.mrb[0].mxu0
    %v416 = vadd.f32 0.0, %v415
    %v417 = vpop.f32.mrb[0].mxu0
    %v418 = vadd.f32 0.0, %v417
    %419 = vmatprep.mubr.bf16.mxu0 0
    %420 = vmatmul.mubr.bf16.gmra.mrb[0].mxu0 %v278
    %v421 = vpop.f32.mrb[0].mxu0
    %v422 = vadd.f32 0.0, %v421
    %v423 = vpop.f32.mrb[0].mxu0
    %v424 = vadd.f32 0.0, %v423
    %v425 = vpop.f32.mrb[0].mxu0
    %v426 = vadd.f32 0.0, %v425
    %v427 = vpop.f32.mrb[0].mxu0
    %v428 = vadd.f32 0.0, %v427
    %429 = vmatprep.mubr.bf16.mxu0 0
    %430 = vmatmul.mubr.bf16.gmra.mrb[0].mxu0 %v279
    %v431 = vpop.f32.mrb[0].mxu0
    %v432 = vadd.f32 0.0, %v431
    %v433 = vpop.f32.mrb[0].mxu0
    %v434 = vadd.f32 0.0, %v433
    %v435 = vpop.f32.mrb[0].mxu0
    %v436 = vadd.f32 0.0, %v435
    %v437 = vpop.f32.mrb[0].mxu0
    %v438 = vadd.f32 0.0, %v437
    %439 = vmatprep.mubr.bf16.mxu0 0
    %440 = vmatmul.mubr.bf16.gmra.mrb[0].mxu0 %v280
    %v441 = vpop.f32.mrb[0].mxu0
    %v442 = vadd.f32 0.0, %v441
    %v443 = vpop.f32.mrb[0].mxu0
    %v444 = vadd.f32 0.0, %v443
    %v445 = vpop.f32.mrb[0].mxu0
    %v446 = vadd.f32 0.0, %v445
    %v447 = vpop.f32.mrb[0].mxu0
    %v448 = vadd.f32 0.0, %v447
    %449 = vdwg.mxu0
    %v450 = vadd.f32 %v412, %v416
    %v451 = vadd.f32 %v450, %v422
    %v452 = vadd.f32 %v451, %v426
    %v453 = vadd.f32 %v452, %v432
    %v454 = vadd.f32 %v453, %v436
    %v455 = vadd.f32 %v454, %v442
    %v456 = vadd.f32 %v455, %v446
    %v457 = vrot.slane %v456, 4
    %v458 = vadd.f32 %v456, %v457
    %v459 = vrot.slane %v458, 2
    %v460 = vadd.f32 %v458, %v459
    %v461 = vrot.slane %v460, 1
    %v462 = vadd.f32 %v460, %v461
    %v463 = vadd.f32 %v414, %v418
    %v464 = vadd.f32 %v463, %v424
    %v465 = vadd.f32 %v464, %v428
    %v466 = vadd.f32 %v465, %v434
    %v467 = vadd.f32 %v466, %v438
    %v468 = vadd.f32 %v467, %v444
    %v469 = vadd.f32 %v468, %v448
    %v470 = vrot.slane %v469, 4
    %v471 = vadd.f32 %v469, %v470
    %v472 = vrot.slane %v471, 2
    %v473 = vadd.f32 %v471, %v472
    %v474 = vrot.slane %v473, 1
    %v475 = vadd.f32 %v473, %v474
    %v476 = vrcp.pop 64.0
    %v477 = vmul.f32 %v462, %v476
    %v478 = vmul.f32 %v475, %v476
    %v479 = vsub.f32 %v412, %v477
    %v480 = vsub.f32 %v414, %v478
    %v481 = vsub.f32 %v416, %v477
    %v482 = vsub.f32 %v418, %v478
    %v483 = vsub.f32 %v422, %v477
    %v484 = vsub.f32 %v424, %v478
    %v485 = vsub.f32 %v426, %v477
    %v486 = vsub.f32 %v428, %v478
    %v487 = vsub.f32 %v432, %v477
    %v488 = vsub.f32 %v434, %v478
    %v489 = vsub.f32 %v436, %v477
    %v490 = vsub.f32 %v438, %v478
    %v491 = vsub.f32 %v442, %v477
    %v492 = vsub.f32 %v444, %v478
    %v493 = vsub.f32 %v446, %v477
    %v494 = vsub.f32 %v448, %v478
    %v495 = vmul.f32 %v479, %v479
    %v496 = vmul.f32 %v480, %v480
    %v497 = vmul.f32 %v481, %v481
    %v498 = vmul.f32 %v482, %v482
    %v499 = vmul.f32 %v483, %v483
    %v500 = vmul.f32 %v484, %v484
    %v501 = vmul.f32 %v485, %v485
    %v502 = vmul.f32 %v486, %v486
    %v503 = vmul.f32 %v487, %v487
    %v504 = vmul.f32 %v488, %v488
    %v505 = vmul.f32 %v489, %v489
    %v506 = vmul.f32 %v490, %v490
    %v507 = vmul.f32 %v491, %v491
    %v508 = vmul.f32 %v492, %v492
    %v509 = vmul.f32 %v493, %v493
    %v510 = vmul.f32 %v494, %v494
    %v511 = vadd.f32 %v495, %v497
    %v512 = vadd.f32 %v511, %v499
    %v513 = vadd.f32 %v512, %v501
    %v514 = vadd.f32 %v513, %v503
    %v515 = vadd.f32 %v514, %v505
    %v516 = vadd.f32 %v515, %v507
    %v517 = vadd.f32 %v516, %v509
    %v518 = vrot.slane %v517, 4
    %v519 = vadd.f32 %v517, %v518
    %v520 = vrot.slane %v519, 2
    %v521 = vadd.f32 %v519, %v520
    %v522 = vrot.slane %v521, 1
    %v523 = vadd.f32 %v521, %v522
    %v524 = vadd.f32 %v496, %v498
    %v525 = vadd.f32 %v524, %v500
    %v526 = vadd.f32 %v525, %v502
    %v527 = vadd.f32 %v526, %v504
    %v528 = vadd.f32 %v527, %v506
    %v529 = vadd.f32 %v528, %v508
    %v530 = vadd.f32 %v529, %v510
    %v531 = vrot.slane %v530, 4
    %v532 = vadd.f32 %v530, %v531
    %v533 = vrot.slane %v532, 2
    %v534 = vadd.f32 %v532, %v533
    %v535 = vrot.slane %v534, 1
    %v536 = vadd.f32 %v534, %v535
    %v537 = vmul.f32 %v523, %v476
    %v538 = vmul.f32 %v536, %v476
    %v539 = vadd.f32 %v537, 0.8
    %v540 = vadd.f32 %v538, 0.8
    %v541 = vrsqrt.pop %v539
    %v542 = vrsqrt.pop %v540
    %v544 = vlaneseq
    %v545 = vshrl.u32 %v544, 7
    %v546 = vsub.s32 0, %v545
    %v547 = vrot.slane %v142, %v546
    %v548 = vlaneseq
    %v549 = vshrl.u32 %v548, 7
    %v550 = vsub.s32 1, %v549
    %v551 = vrot.slane %v142, %v550
    %v554 = vmul.f32 %v541, %v547
    %v555 = vmul.f32 %v542, %v551
    %v556 = vlaneseq
    %v557 = vshrl.u32 %v556, 7
    %v558 = vsub.s32 0, %v557
    %v559 = vrot.slane %v554, %v558
    %v560 = vlaneseq
    %v561 = vshrl.u32 %v560, 7
    %v562 = vsub.s32 0, %v561
    %v563 = vrot.slane %v555, %v562
    %v564 = vmul.f32 %v479, %v559
    %v565 = vmul.f32 %v480, %v563
    %v566 = vmul.f32 %v481, %v559
    %v567 = vmul.f32 %v482, %v563
    %v568 = vmul.f32 %v483, %v559
    %v569 = vmul.f32 %v484, %v563
    %v570 = vmul.f32 %v485, %v559
    %v571 = vmul.f32 %v486, %v563
    %v572 = vmul.f32 %v487, %v559
    %v573 = vmul.f32 %v488, %v563
    %v574 = vmul.f32 %v489, %v559
    %v575 = vmul.f32 %v490, %v563
    %v576 = vmul.f32 %v491, %v559
    %v577 = vmul.f32 %v492, %v563
    %v578 = vmul.f32 %v493, %v559
    %v579 = vmul.f32 %v494, %v563
    %v581 = vlaneseq
    %v582 = vshrl.u32 %v581, 7
    %v583 = vsub.s32 0, %v582
    %v584 = vrot.slane %v143, %v583
    %v585 = vlaneseq
    %v586 = vshrl.u32 %v585, 7
    %v587 = vsub.s32 1, %v586
    %v588 = vrot.slane %v143, %v587
    %v591 = vadd.f32 %v564, %v584
    %v592 = vadd.f32 %v565, %v588
    %v593 = vadd.f32 %v566, %v584
    %v594 = vadd.f32 %v567, %v588
    %v595 = vadd.f32 %v568, %v584
    %v596 = vadd.f32 %v569, %v588
    %v597 = vadd.f32 %v570, %v584
    %v598 = vadd.f32 %v571, %v588
    %v599 = vadd.f32 %v572, %v584
    %v600 = vadd.f32 %v573, %v588
    %v601 = vadd.f32 %v574, %v584
    %v602 = vadd.f32 %v575, %v588
    %v603 = vadd.f32 %v576, %v584
    %v604 = vadd.f32 %v577, %v588
    %v605 = vadd.f32 %v578, %v584
    %v606 = vadd.f32 %v579, %v588
    %v607 = vmul.f32 %v591, 0.2
    %v608 = vmul.f32 %v592, 0.2
    %v609 = vmul.f32 %v593, 0.2
    %v610 = vmul.f32 %v594, 0.2
    %v611 = vmul.f32 %v595, 0.2
    %v612 = vmul.f32 %v596, 0.2
    %v613 = vmul.f32 %v597, 0.2
    %v614 = vmul.f32 %v598, 0.2
    %v615 = vmul.f32 %v599, 0.2
    %v616 = vmul.f32 %v600, 0.2
    %v617 = vmul.f32 %v601, 0.2
    %v618 = vmul.f32 %v602, 0.2
    %v619 = vmul.f32 %v603, 0.2
    %v620 = vmul.f32 %v604, 0.2
    %v621 = vmul.f32 %v605, 0.2
    %v622 = vmul.f32 %v606, 0.2
    %v623 = vmax.f32 %v591, %v607
    %v624 = vmax.f32 %v592, %v608
    %v625 = vmax.f32 %v593, %v609
    %v626 = vmax.f32 %v594, %v610
    %v627 = vmax.f32 %v595, %v611
    %v628 = vmax.f32 %v596, %v612
    %v629 = vmax.f32 %v597, %v613
    %v630 = vmax.f32 %v598, %v614
    %v631 = vmax.f32 %v599, %v615
    %v632 = vmax.f32 %v600, %v616
    %v633 = vmax.f32 %v601, %v617
    %v634 = vmax.f32 %v602, %v618
    %v635 = vmax.f32 %v603, %v619
    %v636 = vmax.f32 %v604, %v620
    %v637 = vmax.f32 %v605, %v621
    %v638 = vmax.f32 %v606, %v622
    %s639 = smul.u32 4, 32
    %s640 = smul.u32 %s639, 4
    %s641 = sshll.u32 %s640, 4
    %642 = dma.done [#allocation5], %s641
    %v643 = vpack.c.bf16 %v625, %v623
    %v644 = vpack.c.bf16 %v626, %v624
    %v645 = vpack.c.bf16 %v629, %v627
    %v646 = vpack.c.bf16 %v630, %v628
    %v647 = vpack.c.bf16 %v633, %v631
    %v648 = vpack.c.bf16 %v634, %v632
    %v649 = vpack.c.bf16 %v637, %v635
    %v650 = vpack.c.bf16 %v638, %v636
    %v651 = vld [vmem:[#allocation2] sm:$0xff]
    %v652 = vld [vmem:[#allocation2 + $0x8] sm:$0xff]
    %v653 = vld [vmem:[#allocation2 + $0x10] sm:$0xff]
    %v654 = vld [vmem:[#allocation2 + $0x18] sm:$0xff]
    %v655 = vld [vmem:[#allocation2 + $0x20] sm:$0xff]
    %v656 = vld [vmem:[#allocation2 + $0x28] sm:$0xff]
    %v657 = vld [vmem:[#allocation2 + $0x30] sm:$0xff]
    %v658 = vld [vmem:[#allocation2 + $0x38] sm:$0xff]
    %v659 = vld [vmem:[#allocation2 + $0x40] sm:$0xff]
    %v660 = vld [vmem:[#allocation2 + $0x48] sm:$0xff]
    %v661 = vld [vmem:[#allocation2 + $0x50] sm:$0xff]
    %v662 = vld [vmem:[#allocation2 + $0x58] sm:$0xff]
    %v663 = vld [vmem:[#allocation2 + $0x60] sm:$0xff]
    %v664 = vld [vmem:[#allocation2 + $0x68] sm:$0xff]
    %v665 = vld [vmem:[#allocation2 + $0x70] sm:$0xff]
    %v666 = vld [vmem:[#allocation2 + $0x78] sm:$0xff]
    %v667 = vld [vmem:[#allocation2 + $0x80] sm:$0xff]
    %v668 = vld [vmem:[#allocation2 + $0x88] sm:$0xff]
    %v669 = vld [vmem:[#allocation2 + $0x90] sm:$0xff]
    %v670 = vld [vmem:[#allocation2 + $0x98] sm:$0xff]
    %v671 = vld [vmem:[#allocation2 + $0xa0] sm:$0xff]
    %v672 = vld [vmem:[#allocation2 + $0xa8] sm:$0xff]
    %v673 = vld [vmem:[#allocation2 + $0xb0] sm:$0xff]
    %v674 = vld [vmem:[#allocation2 + $0xb8] sm:$0xff]
    %v675 = vld [vmem:[#allocation2 + $0xc0] sm:$0xff]
    %v676 = vld [vmem:[#allocation2 + $0xc8] sm:$0xff]
    %v677 = vld [vmem:[#allocation2 + $0xd0] sm:$0xff]
    %v678 = vld [vmem:[#allocation2 + $0xd8] sm:$0xff]
    %v679 = vld [vmem:[#allocation2 + $0xe0] sm:$0xff]
    %v680 = vld [vmem:[#allocation2 + $0xe8] sm:$0xff]
    %v681 = vld [vmem:[#allocation2 + $0xf0] sm:$0xff]
    %v682 = vld [vmem:[#allocation2 + $0xf8] sm:$0xff]
    %v683 = vld [vmem:[#allocation2 + $0x100] sm:$0xff]
    %v684 = vld [vmem:[#allocation2 + $0x108] sm:$0xff]
    %v685 = vld [vmem:[#allocation2 + $0x110] sm:$0xff]
    %v686 = vld [vmem:[#allocation2 + $0x118] sm:$0xff]
    %v687 = vld [vmem:[#allocation2 + $0x120] sm:$0xff]
    %v688 = vld [vmem:[#allocation2 + $0x128] sm:$0xff]
    %v689 = vld [vmem:[#allocation2 + $0x130] sm:$0xff]
    %v690 = vld [vmem:[#allocation2 + $0x138] sm:$0xff]
    %v691 = vld [vmem:[#allocation2 + $0x140] sm:$0xff]
    %v692 = vld [vmem:[#allocation2 + $0x148] sm:$0xff]
    %v693 = vld [vmem:[#allocation2 + $0x150] sm:$0xff]
    %v694 = vld [vmem:[#allocation2 + $0x158] sm:$0xff]
    %v695 = vld [vmem:[#allocation2 + $0x160] sm:$0xff]
    %v696 = vld [vmem:[#allocation2 + $0x168] sm:$0xff]
    %v697 = vld [vmem:[#allocation2 + $0x170] sm:$0xff]
    %v698 = vld [vmem:[#allocation2 + $0x178] sm:$0xff]
    %v699 = vld [vmem:[#allocation2 + $0x180] sm:$0xff]
    %v700 = vld [vmem:[#allocation2 + $0x188] sm:$0xff]
    %v701 = vld [vmem:[#allocation2 + $0x190] sm:$0xff]
    %v702 = vld [vmem:[#allocation2 + $0x198] sm:$0xff]
    %v703 = vld [vmem:[#allocation2 + $0x1a0] sm:$0xff]
    %v704 = vld [vmem:[#allocation2 + $0x1a8] sm:$0xff]
    %v705 = vld [vmem:[#allocation2 + $0x1b0] sm:$0xff]
    %v706 = vld [vmem:[#allocation2 + $0x1b8] sm:$0xff]
    %v707 = vld [vmem:[#allocation2 + $0x1c0] sm:$0xff]
    %v708 = vld [vmem:[#allocation2 + $0x1c8] sm:$0xff]
    %v709 = vld [vmem:[#allocation2 + $0x1d0] sm:$0xff]
    %v710 = vld [vmem:[#allocation2 + $0x1d8] sm:$0xff]
    %v711 = vld [vmem:[#allocation2 + $0x1e0] sm:$0xff]
    %v712 = vld [vmem:[#allocation2 + $0x1e8] sm:$0xff]
    %v713 = vld [vmem:[#allocation2 + $0x1f0] sm:$0xff]
    %v714 = vld [vmem:[#allocation2 + $0x1f8] sm:$0xff]
    %715 = vmatprep.subr.bf16.mxu0 %v652
    %716 = vmatpush1.bf16.msra.mxu0 %v651
    %717 = vmatprep.subr.bf16.mxu0 %v656
    %718 = vmatpush1.bf16.msra.mxu0 %v655
    %719 = vmatprep.subr.bf16.mxu0 %v660
    %720 = vmatpush1.bf16.msra.mxu0 %v659
    %721 = vmatprep.subr.bf16.mxu0 %v664
    %722 = vmatpush1.bf16.msra.mxu0 %v663
    %723 = vmatprep.subr.bf16.mxu0 %v668
    %724 = vmatpush1.bf16.msra.mxu0 %v667
    %725 = vmatprep.subr.bf16.mxu0 %v672
    %726 = vmatpush1.bf16.msra.mxu0 %v671
    %727 = vmatprep.subr.bf16.mxu0 %v676
    %728 = vmatpush1.bf16.msra.mxu0 %v675
    %729 = vmatprep.subr.bf16.mxu0 %v680
    %730 = vmatpush1.bf16.msra.mxu0 %v679
    %731 = vmatprep.subr.bf16.mxu0 %v684
    %732 = vmatpush1.bf16.msra.mxu0 %v683
    %733 = vmatprep.subr.bf16.mxu0 %v688
    %734 = vmatpush1.bf16.msra.mxu0 %v687
    %735 = vmatprep.subr.bf16.mxu0 %v692
    %736 = vmatpush1.bf16.msra.mxu0 %v691
    %737 = vmatprep.subr.bf16.mxu0 %v696
    %738 = vmatpush1.bf16.msra.mxu0 %v695
    %739 = vmatprep.subr.bf16.mxu0 %v700
    %740 = vmatpush1.bf16.msra.mxu0 %v699
    %741 = vmatprep.subr.bf16.mxu0 %v704
    %742 = vmatpush1.bf16.msra.mxu0 %v703
    %743 = vmatprep.subr.bf16.mxu0 %v708
    %744 = vmatpush1.bf16.msra.mxu0 %v707
    %745 = vmatprep.subr.bf16.mxu0 %v712
    %746 = vmatpush1.bf16.msra.mxu0 %v711
    %747 = vmatprep.mubr.bf16.mxu0 %v644
    %748 = vmatmul.mubr.bf16.gmra.mrb[0].mxu0 %v643
    %v749 = vpop.f32.mrb[0].mxu0
    %v750 = vadd.f32 0.0, %v749
    %v751 = vpop.f32.mrb[0].mxu0
    %v752 = vadd.f32 0.0, %v751
    %v753 = vpop.f32.mrb[0].mxu0
    %v754 = vadd.f32 0.0, %v753
    %v755 = vpop.f32.mrb[0].mxu0
    %v756 = vadd.f32 0.0, %v755
    %757 = vmatprep.mubr.bf16.mxu0 %v646
    %758 = vmatmul.mubr.bf16.gmra.mrb[0].mxu0 %v645
    %v759 = vpop.f32.mrb[0].mxu0
    %v760 = vadd.f32 0.0, %v759
    %v761 = vpop.f32.mrb[0].mxu0
    %v762 = vadd.f32 0.0, %v761
    %v763 = vpop.f32.mrb[0].mxu0
    %v764 = vadd.f32 0.0, %v763
    %v765 = vpop.f32.mrb[0].mxu0
    %v766 = vadd.f32 0.0, %v765
    %767 = vmatprep.mubr.bf16.mxu0 %v648
    %768 = vmatmul.mubr.bf16.gmra.mrb[0].mxu0 %v647
    %v769 = vpop.f32.mrb[0].mxu0
    %v770 = vadd.f32 0.0, %v769
    %v771 = vpop.f32.mrb[0].mxu0
    %v772 = vadd.f32 0.0, %v771
    %v773 = vpop.f32.mrb[0].mxu0
    %v774 = vadd.f32 0.0, %v773
    %v775 = vpop.f32.mrb[0].mxu0
    %v776 = vadd.f32 0.0, %v775
    %777 = vmatprep.mubr.bf16.mxu0 %v650
    %778 = vmatmul.mubr.bf16.gmra.mrb[0].mxu0 %v649
    %v779 = vpop.f32.mrb[0].mxu0
    %v780 = vadd.f32 0.0, %v779
    %v781 = vpop.f32.mrb[0].mxu0
    %v782 = vadd.f32 0.0, %v781
    %v783 = vpop.f32.mrb[0].mxu0
    %v784 = vadd.f32 0.0, %v783
    %v785 = vpop.f32.mrb[0].mxu0
    %v786 = vadd.f32 0.0, %v785
    %787 = vdwg.mxu0
    %788 = vmatprep.subr.bf16.mxu0 %v654
    %789 = vmatpush1.bf16.msra.mxu0 %v653
    %790 = vmatprep.subr.bf16.mxu0 %v658
    %791 = vmatpush1.bf16.msra.mxu0 %v657
    %792 = vmatprep.subr.bf16.mxu0 %v662
    %793 = vmatpush1.bf16.msra.mxu0 %v661
    %794 = vmatprep.subr.bf16.mxu0 %v666
    %795 = vmatpush1.bf16.msra.mxu0 %v665
    %796 = vmatprep.subr.bf16.mxu0 %v670
    %797 = vmatpush1.bf16.msra.mxu0 %v669
    %798 = vmatprep.subr.bf16.mxu0 %v674
    %799 = vmatpush1.bf16.msra.mxu0 %v673
    %800 = vmatprep.subr.bf16.mxu0 %v678
    %801 = vmatpush1.bf16.msra.mxu0 %v677
    %802 = vmatprep.subr.bf16.mxu0 %v682
    %803 = vmatpush1.bf16.msra.mxu0 %v681
    %804 = vmatprep.subr.bf16.mxu0 %v686
    %805 = vmatpush1.bf16.msra.mxu0 %v685
    %806 = vmatprep.subr.bf16.mxu0 %v690
    %807 = vmatpush1.bf16.msra.mxu0 %v689
    %808 = vmatprep.subr.bf16.mxu0 %v694
    %809 = vmatpush1.bf16.msra.mxu0 %v693
    %810 = vmatprep.subr.bf16.mxu0 %v698
    %811 = vmatpush1.bf16.msra.mxu0 %v697
    %812 = vmatprep.subr.bf16.mxu0 %v702
    %813 = vmatpush1.bf16.msra.mxu0 %v701
    %814 = vmatprep.subr.bf16.mxu0 %v706
    %815 = vmatpush1.bf16.msra.mxu0 %v705
    %816 = vmatprep.subr.bf16.mxu0 %v710
    %817 = vmatpush1.bf16.msra.mxu0 %v709
    %818 = vmatprep.subr.bf16.mxu0 %v714
    %819 = vmatpush1.bf16.msra.mxu0 %v713
    %820 = vmatprep.mubr.bf16.mxu0 %v644
    %821 = vmatmul.mubr.bf16.gmra.mrb[0].mxu0 %v643
    %v822 = vpop.f32.mrb[0].mxu0
    %v823 = vadd.f32 0.0, %v822
    %v824 = vpop.f32.mrb[0].mxu0
    %v825 = vadd.f32 0.0, %v824
    %v826 = vpop.f32.mrb[0].mxu0
    %v827 = vadd.f32 0.0, %v826
    %v828 = vpop.f32.mrb[0].mxu0
    %v829 = vadd.f32 0.0, %v828
    %830 = vmatprep.mubr.bf16.mxu0 %v646
    %831 = vmatmul.mubr.bf16.gmra.mrb[0].mxu0 %v645
    %v832 = vpop.f32.mrb[0].mxu0
    %v833 = vadd.f32 0.0, %v832
    %v834 = vpop.f32.mrb[0].mxu0
    %v835 = vadd.f32 0.0, %v834
    %v836 = vpop.f32.mrb[0].mxu0
    %v837 = vadd.f32 0.0, %v836
    %v838 = vpop.f32.mrb[0].mxu0
    %v839 = vadd.f32 0.0, %v838
    %840 = vmatprep.mubr.bf16.mxu0 %v648
    %841 = vmatmul.mubr.bf16.gmra.mrb[0].mxu0 %v647
    %v842 = vpop.f32.mrb[0].mxu0
    %v843 = vadd.f32 0.0, %v842
    %v844 = vpop.f32.mrb[0].mxu0
    %v845 = vadd.f32 0.0, %v844
    %v846 = vpop.f32.mrb[0].mxu0
    %v847 = vadd.f32 0.0, %v846
    %v848 = vpop.f32.mrb[0].mxu0
    %v849 = vadd.f32 0.0, %v848
    %850 = vmatprep.mubr.bf16.mxu0 %v650
    %851 = vmatmul.mubr.bf16.gmra.mrb[0].mxu0 %v649
    %v852 = vpop.f32.mrb[0].mxu0
    %v853 = vadd.f32 0.0, %v852
    %v854 = vpop.f32.mrb[0].mxu0
    %v855 = vadd.f32 0.0, %v854
    %v856 = vpop.f32.mrb[0].mxu0
    %v857 = vadd.f32 0.0, %v856
    %v858 = vpop.f32.mrb[0].mxu0
    %v859 = vadd.f32 0.0, %v858
    %860 = vdwg.mxu0
    %v861 = vadd.f32 %v750, %v754
    %v862 = vadd.f32 %v861, %v760
    %v863 = vadd.f32 %v862, %v764
    %v864 = vadd.f32 %v863, %v770
    %v865 = vadd.f32 %v864, %v774
    %v866 = vadd.f32 %v865, %v780
    %v867 = vadd.f32 %v866, %v784
    %v868 = vrot.slane %v867, 4
    %v869 = vadd.f32 %v867, %v868
    %v870 = vrot.slane %v869, 2
    %v871 = vadd.f32 %v869, %v870
    %v872 = vrot.slane %v871, 1
    %v873 = vadd.f32 %v871, %v872
    %v874 = vadd.f32 %v752, %v756
    %v875 = vadd.f32 %v874, %v762
    %v876 = vadd.f32 %v875, %v766
    %v877 = vadd.f32 %v876, %v772
    %v878 = vadd.f32 %v877, %v776
    %v879 = vadd.f32 %v878, %v782
    %v880 = vadd.f32 %v879, %v786
    %v881 = vrot.slane %v880, 4
    %v882 = vadd.f32 %v880, %v881
    %v883 = vrot.slane %v882, 2
    %v884 = vadd.f32 %v882, %v883
    %v885 = vrot.slane %v884, 1
    %v886 = vadd.f32 %v884, %v885
    %v887 = vadd.f32 %v823, %v827
    %v888 = vadd.f32 %v887, %v833
    %v889 = vadd.f32 %v888, %v837
    %v890 = vadd.f32 %v889, %v843
    %v891 = vadd.f32 %v890, %v847
    %v892 = vadd.f32 %v891, %v853
    %v893 = vadd.f32 %v892, %v857
    %v894 = vrot.slane %v893, 4
    %v895 = vadd.f32 %v893, %v894
    %v896 = vrot.slane %v895, 2
    %v897 = vadd.f32 %v895, %v896
    %v898 = vrot.slane %v897, 1
    %v899 = vadd.f32 %v897, %v898
    %v900 = vadd.f32 %v825, %v829
    %v901 = vadd.f32 %v900, %v835
    %v902 = vadd.f32 %v901, %v839
    %v903 = vadd.f32 %v902, %v845
    %v904 = vadd.f32 %v903, %v849
    %v905 = vadd.f32 %v904, %v855
    %v906 = vadd.f32 %v905, %v859
    %v907 = vrot.slane %v906, 4
    %v908 = vadd.f32 %v906, %v907
    %v909 = vrot.slane %v908, 2
    %v910 = vadd.f32 %v908, %v909
    %v911 = vrot.slane %v910, 1
    %v912 = vadd.f32 %v910, %v911
    %v913 = vmul.f32 %v873, %v476
    %v914 = vmul.f32 %v886, %v476
    %v915 = vmul.f32 %v899, %v476
    %v916 = vmul.f32 %v912, %v476
    %v917 = vsub.f32 %v750, %v913
    %v918 = vsub.f32 %v752, %v914
    %v919 = vsub.f32 %v823, %v915
    %v920 = vsub.f32 %v825, %v916
    %v921 = vsub.f32 %v754, %v913
    %v922 = vsub.f32 %v756, %v914
    %v923 = vsub.f32 %v827, %v915
    %v924 = vsub.f32 %v829, %v916
    %v925 = vsub.f32 %v760, %v913
    %v926 = vsub.f32 %v762, %v914
    %v927 = vsub.f32 %v833, %v915
    %v928 = vsub.f32 %v835, %v916
    %v929 = vsub.f32 %v764, %v913
    %v930 = vsub.f32 %v766, %v914
    %v931 = vsub.f32 %v837, %v915
    %v932 = vsub.f32 %v839, %v916
    %v933 = vsub.f32 %v770, %v913
    %v934 = vsub.f32 %v772, %v914
    %v935 = vsub.f32 %v843, %v915
    %v936 = vsub.f32 %v845, %v916
    %v937 = vsub.f32 %v774, %v913
    %v938 = vsub.f32 %v776, %v914
    %v939 = vsub.f32 %v847, %v915
    %v940 = vsub.f32 %v849, %v916
    %v941 = vsub.f32 %v780, %v913
    %v942 = vsub.f32 %v782, %v914
    %v943 = vsub.f32 %v853, %v915
    %v944 = vsub.f32 %v855, %v916
    %v945 = vsub.f32 %v784, %v913
    %v946 = vsub.f32 %v786, %v914
    %v947 = vsub.f32 %v857, %v915
    %v948 = vsub.f32 %v859, %v916
    %v949 = vmul.f32 %v917, %v917
    %v950 = vmul.f32 %v918, %v918
    %v951 = vmul.f32 %v919, %v919
    %v952 = vmul.f32 %v920, %v920
    %v953 = vmul.f32 %v921, %v921
    %v954 = vmul.f32 %v922, %v922
    %v955 = vmul.f32 %v923, %v923
    %v956 = vmul.f32 %v924, %v924
    %v957 = vmul.f32 %v925, %v925
    %v958 = vmul.f32 %v926, %v926
    %v959 = vmul.f32 %v927, %v927
    %v960 = vmul.f32 %v928, %v928
    %v961 = vmul.f32 %v929, %v929
    %v962 = vmul.f32 %v930, %v930
    %v963 = vmul.f32 %v931, %v931
    %v964 = vmul.f32 %v932, %v932
    %v965 = vmul.f32 %v933, %v933
    %v966 = vmul.f32 %v934, %v934
    %v967 = vmul.f32 %v935, %v935
    %v968 = vmul.f32 %v936, %v936
    %v969 = vmul.f32 %v937, %v937
    %v970 = vmul.f32 %v938, %v938
    %v971 = vmul.f32 %v939, %v939
    %v972 = vmul.f32 %v940, %v940
    %v973 = vmul.f32 %v941, %v941
    %v974 = vmul.f32 %v942, %v942
    %v975 = vmul.f32 %v943, %v943
    %v976 = vmul.f32 %v944, %v944
    %v977 = vmul.f32 %v945, %v945
    %v978 = vmul.f32 %v946, %v946
    %v979 = vmul.f32 %v947, %v947
    %v980 = vmul.f32 %v948, %v948
    %v981 = vadd.f32 %v949, %v953
    %v982 = vadd.f32 %v981, %v957
    %v983 = vadd.f32 %v982, %v961
    %v984 = vadd.f32 %v983, %v965
    %v985 = vadd.f32 %v984, %v969
    %v986 = vadd.f32 %v985, %v973
    %v987 = vadd.f32 %v986, %v977
    %v988 = vrot.slane %v987, 4
    %v989 = vadd.f32 %v987, %v988
    %v990 = vrot.slane %v989, 2
    %v991 = vadd.f32 %v989, %v990
    %v992 = vrot.slane %v991, 1
    %v993 = vadd.f32 %v991, %v992
    %v994 = vadd.f32 %v950, %v954
    %v995 = vadd.f32 %v994, %v958
    %v996 = vadd.f32 %v995, %v962
    %v997 = vadd.f32 %v996, %v966
    %v998 = vadd.f32 %v997, %v970
    %v999 = vadd.f32 %v998, %v974
    %v1000 = vadd.f32 %v999, %v978
    %v1001 = vrot.slane %v1000, 4
    %v1002 = vadd.f32 %v1000, %v1001
    %v1003 = vrot.slane %v1002, 2
    %v1004 = vadd.f32 %v1002, %v1003
    %v1005 = vrot.slane %v1004, 1
    %v1006 = vadd.f32 %v1004, %v1005
    %v1007 = vadd.f32 %v951, %v955
    %v1008 = vadd.f32 %v1007, %v959
    %v1009 = vadd.f32 %v1008, %v963
    %v1010 = vadd.f32 %v1009, %v967
    %v1011 = vadd.f32 %v1010, %v971
    %v1012 = vadd.f32 %v1011, %v975
    %v1013 = vadd.f32 %v1012, %v979
    %v1014 = vrot.slane %v1013, 4
    %v1015 = vadd.f32 %v1013, %v1014
    %v1016 = vrot.slane %v1015, 2
    %v1017 = vadd.f32 %v1015, %v1016
    %v1018 = vrot.slane %v1017, 1
    %v1019 = vadd.f32 %v1017, %v1018
    %v1020 = vadd.f32 %v952, %v956
    %v1021 = vadd.f32 %v1020, %v960
    %v1022 = vadd.f32 %v1021, %v964
    %v1023 = vadd.f32 %v1022, %v968
    %v1024 = vadd.f32 %v1023, %v972
    %v1025 = vadd.f32 %v1024, %v976
    %v1026 = vadd.f32 %v1025, %v980
    %v1027 = vrot.slane %v1026, 4
    %v1028 = vadd.f32 %v1026, %v1027
    %v1029 = vrot.slane %v1028, 2
    %v1030 = vadd.f32 %v1028, %v1029
    %v1031 = vrot.slane %v1030, 1
    %v1032 = vadd.f32 %v1030, %v1031
    %v1033 = vmul.f32 %v993, %v476
    %v1034 = vmul.f32 %v1006, %v476
    %v1035 = vmul.f32 %v1019, %v476
    %v1036 = vmul.f32 %v1032, %v476
    %v1037 = vadd.f32 %v1033, 0.8
    %v1038 = vadd.f32 %v1034, 0.8
    %v1039 = vadd.f32 %v1035, 0.8
    %v1040 = vadd.f32 %v1036, 0.8
    %v1041 = vrsqrt.pop %v1037
    %v1042 = vrsqrt.pop %v1038
    %v1043 = vrsqrt.pop %v1039
    %v1044 = vrsqrt.pop %v1040
    %v1046 = vlaneseq
    %v1047 = vshrl.u32 %v1046, 7
    %v1048 = vsub.s32 0, %v1047
    %v1049 = vrot.slane %v144, %v1048
    %v1050 = vlaneseq
    %v1051 = vshrl.u32 %v1050, 7
    %v1052 = vsub.s32 1, %v1051
    %v1053 = vrot.slane %v144, %v1052
    %v1054 = vlaneseq
    %v1055 = vshrl.u32 %v1054, 7
    %v1056 = vsub.s32 2, %v1055
    %v1057 = vrot.slane %v144, %v1056
    %v1058 = vlaneseq
    %v1059 = vshrl.u32 %v1058, 7
    %v1060 = vsub.s32 3, %v1059
    %v1061 = vrot.slane %v144, %v1060
    %v1066 = vmul.f32 %v1041, %v1049
    %v1067 = vmul.f32 %v1042, %v1053
    %v1068 = vmul.f32 %v1043, %v1057
    %v1069 = vmul.f32 %v1044, %v1061
    %v1070 = vlaneseq
    %v1071 = vshrl.u32 %v1070, 7
    %v1072 = vsub.s32 0, %v1071
    %v1073 = vrot.slane %v1066, %v1072
    %v1074 = vlaneseq
    %v1075 = vshrl.u32 %v1074, 7
    %v1076 = vsub.s32 0, %v1075
    %v1077 = vrot.slane %v1067, %v1076
    %v1078 = vlaneseq
    %v1079 = vshrl.u32 %v1078, 7
    %v1080 = vsub.s32 0, %v1079
    %v1081 = vrot.slane %v1068, %v1080
    %v1082 = vlaneseq
    %v1083 = vshrl.u32 %v1082, 7
    %v1084 = vsub.s32 0, %v1083
    %v1085 = vrot.slane %v1069, %v1084
    %v1086 = vmul.f32 %v917, %v1073
    %v1087 = vmul.f32 %v918, %v1077
    %v1088 = vmul.f32 %v919, %v1081
    %v1089 = vmul.f32 %v920, %v1085
    %v1090 = vmul.f32 %v921, %v1073
    %v1091 = vmul.f32 %v922, %v1077
    %v1092 = vmul.f32 %v923, %v1081
    %v1093 = vmul.f32 %v924, %v1085
    %v1094 = vmul.f32 %v925, %v1073
    %v1095 = vmul.f32 %v926, %v1077
    %v1096 = vmul.f32 %v927, %v1081
    %v1097 = vmul.f32 %v928, %v1085
    %v1098 = vmul.f32 %v929, %v1073
    %v1099 = vmul.f32 %v930, %v1077
    %v1100 = vmul.f32 %v931, %v1081
    %v1101 = vmul.f32 %v932, %v1085
    %v1102 = vmul.f32 %v933, %v1073
    %v1103 = vmul.f32 %v934, %v1077
    %v1104 = vmul.f32 %v935, %v1081
    %v1105 = vmul.f32 %v936, %v1085
    %v1106 = vmul.f32 %v937, %v1073
    %v1107 = vmul.f32 %v938, %v1077
    %v1108 = vmul.f32 %v939, %v1081
    %v1109 = vmul.f32 %v940, %v1085
    %v1110 = vmul.f32 %v941, %v1073
    %v1111 = vmul.f32 %v942, %v1077
    %v1112 = vmul.f32 %v943, %v1081
    %v1113 = vmul.f32 %v944, %v1085
    %v1114 = vmul.f32 %v945, %v1073
    %v1115 = vmul.f32 %v946, %v1077
    %v1116 = vmul.f32 %v947, %v1081
    %v1117 = vmul.f32 %v948, %v1085
    %v1119 = vlaneseq
    %v1120 = vshrl.u32 %v1119, 7
    %v1121 = vsub.s32 0, %v1120
    %v1122 = vrot.slane %v145, %v1121
    %v1123 = vlaneseq
    %v1124 = vshrl.u32 %v1123, 7
    %v1125 = vsub.s32 1, %v1124
    %v1126 = vrot.slane %v145, %v1125
    %v1127 = vlaneseq
    %v1128 = vshrl.u32 %v1127, 7
    %v1129 = vsub.s32 2, %v1128
    %v1130 = vrot.slane %v145, %v1129
    %v1131 = vlaneseq
    %v1132 = vshrl.u32 %v1131, 7
    %v1133 = vsub.s32 3, %v1132
    %v1134 = vrot.slane %v145, %v1133
    %v1139 = vadd.f32 %v1086, %v1122
    %v1140 = vadd.f32 %v1087, %v1126
    %v1141 = vadd.f32 %v1088, %v1130
    %v1142 = vadd.f32 %v1089, %v1134
    %v1143 = vadd.f32 %v1090, %v1122
    %v1144 = vadd.f32 %v1091, %v1126
    %v1145 = vadd.f32 %v1092, %v1130
    %v1146 = vadd.f32 %v1093, %v1134
    %v1147 = vadd.f32 %v1094, %v1122
    %v1148 = vadd.f32 %v1095, %v1126
    %v1149 = vadd.f32 %v1096, %v1130
    %v1150 = vadd.f32 %v1097, %v1134
    %v1151 = vadd.f32 %v1098, %v1122
    %v1152 = vadd.f32 %v1099, %v1126
    %v1153 = vadd.f32 %v1100, %v1130
    %v1154 = vadd.f32 %v1101, %v1134
    %v1155 = vadd.f32 %v1102, %v1122
    %v1156 = vadd.f32 %v1103, %v1126
    %v1157 = vadd.f32 %v1104, %v1130
    %v1158 = vadd.f32 %v1105, %v1134
    %v1159 = vadd.f32 %v1106, %v1122
    %v1160 = vadd.f32 %v1107, %v1126
    %v1161 = vadd.f32 %v1108, %v1130
    %v1162 = vadd.f32 %v1109, %v1134
    %v1163 = vadd.f32 %v1110, %v1122
    %v1164 = vadd.f32 %v1111, %v1126
    %v1165 = vadd.f32 %v1112, %v1130
    %v1166 = vadd.f32 %v1113, %v1134
    %v1167 = vadd.f32 %v1114, %v1122
    %v1168 = vadd.f32 %v1115, %v1126
    %v1169 = vadd.f32 %v1116, %v1130
    %v1170 = vadd.f32 %v1117, %v1134
    %v1171 = vmul.f32 %v1139, 0.2
    %v1172 = vmul.f32 %v1140, 0.2
    %v1173 = vmul.f32 %v1141, 0.2
    %v1174 = vmul.f32 %v1142, 0.2
    %v1175 = vmul.f32 %v1143, 0.2
    %v1176 = vmul.f32 %v1144, 0.2
    %v1177 = vmul.f32 %v1145, 0.2
    %v1178 = vmul.f32 %v1146, 0.2
    %v1179 = vmul.f32 %v1147, 0.2
    %v1180 = vmul.f32 %v1148, 0.2
    %v1181 = vmul.f32 %v1149, 0.2
    %v1182 = vmul.f32 %v1150, 0.2
    %v1183 = vmul.f32 %v1151, 0.2
    %v1184 = vmul.f32 %v1152, 0.2
    %v1185 = vmul.f32 %v1153, 0.2
    %v1186 = vmul.f32 %v1154, 0.2
    %v1187 = vmul.f32 %v1155, 0.2
    %v1188 = vmul.f32 %v1156, 0.2
    %v1189 = vmul.f32 %v1157, 0.2
    %v1190 = vmul.f32 %v1158, 0.2
    %v1191 = vmul.f32 %v1159, 0.2
    %v1192 = vmul.f32 %v1160, 0.2
    %v1193 = vmul.f32 %v1161, 0.2
    %v1194 = vmul.f32 %v1162, 0.2
    %v1195 = vmul.f32 %v1163, 0.2
    %v1196 = vmul.f32 %v1164, 0.2
    %v1197 = vmul.f32 %v1165, 0.2
    %v1198 = vmul.f32 %v1166, 0.2
    %v1199 = vmul.f32 %v1167, 0.2
    %v1200 = vmul.f32 %v1168, 0.2
    %v1201 = vmul.f32 %v1169, 0.2
    %v1202 = vmul.f32 %v1170, 0.2
    %v1203 = vmax.f32 %v1139, %v1171
    %v1204 = vmax.f32 %v1140, %v1172
    %v1205 = vmax.f32 %v1141, %v1173
    %v1206 = vmax.f32 %v1142, %v1174
    %v1207 = vmax.f32 %v1143, %v1175
    %v1208 = vmax.f32 %v1144, %v1176
    %v1209 = vmax.f32 %v1145, %v1177
    %v1210 = vmax.f32 %v1146, %v1178
    %v1211 = vmax.f32 %v1147, %v1179
    %v1212 = vmax.f32 %v1148, %v1180
    %v1213 = vmax.f32 %v1149, %v1181
    %v1214 = vmax.f32 %v1150, %v1182
    %v1215 = vmax.f32 %v1151, %v1183
    %v1216 = vmax.f32 %v1152, %v1184
    %v1217 = vmax.f32 %v1153, %v1185
    %v1218 = vmax.f32 %v1154, %v1186
    %v1219 = vmax.f32 %v1155, %v1187
    %v1220 = vmax.f32 %v1156, %v1188
    %v1221 = vmax.f32 %v1157, %v1189
    %v1222 = vmax.f32 %v1158, %v1190
    %v1223 = vmax.f32 %v1159, %v1191
    %v1224 = vmax.f32 %v1160, %v1192
    %v1225 = vmax.f32 %v1161, %v1193
    %v1226 = vmax.f32 %v1162, %v1194
    %v1227 = vmax.f32 %v1163, %v1195
    %v1228 = vmax.f32 %v1164, %v1196
    %v1229 = vmax.f32 %v1165, %v1197
    %v1230 = vmax.f32 %v1166, %v1198
    %v1231 = vmax.f32 %v1167, %v1199
    %v1232 = vmax.f32 %v1168, %v1200
    %v1233 = vmax.f32 %v1169, %v1201
    %v1234 = vmax.f32 %v1170, %v1202
    %s1235 = smul.u32 4, 64
    %s1236 = smul.u32 %s1235, 8
    %s1237 = sshll.u32 %s1236, 4
    %1238 = dma.done %s71, %s1237
    %v1239 = vpack.c.bf16 %v1207, %v1203
    %v1240 = vpack.c.bf16 %v1208, %v1204
    %v1241 = vpack.c.bf16 %v1209, %v1205
    %v1242 = vpack.c.bf16 %v1210, %v1206
    %v1243 = vpack.c.bf16 %v1215, %v1211
    %v1244 = vpack.c.bf16 %v1216, %v1212
    %v1245 = vpack.c.bf16 %v1217, %v1213
    %v1246 = vpack.c.bf16 %v1218, %v1214
    %v1247 = vpack.c.bf16 %v1223, %v1219
    %v1248 = vpack.c.bf16 %v1224, %v1220
    %v1249 = vpack.c.bf16 %v1225, %v1221
    %v1250 = vpack.c.bf16 %v1226, %v1222
    %v1251 = vpack.c.bf16 %v1231, %v1227
    %v1252 = vpack.c.bf16 %v1232, %v1228
    %v1253 = vpack.c.bf16 %v1233, %v1229
    %v1254 = vpack.c.bf16 %v1234, %v1230
    %v1255 = vld [vmem:[#allocation3] sm:$0xff]
    %v1256 = vld [vmem:[#allocation3 + $0x8] sm:$0xff]
    %v1257 = vld [vmem:[#allocation3 + $0x10] sm:$0xff]
    %v1258 = vld [vmem:[#allocation3 + $0x18] sm:$0xff]
    %v1259 = vld [vmem:[#allocation3 + $0x20] sm:$0xff]
    %v1260 = vld [vmem:[#allocation3 + $0x28] sm:$0xff]
    %v1261 = vld [vmem:[#allocation3 + $0x30] sm:$0xff]
    %v1262 = vld [vmem:[#allocation3 + $0x38] sm:$0xff]
    %v1263 = vld [vmem:[#allocation3 + $0x40] sm:$0xff]
    %v1264 = vld [vmem:[#allocation3 + $0x48] sm:$0xff]
    %v1265 = vld [vmem:[#allocation3 + $0x50] sm:$0xff]
    %v1266 = vld [vmem:[#allocation3 + $0x58] sm:$0xff]
    %v1267 = vld [vmem:[#allocation3 + $0x60] sm:$0xff]
    %v1268 = vld [vmem:[#allocation3 + $0x68] sm:$0xff]
    %v1269 = vld [vmem:[#allocation3 + $0x70] sm:$0xff]
    %v1270 = vld [vmem:[#allocation3 + $0x78] sm:$0xff]
    %v1271 = vld [vmem:[#allocation3 + $0x80] sm:$0xff]
    %v1272 = vld [vmem:[#allocation3 + $0x88] sm:$0xff]
    %v1273 = vld [vmem:[#allocation3 + $0x90] sm:$0xff]
    %v1274 = vld [vmem:[#allocation3 + $0x98] sm:$0xff]
    %v1275 = vld [vmem:[#allocation3 + $0xa0] sm:$0xff]
    %v1276 = vld [vmem:[#allocation3 + $0xa8] sm:$0xff]
    %v1277 = vld [vmem:[#allocation3 + $0xb0] sm:$0xff]
    %v1278 = vld [vmem:[#allocation3 + $0xb8] sm:$0xff]
    %v1279 = vld [vmem:[#allocation3 + $0xc0] sm:$0xff]
    %v1280 = vld [vmem:[#allocation3 + $0xc8] sm:$0xff]
    %v1281 = vld [vmem:[#allocation3 + $0xd0] sm:$0xff]
    %v1282 = vld [vmem:[#allocation3 + $0xd8] sm:$0xff]
    %v1283 = vld [vmem:[#allocation3 + $0xe0] sm:$0xff]
    %v1284 = vld [vmem:[#allocation3 + $0xe8] sm:$0xff]
    %v1285 = vld [vmem:[#allocation3 + $0xf0] sm:$0xff]
    %v1286 = vld [vmem:[#allocation3 + $0xf8] sm:$0xff]
    %v1287 = vld [vmem:[#allocation3 + $0x100] sm:$0xff]
    %v1288 = vld [vmem:[#allocation3 + $0x108] sm:$0xff]
    %v1289 = vld [vmem:[#allocation3 + $0x110] sm:$0xff]
    %v1290 = vld [vmem:[#allocation3 + $0x118] sm:$0xff]
    %v1291 = vld [vmem:[#allocation3 + $0x120] sm:$0xff]
    %v1292 = vld [vmem:[#allocation3 + $0x128] sm:$0xff]
    %v1293 = vld [vmem:[#allocation3 + $0x130] sm:$0xff]
    %v1294 = vld [vmem:[#allocation3 + $0x138] sm:$0xff]
    %v1295 = vld [vmem:[#allocation3 + $0x140] sm:$0xff]
    %v1296 = vld [vmem:[#allocation3 + $0x148] sm:$0xff]
    %v1297 = vld [vmem:[#allocation3 + $0x150] sm:$0xff]
    %v1298 = vld [vmem:[#allocation3 + $0x158] sm:$0xff]
    %v1299 = vld [vmem:[#allocation3 + $0x160] sm:$0xff]
    %v1300 = vld [vmem:[#allocation3 + $0x168] sm:$0xff]
    %v1301 = vld [vmem:[#allocation3 + $0x170] sm:$0xff]
    %v1302 = vld [vmem:[#allocation3 + $0x178] sm:$0xff]
    %v1303 = vld [vmem:[#allocation3 + $0x180] sm:$0xff]
    %v1304 = vld [vmem:[#allocation3 + $0x188] sm:$0xff]
    %v1305 = vld [vmem:[#allocation3 + $0x190] sm:$0xff]
    %v1306 = vld [vmem:[#allocation3 + $0x198] sm:$0xff]
    %v1307 = vld [vmem:[#allocation3 + $0x1a0] sm:$0xff]
    %v1308 = vld [vmem:[#allocation3 + $0x1a8] sm:$0xff]
    %v1309 = vld [vmem:[#allocation3 + $0x1b0] sm:$0xff]
    %v1310 = vld [vmem:[#allocation3 + $0x1b8] sm:$0xff]
    %v1311 = vld [vmem:[#allocation3 + $0x1c0] sm:$0xff]
    %v1312 = vld [vmem:[#allocation3 + $0x1c8] sm:$0xff]
    %v1313 = vld [vmem:[#allocation3 + $0x1d0] sm:$0xff]
    %v1314 = vld [vmem:[#allocation3 + $0x1d8] sm:$0xff]
    %v1315 = vld [vmem:[#allocation3 + $0x1e0] sm:$0xff]
    %v1316 = vld [vmem:[#allocation3 + $0x1e8] sm:$0xff]
    %v1317 = vld [vmem:[#allocation3 + $0x1f0] sm:$0xff]
    %v1318 = vld [vmem:[#allocation3 + $0x1f8] sm:$0xff]
    %v1319 = vld [vmem:[#allocation3 + $0x200] sm:$0xff]
    %v1320 = vld [vmem:[#allocation3 + $0x208] sm:$0xff]
    %v1321 = vld [vmem:[#allocation3 + $0x210] sm:$0xff]
    %v1322 = vld [vmem:[#allocation3 + $0x218] sm:$0xff]
    %v1323 = vld [vmem:[#allocation3 + $0x220] sm:$0xff]
    %v1324 = vld [vmem:[#allocation3 + $0x228] sm:$0xff]
    %v1325 = vld [vmem:[#allocation3 + $0x230] sm:$0xff]
    %v1326 = vld [vmem:[#allocation3 + $0x238] sm:$0xff]
    %v1327 = vld [vmem:[#allocation3 + $0x240] sm:$0xff]
    %v1328 = vld [vmem:[#allocation3 + $0x248] sm:$0xff]
    %v1329 = vld [vmem:[#allocation3 + $0x250] sm:$0xff]
    %v1330 = vld [vmem:[#allocation3 + $0x258] sm:$0xff]
    %v1331 = vld [vmem:[#allocation3 + $0x260] sm:$0xff]
    %v1332 = vld [vmem:[#allocation3 + $0x268] sm:$0xff]
    %v1333 = vld [vmem:[#allocation3 + $0x270] sm:$0xff]
    %v1334 = vld [vmem:[#allocation3 + $0x278] sm:$0xff]
    %v1335 = vld [vmem:[#allocation3 + $0x280] sm:$0xff]
    %v1336 = vld [vmem:[#allocation3 + $0x288] sm:$0xff]
    %v1337 = vld [vmem:[#allocation3 + $0x290] sm:$0xff]
    %v1338 = vld [vmem:[#allocation3 + $0x298] sm:$0xff]
    %v1339 = vld [vmem:[#allocation3 + $0x2a0] sm:$0xff]
    %v1340 = vld [vmem:[#allocation3 + $0x2a8] sm:$0xff]
    %v1341 = vld [vmem:[#allocation3 + $0x2b0] sm:$0xff]
    %v1342 = vld [vmem:[#allocation3 + $0x2b8] sm:$0xff]
    %v1343 = vld [vmem:[#allocation3 + $0x2c0] sm:$0xff]
    %v1344 = vld [vmem:[#allocation3 + $0x2c8] sm:$0xff]
    %v1345 = vld [vmem:[#allocation3 + $0x2d0] sm:$0xff]
    %v1346 = vld [vmem:[#allocation3 + $0x2d8] sm:$0xff]
    %v1347 = vld [vmem:[#allocation3 + $0x2e0] sm:$0xff]
    %v1348 = vld [vmem:[#allocation3 + $0x2e8] sm:$0xff]
    %v1349 = vld [vmem:[#allocation3 + $0x2f0] sm:$0xff]
    %v1350 = vld [vmem:[#allocation3 + $0x2f8] sm:$0xff]
    %v1351 = vld [vmem:[#allocation3 + $0x300] sm:$0xff]
    %v1352 = vld [vmem:[#allocation3 + $0x308] sm:$0xff]
    %v1353 = vld [vmem:[#allocation3 + $0x310] sm:$0xff]
    %v1354 = vld [vmem:[#allocation3 + $0x318] sm:$0xff]
    %v1355 = vld [vmem:[#allocation3 + $0x320] sm:$0xff]
    %v1356 = vld [vmem:[#allocation3 + $0x328] sm:$0xff]
    %v1357 = vld [vmem:[#allocation3 + $0x330] sm:$0xff]
    %v1358 = vld [vmem:[#allocation3 + $0x338] sm:$0xff]
    %v1359 = vld [vmem:[#allocation3 + $0x340] sm:$0xff]
    %v1360 = vld [vmem:[#allocation3 + $0x348] sm:$0xff]
    %v1361 = vld [vmem:[#allocation3 + $0x350] sm:$0xff]
    %v1362 = vld [vmem:[#allocation3 + $0x358] sm:$0xff]
    %v1363 = vld [vmem:[#allocation3 + $0x360] sm:$0xff]
    %v1364 = vld [vmem:[#allocation3 + $0x368] sm:$0xff]
    %v1365 = vld [vmem:[#allocation3 + $0x370] sm:$0xff]
    %v1366 = vld [vmem:[#allocation3 + $0x378] sm:$0xff]
    %v1367 = vld [vmem:[#allocation3 + $0x380] sm:$0xff]
    %v1368 = vld [vmem:[#allocation3 + $0x388] sm:$0xff]
    %v1369 = vld [vmem:[#allocation3 + $0x390] sm:$0xff]
    %v1370 = vld [vmem:[#allocation3 + $0x398] sm:$0xff]
    %v1371 = vld [vmem:[#allocation3 + $0x3a0] sm:$0xff]
    %v1372 = vld [vmem:[#allocation3 + $0x3a8] sm:$0xff]
    %v1373 = vld [vmem:[#allocation3 + $0x3b0] sm:$0xff]
    %v1374 = vld [vmem:[#allocation3 + $0x3b8] sm:$0xff]
    %v1375 = vld [vmem:[#allocation3 + $0x3c0] sm:$0xff]
    %v1376 = vld [vmem:[#allocation3 + $0x3c8] sm:$0xff]
    %v1377 = vld [vmem:[#allocation3 + $0x3d0] sm:$0xff]
    %v1378 = vld [vmem:[#allocation3 + $0x3d8] sm:$0xff]
    %v1379 = vld [vmem:[#allocation3 + $0x3e0] sm:$0xff]
    %v1380 = vld [vmem:[#allocation3 + $0x3e8] sm:$0xff]
    %v1381 = vld [vmem:[#allocation3 + $0x3f0] sm:$0xff]
    %v1382 = vld [vmem:[#allocation3 + $0x3f8] sm:$0xff]
    %v1383 = vld [vmem:[#allocation3 + $0x400] sm:$0xff]
    %v1384 = vld [vmem:[#allocation3 + $0x408] sm:$0xff]
    %v1385 = vld [vmem:[#allocation3 + $0x410] sm:$0xff]
    %v1386 = vld [vmem:[#allocation3 + $0x418] sm:$0xff]
    %v1387 = vld [vmem:[#allocation3 + $0x420] sm:$0xff]
    %v1388 = vld [vmem:[#allocation3 + $0x428] sm:$0xff]
    %v1389 = vld [vmem:[#allocation3 + $0x430] sm:$0xff]
    %v1390 = vld [vmem:[#allocation3 + $0x438] sm:$0xff]
    %v1391 = vld [vmem:[#allocation3 + $0x440] sm:$0xff]
    %v1392 = vld [vmem:[#allocation3 + $0x448] sm:$0xff]
    %v1393 = vld [vmem:[#allocation3 + $0x450] sm:$0xff]
    %v1394 = vld [vmem:[#allocation3 + $0x458] sm:$0xff]
    %v1395 = vld [vmem:[#allocation3 + $0x460] sm:$0xff]
    %v1396 = vld [vmem:[#allocation3 + $0x468] sm:$0xff]
    %v1397 = vld [vmem:[#allocation3 + $0x470] sm:$0xff]
    %v1398 = vld [vmem:[#allocation3 + $0x478] sm:$0xff]
    %v1399 = vld [vmem:[#allocation3 + $0x480] sm:$0xff]
    %v1400 = vld [vmem:[#allocation3 + $0x488] sm:$0xff]
    %v1401 = vld [vmem:[#allocation3 + $0x490] sm:$0xff]
    %v1402 = vld [vmem:[#allocation3 + $0x498] sm:$0xff]
    %v1403 = vld [vmem:[#allocation3 + $0x4a0] sm:$0xff]
    %v1404 = vld [vmem:[#allocation3 + $0x4a8] sm:$0xff]
    %v1405 = vld [vmem:[#allocation3 + $0x4b0] sm:$0xff]
    %v1406 = vld [vmem:[#allocation3 + $0x4b8] sm:$0xff]
    %v1407 = vld [vmem:[#allocation3 + $0x4c0] sm:$0xff]
    %v1408 = vld [vmem:[#allocation3 + $0x4c8] sm:$0xff]
    %v1409 = vld [vmem:[#allocation3 + $0x4d0] sm:$0xff]
    %v1410 = vld [vmem:[#allocation3 + $0x4d8] sm:$0xff]
    %v1411 = vld [vmem:[#allocation3 + $0x4e0] sm:$0xff]
    %v1412 = vld [vmem:[#allocation3 + $0x4e8] sm:$0xff]
    %v1413 = vld [vmem:[#allocation3 + $0x4f0] sm:$0xff]
    %v1414 = vld [vmem:[#allocation3 + $0x4f8] sm:$0xff]
    %v1415 = vld [vmem:[#allocation3 + $0x500] sm:$0xff]
    %v1416 = vld [vmem:[#allocation3 + $0x508] sm:$0xff]
    %v1417 = vld [vmem:[#allocation3 + $0x510] sm:$0xff]
    %v1418 = vld [vmem:[#allocation3 + $0x518] sm:$0xff]
    %v1419 = vld [vmem:[#allocation3 + $0x520] sm:$0xff]
    %v1420 = vld [vmem:[#allocation3 + $0x528] sm:$0xff]
    %v1421 = vld [vmem:[#allocation3 + $0x530] sm:$0xff]
    %v1422 = vld [vmem:[#allocation3 + $0x538] sm:$0xff]
    %v1423 = vld [vmem:[#allocation3 + $0x540] sm:$0xff]
    %v1424 = vld [vmem:[#allocation3 + $0x548] sm:$0xff]
    %v1425 = vld [vmem:[#allocation3 + $0x550] sm:$0xff]
    %v1426 = vld [vmem:[#allocation3 + $0x558] sm:$0xff]
    %v1427 = vld [vmem:[#allocation3 + $0x560] sm:$0xff]
    %v1428 = vld [vmem:[#allocation3 + $0x568] sm:$0xff]
    %v1429 = vld [vmem:[#allocation3 + $0x570] sm:$0xff]
    %v1430 = vld [vmem:[#allocation3 + $0x578] sm:$0xff]
    %v1431 = vld [vmem:[#allocation3 + $0x580] sm:$0xff]
    %v1432 = vld [vmem:[#allocation3 + $0x588] sm:$0xff]
    %v1433 = vld [vmem:[#allocation3 + $0x590] sm:$0xff]
    %v1434 = vld [vmem:[#allocation3 + $0x598] sm:$0xff]
    %v1435 = vld [vmem:[#allocation3 + $0x5a0] sm:$0xff]
    %v1436 = vld [vmem:[#allocation3 + $0x5a8] sm:$0xff]
    %v1437 = vld [vmem:[#allocation3 + $0x5b0] sm:$0xff]
    %v1438 = vld [vmem:[#allocation3 + $0x5b8] sm:$0xff]
    %v1439 = vld [vmem:[#allocation3 + $0x5c0] sm:$0xff]
    %v1440 = vld [vmem:[#allocation3 + $0x5c8] sm:$0xff]
    %v1441 = vld [vmem:[#allocation3 + $0x5d0] sm:$0xff]
    %v1442 = vld [vmem:[#allocation3 + $0x5d8] sm:$0xff]
    %v1443 = vld [vmem:[#allocation3 + $0x5e0] sm:$0xff]
    %v1444 = vld [vmem:[#allocation3 + $0x5e8] sm:$0xff]
    %v1445 = vld [vmem:[#allocation3 + $0x5f0] sm:$0xff]
    %v1446 = vld [vmem:[#allocation3 + $0x5f8] sm:$0xff]
    %v1447 = vld [vmem:[#allocation3 + $0x600] sm:$0xff]
    %v1448 = vld [vmem:[#allocation3 + $0x608] sm:$0xff]
    %v1449 = vld [vmem:[#allocation3 + $0x610] sm:$0xff]
    %v1450 = vld [vmem:[#allocation3 + $0x618] sm:$0xff]
    %v1451 = vld [vmem:[#allocation3 + $0x620] sm:$0xff]
    %v1452 = vld [vmem:[#allocation3 + $0x628] sm:$0xff]
    %v1453 = vld [vmem:[#allocation3 + $0x630] sm:$0xff]
    %v1454 = vld [vmem:[#allocation3 + $0x638] sm:$0xff]
    %v1455 = vld [vmem:[#allocation3 + $0x640] sm:$0xff]
    %v1456 = vld [vmem:[#allocation3 + $0x648] sm:$0xff]
    %v1457 = vld [vmem:[#allocation3 + $0x650] sm:$0xff]
    %v1458 = vld [vmem:[#allocation3 + $0x658] sm:$0xff]
    %v1459 = vld [vmem:[#allocation3 + $0x660] sm:$0xff]
    %v1460 = vld [vmem:[#allocation3 + $0x668] sm:$0xff]
    %v1461 = vld [vmem:[#allocation3 + $0x670] sm:$0xff]
    %v1462 = vld [vmem:[#allocation3 + $0x678] sm:$0xff]
    %v1463 = vld [vmem:[#allocation3 + $0x680] sm:$0xff]
    %v1464 = vld [vmem:[#allocation3 + $0x688] sm:$0xff]
    %v1465 = vld [vmem:[#allocation3 + $0x690] sm:$0xff]
    %v1466 = vld [vmem:[#allocation3 + $0x698] sm:$0xff]
    %v1467 = vld [vmem:[#allocation3 + $0x6a0] sm:$0xff]
    %v1468 = vld [vmem:[#allocation3 + $0x6a8] sm:$0xff]
    %v1469 = vld [vmem:[#allocation3 + $0x6b0] sm:$0xff]
    %v1470 = vld [vmem:[#allocation3 + $0x6b8] sm:$0xff]
    %v1471 = vld [vmem:[#allocation3 + $0x6c0] sm:$0xff]
    %v1472 = vld [vmem:[#allocation3 + $0x6c8] sm:$0xff]
    %v1473 = vld [vmem:[#allocation3 + $0x6d0] sm:$0xff]
    %v1474 = vld [vmem:[#allocation3 + $0x6d8] sm:$0xff]
    %v1475 = vld [vmem:[#allocation3 + $0x6e0] sm:$0xff]
    %v1476 = vld [vmem:[#allocation3 + $0x6e8] sm:$0xff]
    %v1477 = vld [vmem:[#allocation3 + $0x6f0] sm:$0xff]
    %v1478 = vld [vmem:[#allocation3 + $0x6f8] sm:$0xff]
    %v1479 = vld [vmem:[#allocation3 + $0x700] sm:$0xff]
    %v1480 = vld [vmem:[#allocation3 + $0x708] sm:$0xff]
    %v1481 = vld [vmem:[#allocation3 + $0x710] sm:$0xff]
    %v1482 = vld [vmem:[#allocation3 + $0x718] sm:$0xff]
    %v1483 = vld [vmem:[#allocation3 + $0x720] sm:$0xff]
    %v1484 = vld [vmem:[#allocation3 + $0x728] sm:$0xff]
    %v1485 = vld [vmem:[#allocation3 + $0x730] sm:$0xff]
    %v1486 = vld [vmem:[#allocation3 + $0x738] sm:$0xff]
    %v1487 = vld [vmem:[#allocation3 + $0x740] sm:$0xff]
    %v1488 = vld [vmem:[#allocation3 + $0x748] sm:$0xff]
    %v1489 = vld [vmem:[#allocation3 + $0x750] sm:$0xff]
    %v1490 = vld [vmem:[#allocation3 + $0x758] sm:$0xff]
    %v1491 = vld [vmem:[#allocation3 + $0x760] sm:$0xff]
    %v1492 = vld [vmem:[#allocation3 + $0x768] sm:$0xff]
    %v1493 = vld [vmem:[#allocation3 + $0x770] sm:$0xff]
    %v1494 = vld [vmem:[#allocation3 + $0x778] sm:$0xff]
    %v1495 = vld [vmem:[#allocation3 + $0x780] sm:$0xff]
    %v1496 = vld [vmem:[#allocation3 + $0x788] sm:$0xff]
    %v1497 = vld [vmem:[#allocation3 + $0x790] sm:$0xff]
    %v1498 = vld [vmem:[#allocation3 + $0x798] sm:$0xff]
    %v1499 = vld [vmem:[#allocation3 + $0x7a0] sm:$0xff]
    %v1500 = vld [vmem:[#allocation3 + $0x7a8] sm:$0xff]
    %v1501 = vld [vmem:[#allocation3 + $0x7b0] sm:$0xff]
    %v1502 = vld [vmem:[#allocation3 + $0x7b8] sm:$0xff]
    %v1503 = vld [vmem:[#allocation3 + $0x7c0] sm:$0xff]
    %v1504 = vld [vmem:[#allocation3 + $0x7c8] sm:$0xff]
    %v1505 = vld [vmem:[#allocation3 + $0x7d0] sm:$0xff]
    %v1506 = vld [vmem:[#allocation3 + $0x7d8] sm:$0xff]
    %v1507 = vld [vmem:[#allocation3 + $0x7e0] sm:$0xff]
    %v1508 = vld [vmem:[#allocation3 + $0x7e8] sm:$0xff]
    %v1509 = vld [vmem:[#allocation3 + $0x7f0] sm:$0xff]
    %v1510 = vld [vmem:[#allocation3 + $0x7f8] sm:$0xff]
    %1511 = vmatprep.subr.bf16.mxu0 %v1256
    %1512 = vmatpush1.bf16.msra.mxu0 %v1255
    %1513 = vmatprep.subr.bf16.mxu0 %v1264
    %1514 = vmatpush1.bf16.msra.mxu0 %v1263
    %1515 = vmatprep.subr.bf16.mxu0 %v1272
    %1516 = vmatpush1.bf16.msra.mxu0 %v1271
    %1517 = vmatprep.subr.bf16.mxu0 %v1280
    %1518 = vmatpush1.bf16.msra.mxu0 %v1279
    %1519 = vmatprep.subr.bf16.mxu0 %v1288
    %1520 = vmatpush1.bf16.msra.mxu0 %v1287
    %1521 = vmatprep.subr.bf16.mxu0 %v1296
    %1522 = vmatpush1.bf16.msra.mxu0 %v1295
    %1523 = vmatprep.subr.bf16.mxu0 %v1304
    %1524 = vmatpush1.bf16.msra.mxu0 %v1303
    %1525 = vmatprep.subr.bf16.mxu0 %v1312
    %1526 = vmatpush1.bf16.msra.mxu0 %v1311
    %1527 = vmatprep.subr.bf16.mxu0 %v1320
    %1528 = vmatpush1.bf16.msra.mxu0 %v1319
    %1529 = vmatprep.subr.bf16.mxu0 %v1328
    %1530 = vmatpush1.bf16.msra.mxu0 %v1327
    %1531 = vmatprep.subr.bf16.mxu0 %v1336
    %1532 = vmatpush1.bf16.msra.mxu0 %v1335
    %1533 = vmatprep.subr.bf16.mxu0 %v1344
    %1534 = vmatpush1.bf16.msra.mxu0 %v1343
    %1535 = vmatprep.subr.bf16.mxu0 %v1352
    %1536 = vmatpush1.bf16.msra.mxu0 %v1351
    %1537 = vmatprep.subr.bf16.mxu0 %v1360
    %1538 = vmatpush1.bf16.msra.mxu0 %v1359
    %1539 = vmatprep.subr.bf16.mxu0 %v1368
    %1540 = vmatpush1.bf16.msra.mxu0 %v1367
    %1541 = vmatprep.subr.bf16.mxu0 %v1376
    %1542 = vmatpush1.bf16.msra.mxu0 %v1375
    %1543 = vmatprep.mubr.bf16.mxu0 %v1240
    %1544 = vmatmul.mubr.bf16.gmra.mrb[0].mxu0 %v1239
    %v1545 = vpop.f32.mrb[0].mxu0
    %v1546 = vadd.f32 0.0, %v1545
    %v1547 = vpop.f32.mrb[0].mxu0
    %v1548 = vadd.f32 0.0, %v1547
    %v1549 = vpop.f32.mrb[0].mxu0
    %v1550 = vadd.f32 0.0, %v1549
    %v1551 = vpop.f32.mrb[0].mxu0
    %v1552 = vadd.f32 0.0, %v1551
    %1553 = vmatprep.mubr.bf16.mxu0 %v1244
    %1554 = vmatmul.mubr.bf16.gmra.mrb[0].mxu0 %v1243
    %v1555 = vpop.f32.mrb[0].mxu0
    %v1556 = vadd.f32 0.0, %v1555
    %v1557 = vpop.f32.mrb[0].mxu0
    %v1558 = vadd.f32 0.0, %v1557
    %v1559 = vpop.f32.mrb[0].mxu0
    %v1560 = vadd.f32 0.0, %v1559
    %v1561 = vpop.f32.mrb[0].mxu0
    %v1562 = vadd.f32 0.0, %v1561
    %1563 = vmatprep.mubr.bf16.mxu0 %v1248
    %1564 = vmatmul.mubr.bf16.gmra.mrb[0].mxu0 %v1247
    %v1565 = vpop.f32.mrb[0].mxu0
    %v1566 = vadd.f32 0.0, %v1565
    %v1567 = vpop.f32.mrb[0].mxu0
    %v1568 = vadd.f32 0.0, %v1567
    %v1569 = vpop.f32.mrb[0].mxu0
    %v1570 = vadd.f32 0.0, %v1569
    %v1571 = vpop.f32.mrb[0].mxu0
    %v1572 = vadd.f32 0.0, %v1571
    %1573 = vmatprep.mubr.bf16.mxu0 %v1252
    %1574 = vmatmul.mubr.bf16.gmra.mrb[0].mxu0 %v1251
    %v1575 = vpop.f32.mrb[0].mxu0
    %v1576 = vadd.f32 0.0, %v1575
    %v1577 = vpop.f32.mrb[0].mxu0
    %v1578 = vadd.f32 0.0, %v1577
    %v1579 = vpop.f32.mrb[0].mxu0
    %v1580 = vadd.f32 0.0, %v1579
    %v1581 = vpop.f32.mrb[0].mxu0
    %v1582 = vadd.f32 0.0, %v1581
    %1583 = vdwg.mxu0
    %1584 = vmatprep.subr.bf16.mxu0 %v1384
    %1585 = vmatpush1.bf16.msra.mxu0 %v1383
    %1586 = vmatprep.subr.bf16.mxu0 %v1392
    %1587 = vmatpush1.bf16.msra.mxu0 %v1391
    %1588 = vmatprep.subr.bf16.mxu0 %v1400
    %1589 = vmatpush1.bf16.msra.mxu0 %v1399
    %1590 = vmatprep.subr.bf16.mxu0 %v1408
    %1591 = vmatpush1.bf16.msra.mxu0 %v1407
    %1592 = vmatprep.subr.bf16.mxu0 %v1416
    %1593 = vmatpush1.bf16.msra.mxu0 %v1415
    %1594 = vmatprep.subr.bf16.mxu0 %v1424
    %1595 = vmatpush1.bf16.msra.mxu0 %v1423
    %1596 = vmatprep.subr.bf16.mxu0 %v1432
    %1597 = vmatpush1.bf16.msra.mxu0 %v1431
    %1598 = vmatprep.subr.bf16.mxu0 %v1440
    %1599 = vmatpush1.bf16.msra.mxu0 %v1439
    %1600 = vmatprep.subr.bf16.mxu0 %v1448
    %1601 = vmatpush1.bf16.msra.mxu0 %v1447
    %1602 = vmatprep.subr.bf16.mxu0 %v1456
    %1603 = vmatpush1.bf16.msra.mxu0 %v1455
    %1604 = vmatprep.subr.bf16.mxu0 %v1464
    %1605 = vmatpush1.bf16.msra.mxu0 %v1463
    %1606 = vmatprep.subr.bf16.mxu0 %v1472
    %1607 = vmatpush1.bf16.msra.mxu0 %v1471
    %1608 = vmatprep.subr.bf16.mxu0 %v1480
    %1609 = vmatpush1.bf16.msra.mxu0 %v1479
    %1610 = vmatprep.subr.bf16.mxu0 %v1488
    %1611 = vmatpush1.bf16.msra.mxu0 %v1487
    %1612 = vmatprep.subr.bf16.mxu0 %v1496
    %1613 = vmatpush1.bf16.msra.mxu0 %v1495
    %1614 = vmatprep.subr.bf16.mxu0 %v1504
    %1615 = vmatpush1.bf16.msra.mxu0 %v1503
    %1616 = vmatprep.mubr.bf16.mxu0 %v1242
    %1617 = vmatmul.mubr.bf16.gmra.mrb[0].mxu0 %v1241
    %v1618 = vpop.f32.mrb[0].mxu0
    %v1619 = vadd.f32 %v1546, %v1618
    %v1620 = vpop.f32.mrb[0].mxu0
    %v1621 = vadd.f32 %v1548, %v1620
    %v1622 = vpop.f32.mrb[0].mxu0
    %v1623 = vadd.f32 %v1550, %v1622
    %v1624 = vpop.f32.mrb[0].mxu0
    %v1625 = vadd.f32 %v1552, %v1624
    %1626 = vmatprep.mubr.bf16.mxu0 %v1246
    %1627 = vmatmul.mubr.bf16.gmra.mrb[0].mxu0 %v1245
    %v1628 = vpop.f32.mrb[0].mxu0
    %v1629 = vadd.f32 %v1556, %v1628
    %v1630 = vpop.f32.mrb[0].mxu0
    %v1631 = vadd.f32 %v1558, %v1630
    %v1632 = vpop.f32.mrb[0].mxu0
    %v1633 = vadd.f32 %v1560, %v1632
    %v1634 = vpop.f32.mrb[0].mxu0
    %v1635 = vadd.f32 %v1562, %v1634
    %1636 = vmatprep.mubr.bf16.mxu0 %v1250
    %1637 = vmatmul.mubr.bf16.gmra.mrb[0].mxu0 %v1249
    %v1638 = vpop.f32.mrb[0].mxu0
    %v1639 = vadd.f32 %v1566, %v1638
    %v1640 = vpop.f32.mrb[0].mxu0
    %v1641 = vadd.f32 %v1568, %v1640
    %v1642 = vpop.f32.mrb[0].mxu0
    %v1643 = vadd.f32 %v1570, %v1642
    %v1644 = vpop.f32.mrb[0].mxu0
    %v1645 = vadd.f32 %v1572, %v1644
    %1646 = vmatprep.mubr.bf16.mxu0 %v1254
    %1647 = vmatmul.mubr.bf16.gmra.mrb[0].mxu0 %v1253
    %v1648 = vpop.f32.mrb[0].mxu0
    %v1649 = vadd.f32 %v1576, %v1648
    %v1650 = vpop.f32.mrb[0].mxu0
    %v1651 = vadd.f32 %v1578, %v1650
    %v1652 = vpop.f32.mrb[0].mxu0
    %v1653 = vadd.f32 %v1580, %v1652
    %v1654 = vpop.f32.mrb[0].mxu0
    %v1655 = vadd.f32 %v1582, %v1654
    %1656 = vdwg.mxu0
    %1657 = vmatprep.subr.bf16.mxu0 %v1258
    %1658 = vmatpush1.bf16.msra.mxu0 %v1257
    %1659 = vmatprep.subr.bf16.mxu0 %v1266
    %1660 = vmatpush1.bf16.msra.mxu0 %v1265
    %1661 = vmatprep.subr.bf16.mxu0 %v1274
    %1662 = vmatpush1.bf16.msra.mxu0 %v1273
    %1663 = vmatprep.subr.bf16.mxu0 %v1282
    %1664 = vmatpush1.bf16.msra.mxu0 %v1281
    %1665 = vmatprep.subr.bf16.mxu0 %v1290
    %1666 = vmatpush1.bf16.msra.mxu0 %v1289
    %1667 = vmatprep.subr.bf16.mxu0 %v1298
    %1668 = vmatpush1.bf16.msra.mxu0 %v1297
    %1669 = vmatprep.subr.bf16.mxu0 %v1306
    %1670 = vmatpush1.bf16.msra.mxu0 %v1305
    %1671 = vmatprep.subr.bf16.mxu0 %v1314
    %1672 = vmatpush1.bf16.msra.mxu0 %v1313
    %1673 = vmatprep.subr.bf16.mxu0 %v1322
    %1674 = vmatpush1.bf16.msra.mxu0 %v1321
    %1675 = vmatprep.subr.bf16.mxu0 %v1330
    %1676 = vmatpush1.bf16.msra.mxu0 %v1329
    %1677 = vmatprep.subr.bf16.mxu0 %v1338
    %1678 = vmatpush1.bf16.msra.mxu0 %v1337
    %1679 = vmatprep.subr.bf16.mxu0 %v1346
    %1680 = vmatpush1.bf16.msra.mxu0 %v1345
    %1681 = vmatprep.subr.bf16.mxu0 %v1354
    %1682 = vmatpush1.bf16.msra.mxu0 %v1353
    %1683 = vmatprep.subr.bf16.mxu0 %v1362
    %1684 = vmatpush1.bf16.msra.mxu0 %v1361
    %1685 = vmatprep.subr.bf16.mxu0 %v1370
    %1686 = vmatpush1.bf16.msra.mxu0 %v1369
    %1687 = vmatprep.subr.bf16.mxu0 %v1378
    %1688 = vmatpush1.bf16.msra.mxu0 %v1377
    %1689 = vmatprep.mubr.bf16.mxu0 %v1240
    %1690 = vmatmul.mubr.bf16.gmra.mrb[0].mxu0 %v1239
    %v1691 = vpop.f32.mrb[0].mxu0
    %v1692 = vadd.f32 0.0, %v1691
    %v1693 = vpop.f32.mrb[0].mxu0
    %v1694 = vadd.f32 0.0, %v1693
    %v1695 = vpop.f32.mrb[0].mxu0
    %v1696 = vadd.f32 0.0, %v1695
    %v1697 = vpop.f32.mrb[0].mxu0
    %v1698 = vadd.f32 0.0, %v1697
    %1699 = vmatprep.mubr.bf16.mxu0 %v1244
    %1700 = vmatmul.mubr.bf16.gmra.mrb[0].mxu0 %v1243
    %v1701 = vpop.f32.mrb[0].mxu0
    %v1702 = vadd.f32 0.0, %v1701
    %v1703 = vpop.f32.mrb[0].mxu0
    %v1704 = vadd.f32 0.0, %v1703
    %v1705 = vpop.f32.mrb[0].mxu0
    %v1706 = vadd.f32 0.0, %v1705
    %v1707 = vpop.f32.mrb[0].mxu0
    %v1708 = vadd.f32 0.0, %v1707
    %1709 = vmatprep.mubr.bf16.mxu0 %v1248
    %1710 = vmatmul.mubr.bf16.gmra.mrb[0].mxu0 %v1247
    %v1711 = vpop.f32.mrb[0].mxu0
    %v1712 = vadd.f32 0.0, %v1711
    %v1713 = vpop.f32.mrb[0].mxu0
    %v1714 = vadd.f32 0.0, %v1713
    %v1715 = vpop.f32.mrb[0].mxu0
    %v1716 = vadd.f32 0.0, %v1715
    %v1717 = vpop.f32.mrb[0].mxu0
    %v1718 = vadd.f32 0.0, %v1717
    %1719 = vmatprep.mubr.bf16.mxu0 %v1252
    %1720 = vmatmul.mubr.bf16.gmra.mrb[0].mxu0 %v1251
    %v1721 = vpop.f32.mrb[0].mxu0
    %v1722 = vadd.f32 0.0, %v1721
    %v1723 = vpop.f32.mrb[0].mxu0
    %v1724 = vadd.f32 0.0, %v1723
    %v1725 = vpop.f32.mrb[0].mxu0
    %v1726 = vadd.f32 0.0, %v1725
    %v1727 = vpop.f32.mrb[0].mxu0
    %v1728 = vadd.f32 0.0, %v1727
    %1729 = vdwg.mxu0
    %1730 = vmatprep.subr.bf16.mxu0 %v1386
    %1731 = vmatpush1.bf16.msra.mxu0 %v1385
    %1732 = vmatprep.subr.bf16.mxu0 %v1394
    %1733 = vmatpush1.bf16.msra.mxu0 %v1393
    %1734 = vmatprep.subr.bf16.mxu0 %v1402
    %1735 = vmatpush1.bf16.msra.mxu0 %v1401
    %1736 = vmatprep.subr.bf16.mxu0 %v1410
    %1737 = vmatpush1.bf16.msra.mxu0 %v1409
    %1738 = vmatprep.subr.bf16.mxu0 %v1418
    %1739 = vmatpush1.bf16.msra.mxu0 %v1417
    %1740 = vmatprep.subr.bf16.mxu0 %v1426
    %1741 = vmatpush1.bf16.msra.mxu0 %v1425
    %1742 = vmatprep.subr.bf16.mxu0 %v1434
    %1743 = vmatpush1.bf16.msra.mxu0 %v1433
    %1744 = vmatprep.subr.bf16.mxu0 %v1442
    %1745 = vmatpush1.bf16.msra.mxu0 %v1441
    %1746 = vmatprep.subr.bf16.mxu0 %v1450
    %1747 = vmatpush1.bf16.msra.mxu0 %v1449
    %1748 = vmatprep.subr.bf16.mxu0 %v1458
    %1749 = vmatpush1.bf16.msra.mxu0 %v1457
    %1750 = vmatprep.subr.bf16.mxu0 %v1466
    %1751 = vmatpush1.bf16.msra.mxu0 %v1465
    %1752 = vmatprep.subr.bf16.mxu0 %v1474
    %1753 = vmatpush1.bf16.msra.mxu0 %v1473
    %1754 = vmatprep.subr.bf16.mxu0 %v1482
    %1755 = vmatpush1.bf16.msra.mxu0 %v1481
    %1756 = vmatprep.subr.bf16.mxu0 %v1490
    %1757 = vmatpush1.bf16.msra.mxu0 %v1489
    %1758 = vmatprep.subr.bf16.mxu0 %v1498
    %1759 = vmatpush1.bf16.msra.mxu0 %v1497
    %1760 = vmatprep.subr.bf16.mxu0 %v1506
    %1761 = vmatpush1.bf16.msra.mxu0 %v1505
    %1762 = vmatprep.mubr.bf16.mxu0 %v1242
    %1763 = vmatmul.mubr.bf16.gmra.mrb[0].mxu0 %v1241
    %v1764 = vpop.f32.mrb[0].mxu0
    %v1765 = vadd.f32 %v1692, %v1764
    %v1766 = vpop.f32.mrb[0].mxu0
    %v1767 = vadd.f32 %v1694, %v1766
    %v1768 = vpop.f32.mrb[0].mxu0
    %v1769 = vadd.f32 %v1696, %v1768
    %v1770 = vpop.f32.mrb[0].mxu0
    %v1771 = vadd.f32 %v1698, %v1770
    %1772 = vmatprep.mubr.bf16.mxu0 %v1246
    %1773 = vmatmul.mubr.bf16.gmra.mrb[0].mxu0 %v1245
    %v1774 = vpop.f32.mrb[0].mxu0
    %v1775 = vadd.f32 %v1702, %v1774
    %v1776 = vpop.f32.mrb[0].mxu0
    %v1777 = vadd.f32 %v1704, %v1776
    %v1778 = vpop.f32.mrb[0].mxu0
    %v1779 = vadd.f32 %v1706, %v1778
    %v1780 = vpop.f32.mrb[0].mxu0
    %v1781 = vadd.f32 %v1708, %v1780
    %1782 = vmatprep.mubr.bf16.mxu0 %v1250
    %1783 = vmatmul.mubr.bf16.gmra.mrb[0].mxu0 %v1249
    %v1784 = vpop.f32.mrb[0].mxu0
    %v1785 = vadd.f32 %v1712, %v1784
    %v1786 = vpop.f32.mrb[0].mxu0
    %v1787 = vadd.f32 %v1714, %v1786
    %v1788 = vpop.f32.mrb[0].mxu0
    %v1789 = vadd.f32 %v1716, %v1788
    %v1790 = vpop.f32.mrb[0].mxu0
    %v1791 = vadd.f32 %v1718, %v1790
    %1792 = vmatprep.mubr.bf16.mxu0 %v1254
    %1793 = vmatmul.mubr.bf16.gmra.mrb[0].mxu0 %v1253
    %v1794 = vpop.f32.mrb[0].mxu0
    %v1795 = vadd.f32 %v1722, %v1794
    %v1796 = vpop.f32.mrb[0].mxu0
    %v1797 = vadd.f32 %v1724, %v1796
    %v1798 = vpop.f32.mrb[0].mxu0
    %v1799 = vadd.f32 %v1726, %v1798
    %v1800 = vpop.f32.mrb[0].mxu0
    %v1801 = vadd.f32 %v1728, %v1800
    %1802 = vdwg.mxu0
    %1803 = vmatprep.subr.bf16.mxu0 %v1260
    %1804 = vmatpush1.bf16.msra.mxu0 %v1259
    %1805 = vmatprep.subr.bf16.mxu0 %v1268
    %1806 = vmatpush1.bf16.msra.mxu0 %v1267
    %1807 = vmatprep.subr.bf16.mxu0 %v1276
    %1808 = vmatpush1.bf16.msra.mxu0 %v1275
    %1809 = vmatprep.subr.bf16.mxu0 %v1284
    %1810 = vmatpush1.bf16.msra.mxu0 %v1283
    %1811 = vmatprep.subr.bf16.mxu0 %v1292
    %1812 = vmatpush1.bf16.msra.mxu0 %v1291
    %1813 = vmatprep.subr.bf16.mxu0 %v1300
    %1814 = vmatpush1.bf16.msra.mxu0 %v1299
    %1815 = vmatprep.subr.bf16.mxu0 %v1308
    %1816 = vmatpush1.bf16.msra.mxu0 %v1307
    %1817 = vmatprep.subr.bf16.mxu0 %v1316
    %1818 = vmatpush1.bf16.msra.mxu0 %v1315
    %1819 = vmatprep.subr.bf16.mxu0 %v1324
    %1820 = vmatpush1.bf16.msra.mxu0 %v1323
    %1821 = vmatprep.subr.bf16.mxu0 %v1332
    %1822 = vmatpush1.bf16.msra.mxu0 %v1331
    %1823 = vmatprep.subr.bf16.mxu0 %v1340
    %1824 = vmatpush1.bf16.msra.mxu0 %v1339
    %1825 = vmatprep.subr.bf16.mxu0 %v1348
    %1826 = vmatpush1.bf16.msra.mxu0 %v1347
    %1827 = vmatprep.subr.bf16.mxu0 %v1356
    %1828 = vmatpush1.bf16.msra.mxu0 %v1355
    %1829 = vmatprep.subr.bf16.mxu0 %v1364
    %1830 = vmatpush1.bf16.msra.mxu0 %v1363
    %1831 = vmatprep.subr.bf16.mxu0 %v1372
    %1832 = vmatpush1.bf16.msra.mxu0 %v1371
    %1833 = vmatprep.subr.bf16.mxu0 %v1380
    %1834 = vmatpush1.bf16.msra.mxu0 %v1379
    %1835 = vmatprep.mubr.bf16.mxu0 %v1240
    %1836 = vmatmul.mubr.bf16.gmra.mrb[0].mxu0 %v1239
    %v1837 = vpop.f32.mrb[0].mxu0
    %v1838 = vadd.f32 0.0, %v1837
    %v1839 = vpop.f32.mrb[0].mxu0
    %v1840 = vadd.f32 0.0, %v1839
    %v1841 = vpop.f32.mrb[0].mxu0
    %v1842 = vadd.f32 0.0, %v1841
    %v1843 = vpop.f32.mrb[0].mxu0
    %v1844 = vadd.f32 0.0, %v1843
    %1845 = vmatprep.mubr.bf16.mxu0 %v1244
    %1846 = vmatmul.mubr.bf16.gmra.mrb[0].mxu0 %v1243
    %v1847 = vpop.f32.mrb[0].mxu0
    %v1848 = vadd.f32 0.0, %v1847
    %v1849 = vpop.f32.mrb[0].mxu0
    %v1850 = vadd.f32 0.0, %v1849
    %v1851 = vpop.f32.mrb[0].mxu0
    %v1852 = vadd.f32 0.0, %v1851
    %v1853 = vpop.f32.mrb[0].mxu0
    %v1854 = vadd.f32 0.0, %v1853
    %1855 = vmatprep.mubr.bf16.mxu0 %v1248
    %1856 = vmatmul.mubr.bf16.gmra.mrb[0].mxu0 %v1247
    %v1857 = vpop.f32.mrb[0].mxu0
    %v1858 = vadd.f32 0.0, %v1857
    %v1859 = vpop.f32.mrb[0].mxu0
    %v1860 = vadd.f32 0.0, %v1859
    %v1861 = vpop.f32.mrb[0].mxu0
    %v1862 = vadd.f32 0.0, %v1861
    %v1863 = vpop.f32.mrb[0].mxu0
    %v1864 = vadd.f32 0.0, %v1863
    %1865 = vmatprep.mubr.bf16.mxu0 %v1252
    %1866 = vmatmul.mubr.bf16.gmra.mrb[0].mxu0 %v1251
    %v1867 = vpop.f32.mrb[0].mxu0
    %v1868 = vadd.f32 0.0, %v1867
    %v1869 = vpop.f32.mrb[0].mxu0
    %v1870 = vadd.f32 0.0, %v1869
    %v1871 = vpop.f32.mrb[0].mxu0
    %v1872 = vadd.f32 0.0, %v1871
    %v1873 = vpop.f32.mrb[0].mxu0
    %v1874 = vadd.f32 0.0, %v1873
    %1875 = vdwg.mxu0
    %1876 = vmatprep.subr.bf16.mxu0 %v1388
    %1877 = vmatpush1.bf16.msra.mxu0 %v1387
    %1878 = vmatprep.subr.bf16.mxu0 %v1396
    %1879 = vmatpush1.bf16.msra.mxu0 %v1395
    %1880 = vmatprep.subr.bf16.mxu0 %v1404
    %1881 = vmatpush1.bf16.msra.mxu0 %v1403
    %1882 = vmatprep.subr.bf16.mxu0 %v1412
    %1883 = vmatpush1.bf16.msra.mxu0 %v1411
    %1884 = vmatprep.subr.bf16.mxu0 %v1420
    %1885 = vmatpush1.bf16.msra.mxu0 %v1419
    %1886 = vmatprep.subr.bf16.mxu0 %v1428
    %1887 = vmatpush1.bf16.msra.mxu0 %v1427
    %1888 = vmatprep.subr.bf16.mxu0 %v1436
    %1889 = vmatpush1.bf16.msra.mxu0 %v1435
    %1890 = vmatprep.subr.bf16.mxu0 %v1444
    %1891 = vmatpush1.bf16.msra.mxu0 %v1443
    %1892 = vmatprep.subr.bf16.mxu0 %v1452
    %1893 = vmatpush1.bf16.msra.mxu0 %v1451
    %1894 = vmatprep.subr.bf16.mxu0 %v1460
    %1895 = vmatpush1.bf16.msra.mxu0 %v1459
    %1896 = vmatprep.subr.bf16.mxu0 %v1468
    %1897 = vmatpush1.bf16.msra.mxu0 %v1467
    %1898 = vmatprep.subr.bf16.mxu0 %v1476
    %1899 = vmatpush1.bf16.msra.mxu0 %v1475
    %1900 = vmatprep.subr.bf16.mxu0 %v1484
    %1901 = vmatpush1.bf16.msra.mxu0 %v1483
    %1902 = vmatprep.subr.bf16.mxu0 %v1492
    %1903 = vmatpush1.bf16.msra.mxu0 %v1491
    %1904 = vmatprep.subr.bf16.mxu0 %v1500
    %1905 = vmatpush1.bf16.msra.mxu0 %v1499
    %1906 = vmatprep.subr.bf16.mxu0 %v1508
    %1907 = vmatpush1.bf16.msra.mxu0 %v1507
    %1908 = vmatprep.mubr.bf16.mxu0 %v1242
    %1909 = vmatmul.mubr.bf16.gmra.mrb[0].mxu0 %v1241
    %v1910 = vpop.f32.mrb[0].mxu0
    %v1911 = vadd.f32 %v1838, %v1910
    %v1912 = vpop.f32.mrb[0].mxu0
    %v1913 = vadd.f32 %v1840, %v1912
    %v1914 = vpop.f32.mrb[0].mxu0
    %v1915 = vadd.f32 %v1842, %v1914
    %v1916 = vpop.f32.mrb[0].mxu0
    %v1917 = vadd.f32 %v1844, %v1916
    %1918 = vmatprep.mubr.bf16.mxu0 %v1246
    %1919 = vmatmul.mubr.bf16.gmra.mrb[0].mxu0 %v1245
    %v1920 = vpop.f32.mrb[0].mxu0
    %v1921 = vadd.f32 %v1848, %v1920
    %v1922 = vpop.f32.mrb[0].mxu0
    %v1923 = vadd.f32 %v1850, %v1922
    %v1924 = vpop.f32.mrb[0].mxu0
    %v1925 = vadd.f32 %v1852, %v1924
    %v1926 = vpop.f32.mrb[0].mxu0
    %v1927 = vadd.f32 %v1854, %v1926
    %1928 = vmatprep.mubr.bf16.mxu0 %v1250
    %1929 = vmatmul.mubr.bf16.gmra.mrb[0].mxu0 %v1249
    %v1930 = vpop.f32.mrb[0].mxu0
    %v1931 = vadd.f32 %v1858, %v1930
    %v1932 = vpop.f32.mrb[0].mxu0
    %v1933 = vadd.f32 %v1860, %v1932
    %v1934 = vpop.f32.mrb[0].mxu0
    %v1935 = vadd.f32 %v1862, %v1934
    %v1936 = vpop.f32.mrb[0].mxu0
    %v1937 = vadd.f32 %v1864, %v1936
    %1938 = vmatprep.mubr.bf16.mxu0 %v1254
    %1939 = vmatmul.mubr.bf16.gmra.mrb[0].mxu0 %v1253
    %v1940 = vpop.f32.mrb[0].mxu0
    %v1941 = vadd.f32 %v1868, %v1940
    %v1942 = vpop.f32.mrb[0].mxu0
    %v1943 = vadd.f32 %v1870, %v1942
    %v1944 = vpop.f32.mrb[0].mxu0
    %v1945 = vadd.f32 %v1872, %v1944
    %v1946 = vpop.f32.mrb[0].mxu0
    %v1947 = vadd.f32 %v1874, %v1946
    %1948 = vdwg.mxu0
    %1949 = vmatprep.subr.bf16.mxu0 %v1262
    %1950 = vmatpush1.bf16.msra.mxu0 %v1261
    %1951 = vmatprep.subr.bf16.mxu0 %v1270
    %1952 = vmatpush1.bf16.msra.mxu0 %v1269
    %1953 = vmatprep.subr.bf16.mxu0 %v1278
    %1954 = vmatpush1.bf16.msra.mxu0 %v1277
    %1955 = vmatprep.subr.bf16.mxu0 %v1286
    %1956 = vmatpush1.bf16.msra.mxu0 %v1285
    %1957 = vmatprep.subr.bf16.mxu0 %v1294
    %1958 = vmatpush1.bf16.msra.mxu0 %v1293
    %1959 = vmatprep.subr.bf16.mxu0 %v1302
    %1960 = vmatpush1.bf16.msra.mxu0 %v1301
    %1961 = vmatprep.subr.bf16.mxu0 %v1310
    %1962 = vmatpush1.bf16.msra.mxu0 %v1309
    %1963 = vmatprep.subr.bf16.mxu0 %v1318
    %1964 = vmatpush1.bf16.msra.mxu0 %v1317
    %1965 = vmatprep.subr.bf16.mxu0 %v1326
    %1966 = vmatpush1.bf16.msra.mxu0 %v1325
    %1967 = vmatprep.subr.bf16.mxu0 %v1334
    %1968 = vmatpush1.bf16.msra.mxu0 %v1333
    %1969 = vmatprep.subr.bf16.mxu0 %v1342
    %1970 = vmatpush1.bf16.msra.mxu0 %v1341
    %1971 = vmatprep.subr.bf16.mxu0 %v1350
    %1972 = vmatpush1.bf16.msra.mxu0 %v1349
    %1973 = vmatprep.subr.bf16.mxu0 %v1358
    %1974 = vmatpush1.bf16.msra.mxu0 %v1357
    %1975 = vmatprep.subr.bf16.mxu0 %v1366
    %1976 = vmatpush1.bf16.msra.mxu0 %v1365
    %1977 = vmatprep.subr.bf16.mxu0 %v1374
    %1978 = vmatpush1.bf16.msra.mxu0 %v1373
    %1979 = vmatprep.subr.bf16.mxu0 %v1382
    %1980 = vmatpush1.bf16.msra.mxu0 %v1381
    %1981 = vmatprep.mubr.bf16.mxu0 %v1240
    %1982 = vmatmul.mubr.bf16.gmra.mrb[0].mxu0 %v1239
    %v1983 = vpop.f32.mrb[0].mxu0
    %v1984 = vadd.f32 0.0, %v1983
    %v1985 = vpop.f32.mrb[0].mxu0
    %v1986 = vadd.f32 0.0, %v1985
    %v1987 = vpop.f32.mrb[0].mxu0
    %v1988 = vadd.f32 0.0, %v1987
    %v1989 = vpop.f32.mrb[0].mxu0
    %v1990 = vadd.f32 0.0, %v1989
    %1991 = vmatprep.mubr.bf16.mxu0 %v1244
    %1992 = vmatmul.mubr.bf16.gmra.mrb[0].mxu0 %v1243
    %v1993 = vpop.f32.mrb[0].mxu0
    %v1994 = vadd.f32 0.0, %v1993
    %v1995 = vpop.f32.mrb[0].mxu0
    %v1996 = vadd.f32 0.0, %v1995
    %v1997 = vpop.f32.mrb[0].mxu0
    %v1998 = vadd.f32 0.0, %v1997
    %v1999 = vpop.f32.mrb[0].mxu0
    %v2000 = vadd.f32 0.0, %v1999
    %2001 = vmatprep.mubr.bf16.mxu0 %v1248
    %2002 = vmatmul.mubr.bf16.gmra.mrb[0].mxu0 %v1247
    %v2003 = vpop.f32.mrb[0].mxu0
    %v2004 = vadd.f32 0.0, %v2003
    %v2005 = vpop.f32.mrb[0].mxu0
    %v2006 = vadd.f32 0.0, %v2005
    %v2007 = vpop.f32.mrb[0].mxu0
    %v2008 = vadd.f32 0.0, %v2007
    %v2009 = vpop.f32.mrb[0].mxu0
    %v2010 = vadd.f32 0.0, %v2009
    %2011 = vmatprep.mubr.bf16.mxu0 %v1252
    %2012 = vmatmul.mubr.bf16.gmra.mrb[0].mxu0 %v1251
    %v2013 = vpop.f32.mrb[0].mxu0
    %v2014 = vadd.f32 0.0, %v2013
    %v2015 = vpop.f32.mrb[0].mxu0
    %v2016 = vadd.f32 0.0, %v2015
    %v2017 = vpop.f32.mrb[0].mxu0
    %v2018 = vadd.f32 0.0, %v2017
    %v2019 = vpop.f32.mrb[0].mxu0
    %v2020 = vadd.f32 0.0, %v2019
    %2021 = vdwg.mxu0
    %2022 = vmatprep.subr.bf16.mxu0 %v1390
    %2023 = vmatpush1.bf16.msra.mxu0 %v1389
    %2024 = vmatprep.subr.bf16.mxu0 %v1398
    %2025 = vmatpush1.bf16.msra.mxu0 %v1397
    %2026 = vmatprep.subr.bf16.mxu0 %v1406
    %2027 = vmatpush1.bf16.msra.mxu0 %v1405
    %2028 = vmatprep.subr.bf16.mxu0 %v1414
    %2029 = vmatpush1.bf16.msra.mxu0 %v1413
    %2030 = vmatprep.subr.bf16.mxu0 %v1422
    %2031 = vmatpush1.bf16.msra.mxu0 %v1421
    %2032 = vmatprep.subr.bf16.mxu0 %v1430
    %2033 = vmatpush1.bf16.msra.mxu0 %v1429
    %2034 = vmatprep.subr.bf16.mxu0 %v1438
    %2035 = vmatpush1.bf16.msra.mxu0 %v1437
    %2036 = vmatprep.subr.bf16.mxu0 %v1446
    %2037 = vmatpush1.bf16.msra.mxu0 %v1445
    %2038 = vmatprep.subr.bf16.mxu0 %v1454
    %2039 = vmatpush1.bf16.msra.mxu0 %v1453
    %2040 = vmatprep.subr.bf16.mxu0 %v1462
    %2041 = vmatpush1.bf16.msra.mxu0 %v1461
    %2042 = vmatprep.subr.bf16.mxu0 %v1470
    %2043 = vmatpush1.bf16.msra.mxu0 %v1469
    %2044 = vmatprep.subr.bf16.mxu0 %v1478
    %2045 = vmatpush1.bf16.msra.mxu0 %v1477
    %2046 = vmatprep.subr.bf16.mxu0 %v1486
    %2047 = vmatpush1.bf16.msra.mxu0 %v1485
    %2048 = vmatprep.subr.bf16.mxu0 %v1494
    %2049 = vmatpush1.bf16.msra.mxu0 %v1493
    %2050 = vmatprep.subr.bf16.mxu0 %v1502
    %2051 = vmatpush1.bf16.msra.mxu0 %v1501
    %2052 = vmatprep.subr.bf16.mxu0 %v1510
    %2053 = vmatpush1.bf16.msra.mxu0 %v1509
    %2054 = vmatprep.mubr.bf16.mxu0 %v1242
    %2055 = vmatmul.mubr.bf16.gmra.mrb[0].mxu0 %v1241
    %v2056 = vpop.f32.mrb[0].mxu0
    %v2057 = vadd.f32 %v1984, %v2056
    %v2058 = vpop.f32.mrb[0].mxu0
    %v2059 = vadd.f32 %v1986, %v2058
    %v2060 = vpop.f32.mrb[0].mxu0
    %v2061 = vadd.f32 %v1988, %v2060
    %v2062 = vpop.f32.mrb[0].mxu0
    %v2063 = vadd.f32 %v1990, %v2062
    %2064 = vmatprep.mubr.bf16.mxu0 %v1246
    %2065 = vmatmul.mubr.bf16.gmra.mrb[0].mxu0 %v1245
    %v2066 = vpop.f32.mrb[0].mxu0
    %v2067 = vadd.f32 %v1994, %v2066
    %v2068 = vpop.f32.mrb[0].mxu0
    %v2069 = vadd.f32 %v1996, %v2068
    %v2070 = vpop.f32.mrb[0].mxu0
    %v2071 = vadd.f32 %v1998, %v2070
    %v2072 = vpop.f32.mrb[0].mxu0
    %v2073 = vadd.f32 %v2000, %v2072
    %2074 = vmatprep.mubr.bf16.mxu0 %v1250
    %2075 = vmatmul.mubr.bf16.gmra.mrb[0].mxu0 %v1249
    %v2076 = vpop.f32.mrb[0].mxu0
    %v2077 = vadd.f32 %v2004, %v2076
    %v2078 = vpop.f32.mrb[0].mxu0
    %v2079 = vadd.f32 %v2006, %v2078
    %v2080 = vpop.f32.mrb[0].mxu0
    %v2081 = vadd.f32 %v2008, %v2080
    %v2082 = vpop.f32.mrb[0].mxu0
    %v2083 = vadd.f32 %v2010, %v2082
    %2084 = vmatprep.mubr.bf16.mxu0 %v1254
    %2085 = vmatmul.mubr.bf16.gmra.mrb[0].mxu0 %v1253
    %v2086 = vpop.f32.mrb[0].mxu0
    %v2087 = vadd.f32 %v2014, %v2086
    %v2088 = vpop.f32.mrb[0].mxu0
    %v2089 = vadd.f32 %v2016, %v2088
    %v2090 = vpop.f32.mrb[0].mxu0
    %v2091 = vadd.f32 %v2018, %v2090
    %v2092 = vpop.f32.mrb[0].mxu0
    %v2093 = vadd.f32 %v2020, %v2092
    %2094 = vdwg.mxu0
    %v2095 = vadd.f32 %v1619, %v1623
    %v2096 = vadd.f32 %v2095, %v1629
    %v2097 = vadd.f32 %v2096, %v1633
    %v2098 = vadd.f32 %v2097, %v1639
    %v2099 = vadd.f32 %v2098, %v1643
    %v2100 = vadd.f32 %v2099, %v1649
    %v2101 = vadd.f32 %v2100, %v1653
    %v2102 = vrot.slane %v2101, 4
    %v2103 = vadd.f32 %v2101, %v2102
    %v2104 = vrot.slane %v2103, 2
    %v2105 = vadd.f32 %v2103, %v2104
    %v2106 = vrot.slane %v2105, 1
    %v2107 = vadd.f32 %v2105, %v2106
    %v2108 = vadd.f32 %v1621, %v1625
    %v2109 = vadd.f32 %v2108, %v1631
    %v2110 = vadd.f32 %v2109, %v1635
    %v2111 = vadd.f32 %v2110, %v1641
    %v2112 = vadd.f32 %v2111, %v1645
    %v2113 = vadd.f32 %v2112, %v1651
    %v2114 = vadd.f32 %v2113, %v1655
    %v2115 = vrot.slane %v2114, 4
    %v2116 = vadd.f32 %v2114, %v2115
    %v2117 = vrot.slane %v2116, 2
    %v2118 = vadd.f32 %v2116, %v2117
    %v2119 = vrot.slane %v2118, 1
    %v2120 = vadd.f32 %v2118, %v2119
    %v2121 = vadd.f32 %v1765, %v1769
    %v2122 = vadd.f32 %v2121, %v1775
    %v2123 = vadd.f32 %v2122, %v1779
    %v2124 = vadd.f32 %v2123, %v1785
    %v2125 = vadd.f32 %v2124, %v1789
    %v2126 = vadd.f32 %v2125, %v1795
    %v2127 = vadd.f32 %v2126, %v1799
    %v2128 = vrot.slane %v2127, 4
    %v2129 = vadd.f32 %v2127, %v2128
    %v2130 = vrot.slane %v2129, 2
    %v2131 = vadd.f32 %v2129, %v2130
    %v2132 = vrot.slane %v2131, 1
    %v2133 = vadd.f32 %v2131, %v2132
    %v2134 = vadd.f32 %v1767, %v1771
    %v2135 = vadd.f32 %v2134, %v1777
    %v2136 = vadd.f32 %v2135, %v1781
    %v2137 = vadd.f32 %v2136, %v1787
    %v2138 = vadd.f32 %v2137, %v1791
    %v2139 = vadd.f32 %v2138, %v1797
    %v2140 = vadd.f32 %v2139, %v1801
    %v2141 = vrot.slane %v2140, 4
    %v2142 = vadd.f32 %v2140, %v2141
    %v2143 = vrot.slane %v2142, 2
    %v2144 = vadd.f32 %v2142, %v2143
    %v2145 = vrot.slane %v2144, 1
    %v2146 = vadd.f32 %v2144, %v2145
    %v2147 = vadd.f32 %v1911, %v1915
    %v2148 = vadd.f32 %v2147, %v1921
    %v2149 = vadd.f32 %v2148, %v1925
    %v2150 = vadd.f32 %v2149, %v1931
    %v2151 = vadd.f32 %v2150, %v1935
    %v2152 = vadd.f32 %v2151, %v1941
    %v2153 = vadd.f32 %v2152, %v1945
    %v2154 = vrot.slane %v2153, 4
    %v2155 = vadd.f32 %v2153, %v2154
    %v2156 = vrot.slane %v2155, 2
    %v2157 = vadd.f32 %v2155, %v2156
    %v2158 = vrot.slane %v2157, 1
    %v2159 = vadd.f32 %v2157, %v2158
    %v2160 = vadd.f32 %v1913, %v1917
    %v2161 = vadd.f32 %v2160, %v1923
    %v2162 = vadd.f32 %v2161, %v1927
    %v2163 = vadd.f32 %v2162, %v1933
    %v2164 = vadd.f32 %v2163, %v1937
    %v2165 = vadd.f32 %v2164, %v1943
    %v2166 = vadd.f32 %v2165, %v1947
    %v2167 = vrot.slane %v2166, 4
    %v2168 = vadd.f32 %v2166, %v2167
    %v2169 = vrot.slane %v2168, 2
    %v2170 = vadd.f32 %v2168, %v2169
    %v2171 = vrot.slane %v2170, 1
    %v2172 = vadd.f32 %v2170, %v2171
    %v2173 = vadd.f32 %v2057, %v2061
    %v2174 = vadd.f32 %v2173, %v2067
    %v2175 = vadd.f32 %v2174, %v2071
    %v2176 = vadd.f32 %v2175, %v2077
    %v2177 = vadd.f32 %v2176, %v2081
    %v2178 = vadd.f32 %v2177, %v2087
    %v2179 = vadd.f32 %v2178, %v2091
    %v2180 = vrot.slane %v2179, 4
    %v2181 = vadd.f32 %v2179, %v2180
    %v2182 = vrot.slane %v2181, 2
    %v2183 = vadd.f32 %v2181, %v2182
    %v2184 = vrot.slane %v2183, 1
    %v2185 = vadd.f32 %v2183, %v2184
    %v2186 = vadd.f32 %v2059, %v2063
    %v2187 = vadd.f32 %v2186, %v2069
    %v2188 = vadd.f32 %v2187, %v2073
    %v2189 = vadd.f32 %v2188, %v2079
    %v2190 = vadd.f32 %v2189, %v2083
    %v2191 = vadd.f32 %v2190, %v2089
    %v2192 = vadd.f32 %v2191, %v2093
    %v2193 = vrot.slane %v2192, 4
    %v2194 = vadd.f32 %v2192, %v2193
    %v2195 = vrot.slane %v2194, 2
    %v2196 = vadd.f32 %v2194, %v2195
    %v2197 = vrot.slane %v2196, 1
    %v2198 = vadd.f32 %v2196, %v2197
    %v2199 = vmul.f32 %v2107, %v476
    %v2200 = vmul.f32 %v2120, %v476
    %v2201 = vmul.f32 %v2133, %v476
    %v2202 = vmul.f32 %v2146, %v476
    %v2203 = vmul.f32 %v2159, %v476
    %v2204 = vmul.f32 %v2172, %v476
    %v2205 = vmul.f32 %v2185, %v476
    %v2206 = vmul.f32 %v2198, %v476
    %v2207 = vsub.f32 %v1619, %v2199
    %v2208 = vsub.f32 %v1621, %v2200
    %v2209 = vsub.f32 %v1765, %v2201
    %v2210 = vsub.f32 %v1767, %v2202
    %v2211 = vsub.f32 %v1911, %v2203
    %v2212 = vsub.f32 %v1913, %v2204
    %v2213 = vsub.f32 %v2057, %v2205
    %v2214 = vsub.f32 %v2059, %v2206
    %v2215 = vsub.f32 %v1623, %v2199
    %v2216 = vsub.f32 %v1625, %v2200
    %v2217 = vsub.f32 %v1769, %v2201
    %v2218 = vsub.f32 %v1771, %v2202
    %v2219 = vsub.f32 %v1915, %v2203
    %v2220 = vsub.f32 %v1917, %v2204
    %v2221 = vsub.f32 %v2061, %v2205
    %v2222 = vsub.f32 %v2063, %v2206
    %v2223 = vsub.f32 %v1629, %v2199
    %v2224 = vsub.f32 %v1631, %v2200
    %v2225 = vsub.f32 %v1775, %v2201
    %v2226 = vsub.f32 %v1777, %v2202
    %v2227 = vsub.f32 %v1921, %v2203
    %v2228 = vsub.f32 %v1923, %v2204
    %v2229 = vsub.f32 %v2067, %v2205
    %v2230 = vsub.f32 %v2069, %v2206
    %v2231 = vsub.f32 %v1633, %v2199
    %v2232 = vsub.f32 %v1635, %v2200
    %v2233 = vsub.f32 %v1779, %v2201
    %v2234 = vsub.f32 %v1781, %v2202
    %v2235 = vsub.f32 %v1925, %v2203
    %v2236 = vsub.f32 %v1927, %v2204
    %v2237 = vsub.f32 %v2071, %v2205
    %v2238 = vsub.f32 %v2073, %v2206
    %v2239 = vsub.f32 %v1639, %v2199
    %v2240 = vsub.f32 %v1641, %v2200
    %v2241 = vsub.f32 %v1785, %v2201
    %v2242 = vsub.f32 %v1787, %v2202
    %v2243 = vsub.f32 %v1931, %v2203
    %v2244 = vsub.f32 %v1933, %v2204
    %v2245 = vsub.f32 %v2077, %v2205
    %v2246 = vsub.f32 %v2079, %v2206
    %v2247 = vsub.f32 %v1643, %v2199
    %v2248 = vsub.f32 %v1645, %v2200
    %v2249 = vsub.f32 %v1789, %v2201
    %v2250 = vsub.f32 %v1791, %v2202
    %v2251 = vsub.f32 %v1935, %v2203
    %v2252 = vsub.f32 %v1937, %v2204
    %v2253 = vsub.f32 %v2081, %v2205
    %v2254 = vsub.f32 %v2083, %v2206
    %v2255 = vsub.f32 %v1649, %v2199
    %v2256 = vsub.f32 %v1651, %v2200
    %v2257 = vsub.f32 %v1795, %v2201
    %v2258 = vsub.f32 %v1797, %v2202
    %v2259 = vsub.f32 %v1941, %v2203
    %v2260 = vsub.f32 %v1943, %v2204
    %v2261 = vsub.f32 %v2087, %v2205
    %v2262 = vsub.f32 %v2089, %v2206
    %v2263 = vsub.f32 %v1653, %v2199
    %v2264 = vsub.f32 %v1655, %v2200
    %v2265 = vsub.f32 %v1799, %v2201
    %v2266 = vsub.f32 %v1801, %v2202
    %v2267 = vsub.f32 %v1945, %v2203
    %v2268 = vsub.f32 %v1947, %v2204
    %v2269 = vsub.f32 %v2091, %v2205
    %v2270 = vsub.f32 %v2093, %v2206
    %v2271 = vmul.f32 %v2207, %v2207
    %v2272 = vmul.f32 %v2208, %v2208
    %v2273 = vmul.f32 %v2209, %v2209
    %v2274 = vmul.f32 %v2210, %v2210
    %v2275 = vmul.f32 %v2211, %v2211
    %v2276 = vmul.f32 %v2212, %v2212
    %v2277 = vmul.f32 %v2213, %v2213
    %v2278 = vmul.f32 %v2214, %v2214
    %v2279 = vmul.f32 %v2215, %v2215
    %v2280 = vmul.f32 %v2216, %v2216
    %v2281 = vmul.f32 %v2217, %v2217
    %v2282 = vmul.f32 %v2218, %v2218
    %v2283 = vmul.f32 %v2219, %v2219
    %v2284 = vmul.f32 %v2220, %v2220
    %v2285 = vmul.f32 %v2221, %v2221
    %v2286 = vmul.f32 %v2222, %v2222
    %v2287 = vmul.f32 %v2223, %v2223
    %v2288 = vmul.f32 %v2224, %v2224
    %v2289 = vmul.f32 %v2225, %v2225
    %v2290 = vmul.f32 %v2226, %v2226
    %v2291 = vmul.f32 %v2227, %v2227
    %v2292 = vmul.f32 %v2228, %v2228
    %v2293 = vmul.f32 %v2229, %v2229
    %v2294 = vmul.f32 %v2230, %v2230
    %v2295 = vmul.f32 %v2231, %v2231
    %v2296 = vmul.f32 %v2232, %v2232
    %v2297 = vmul.f32 %v2233, %v2233
    %v2298 = vmul.f32 %v2234, %v2234
    %v2299 = vmul.f32 %v2235, %v2235
    %v2300 = vmul.f32 %v2236, %v2236
    %v2301 = vmul.f32 %v2237, %v2237
    %v2302 = vmul.f32 %v2238, %v2238
    %v2303 = vmul.f32 %v2239, %v2239
    %v2304 = vmul.f32 %v2240, %v2240
    %v2305 = vmul.f32 %v2241, %v2241
    %v2306 = vmul.f32 %v2242, %v2242
    %v2307 = vmul.f32 %v2243, %v2243
    %v2308 = vmul.f32 %v2244, %v2244
    %v2309 = vmul.f32 %v2245, %v2245
    %v2310 = vmul.f32 %v2246, %v2246
    %v2311 = vmul.f32 %v2247, %v2247
    %v2312 = vmul.f32 %v2248, %v2248
    %v2313 = vmul.f32 %v2249, %v2249
    %v2314 = vmul.f32 %v2250, %v2250
    %v2315 = vmul.f32 %v2251, %v2251
    %v2316 = vmul.f32 %v2252, %v2252
    %v2317 = vmul.f32 %v2253, %v2253
    %v2318 = vmul.f32 %v2254, %v2254
    %v2319 = vmul.f32 %v2255, %v2255
    %v2320 = vmul.f32 %v2256, %v2256
    %v2321 = vmul.f32 %v2257, %v2257
    %v2322 = vmul.f32 %v2258, %v2258
    %v2323 = vmul.f32 %v2259, %v2259
    %v2324 = vmul.f32 %v2260, %v2260
    %v2325 = vmul.f32 %v2261, %v2261
    %v2326 = vmul.f32 %v2262, %v2262
    %v2327 = vmul.f32 %v2263, %v2263
    %v2328 = vmul.f32 %v2264, %v2264
    %v2329 = vmul.f32 %v2265, %v2265
    %v2330 = vmul.f32 %v2266, %v2266
    %v2331 = vmul.f32 %v2267, %v2267
    %v2332 = vmul.f32 %v2268, %v2268
    %v2333 = vmul.f32 %v2269, %v2269
    %v2334 = vmul.f32 %v2270, %v2270
    %v2335 = vadd.f32 %v2271, %v2279
    %v2336 = vadd.f32 %v2335, %v2287
    %v2337 = vadd.f32 %v2336, %v2295
    %v2338 = vadd.f32 %v2337, %v2303
    %v2339 = vadd.f32 %v2338, %v2311
    %v2340 = vadd.f32 %v2339, %v2319
    %v2341 = vadd.f32 %v2340, %v2327
    %v2342 = vrot.slane %v2341, 4
    %v2343 = vadd.f32 %v2341, %v2342
    %v2344 = vrot.slane %v2343, 2
    %v2345 = vadd.f32 %v2343, %v2344
    %v2346 = vrot.slane %v2345, 1
    %v2347 = vadd.f32 %v2345, %v2346
    %v2348 = vadd.f32 %v2272, %v2280
    %v2349 = vadd.f32 %v2348, %v2288
    %v2350 = vadd.f32 %v2349, %v2296
    %v2351 = vadd.f32 %v2350, %v2304
    %v2352 = vadd.f32 %v2351, %v2312
    %v2353 = vadd.f32 %v2352, %v2320
    %v2354 = vadd.f32 %v2353, %v2328
    %v2355 = vrot.slane %v2354, 4
    %v2356 = vadd.f32 %v2354, %v2355
    %v2357 = vrot.slane %v2356, 2
    %v2358 = vadd.f32 %v2356, %v2357
    %v2359 = vrot.slane %v2358, 1
    %v2360 = vadd.f32 %v2358, %v2359
    %v2361 = vadd.f32 %v2273, %v2281
    %v2362 = vadd.f32 %v2361, %v2289
    %v2363 = vadd.f32 %v2362, %v2297
    %v2364 = vadd.f32 %v2363, %v2305
    %v2365 = vadd.f32 %v2364, %v2313
    %v2366 = vadd.f32 %v2365, %v2321
    %v2367 = vadd.f32 %v2366, %v2329
    %v2368 = vrot.slane %v2367, 4
    %v2369 = vadd.f32 %v2367, %v2368
    %v2370 = vrot.slane %v2369, 2
    %v2371 = vadd.f32 %v2369, %v2370
    %v2372 = vrot.slane %v2371, 1
    %v2373 = vadd.f32 %v2371, %v2372
    %v2374 = vadd.f32 %v2274, %v2282
    %v2375 = vadd.f32 %v2374, %v2290
    %v2376 = vadd.f32 %v2375, %v2298
    %v2377 = vadd.f32 %v2376, %v2306
    %v2378 = vadd.f32 %v2377, %v2314
    %v2379 = vadd.f32 %v2378, %v2322
    %v2380 = vadd.f32 %v2379, %v2330
    %v2381 = vrot.slane %v2380, 4
    %v2382 = vadd.f32 %v2380, %v2381
    %v2383 = vrot.slane %v2382, 2
    %v2384 = vadd.f32 %v2382, %v2383
    %v2385 = vrot.slane %v2384, 1
    %v2386 = vadd.f32 %v2384, %v2385
    %v2387 = vadd.f32 %v2275, %v2283
    %v2388 = vadd.f32 %v2387, %v2291
    %v2389 = vadd.f32 %v2388, %v2299
    %v2390 = vadd.f32 %v2389, %v2307
    %v2391 = vadd.f32 %v2390, %v2315
    %v2392 = vadd.f32 %v2391, %v2323
    %v2393 = vadd.f32 %v2392, %v2331
    %v2394 = vrot.slane %v2393, 4
    %v2395 = vadd.f32 %v2393, %v2394
    %v2396 = vrot.slane %v2395, 2
    %v2397 = vadd.f32 %v2395, %v2396
    %v2398 = vrot.slane %v2397, 1
    %v2399 = vadd.f32 %v2397, %v2398
    %v2400 = vadd.f32 %v2276, %v2284
    %v2401 = vadd.f32 %v2400, %v2292
    %v2402 = vadd.f32 %v2401, %v2300
    %v2403 = vadd.f32 %v2402, %v2308
    %v2404 = vadd.f32 %v2403, %v2316
    %v2405 = vadd.f32 %v2404, %v2324
    %v2406 = vadd.f32 %v2405, %v2332
    %v2407 = vrot.slane %v2406, 4
    %v2408 = vadd.f32 %v2406, %v2407
    %v2409 = vrot.slane %v2408, 2
    %v2410 = vadd.f32 %v2408, %v2409
    %v2411 = vrot.slane %v2410, 1
    %v2412 = vadd.f32 %v2410, %v2411
    %v2413 = vadd.f32 %v2277, %v2285
    %v2414 = vadd.f32 %v2413, %v2293
    %v2415 = vadd.f32 %v2414, %v2301
    %v2416 = vadd.f32 %v2415, %v2309
    %v2417 = vadd.f32 %v2416, %v2317
    %v2418 = vadd.f32 %v2417, %v2325
    %v2419 = vadd.f32 %v2418, %v2333
    %v2420 = vrot.slane %v2419, 4
    %v2421 = vadd.f32 %v2419, %v2420
    %v2422 = vrot.slane %v2421, 2
    %v2423 = vadd.f32 %v2421, %v2422
    %v2424 = vrot.slane %v2423, 1
    %v2425 = vadd.f32 %v2423, %v2424
    %v2426 = vadd.f32 %v2278, %v2286
    %v2427 = vadd.f32 %v2426, %v2294
    %v2428 = vadd.f32 %v2427, %v2302
    %v2429 = vadd.f32 %v2428, %v2310
    %v2430 = vadd.f32 %v2429, %v2318
    %v2431 = vadd.f32 %v2430, %v2326
    %v2432 = vadd.f32 %v2431, %v2334
    %v2433 = vrot.slane %v2432, 4
    %v2434 = vadd.f32 %v2432, %v2433
    %v2435 = vrot.slane %v2434, 2
    %v2436 = vadd.f32 %v2434, %v2435
    %v2437 = vrot.slane %v2436, 1
    %v2438 = vadd.f32 %v2436, %v2437
    %v2439 = vmul.f32 %v2347, %v476
    %v2440 = vmul.f32 %v2360, %v476
    %v2441 = vmul.f32 %v2373, %v476
    %v2442 = vmul.f32 %v2386, %v476
    %v2443 = vmul.f32 %v2399, %v476
    %v2444 = vmul.f32 %v2412, %v476
    %v2445 = vmul.f32 %v2425, %v476
    %v2446 = vmul.f32 %v2438, %v476
    %v2447 = vadd.f32 %v2439, 0.8
    %v2448 = vadd.f32 %v2440, 0.8
    %v2449 = vadd.f32 %v2441, 0.8
    %v2450 = vadd.f32 %v2442, 0.8
    %v2451 = vadd.f32 %v2443, 0.8
    %v2452 = vadd.f32 %v2444, 0.8
    %v2453 = vadd.f32 %v2445, 0.8
    %v2454 = vadd.f32 %v2446, 0.8
    %v2455 = vrsqrt.pop %v2447
    %v2456 = vrsqrt.pop %v2448
    %v2457 = vrsqrt.pop %v2449
    %v2458 = vrsqrt.pop %v2450
    %v2459 = vrsqrt.pop %v2451
    %v2460 = vrsqrt.pop %v2452
    %v2461 = vrsqrt.pop %v2453
    %v2462 = vrsqrt.pop %v2454
    %v2464 = vlaneseq
    %v2465 = vshrl.u32 %v2464, 7
    %v2466 = vsub.s32 0, %v2465
    %v2467 = vrot.slane %v146, %v2466
    %v2468 = vlaneseq
    %v2469 = vshrl.u32 %v2468, 7
    %v2470 = vsub.s32 1, %v2469
    %v2471 = vrot.slane %v146, %v2470
    %v2472 = vlaneseq
    %v2473 = vshrl.u32 %v2472, 7
    %v2474 = vsub.s32 2, %v2473
    %v2475 = vrot.slane %v146, %v2474
    %v2476 = vlaneseq
    %v2477 = vshrl.u32 %v2476, 7
    %v2478 = vsub.s32 3, %v2477
    %v2479 = vrot.slane %v146, %v2478
    %v2480 = vlaneseq
    %v2481 = vshrl.u32 %v2480, 7
    %v2482 = vsub.s32 4, %v2481
    %v2483 = vrot.slane %v146, %v2482
    %v2484 = vlaneseq
    %v2485 = vshrl.u32 %v2484, 7
    %v2486 = vsub.s32 5, %v2485
    %v2487 = vrot.slane %v146, %v2486
    %v2488 = vlaneseq
    %v2489 = vshrl.u32 %v2488, 7
    %v2490 = vsub.s32 6, %v2489
    %v2491 = vrot.slane %v146, %v2490
    %v2492 = vlaneseq
    %v2493 = vshrl.u32 %v2492, 7
    %v2494 = vsub.s32 7, %v2493
    %v2495 = vrot.slane %v146, %v2494
    %v2504 = vmul.f32 %v2455, %v2467
    %v2505 = vmul.f32 %v2456, %v2471
    %v2506 = vmul.f32 %v2457, %v2475
    %v2507 = vmul.f32 %v2458, %v2479
    %v2508 = vmul.f32 %v2459, %v2483
    %v2509 = vmul.f32 %v2460, %v2487
    %v2510 = vmul.f32 %v2461, %v2491
    %v2511 = vmul.f32 %v2462, %v2495
    %v2512 = vlaneseq
    %v2513 = vshrl.u32 %v2512, 7
    %v2514 = vsub.s32 0, %v2513
    %v2515 = vrot.slane %v2504, %v2514
    %v2516 = vlaneseq
    %v2517 = vshrl.u32 %v2516, 7
    %v2518 = vsub.s32 0, %v2517
    %v2519 = vrot.slane %v2505, %v2518
    %v2520 = vlaneseq
    %v2521 = vshrl.u32 %v2520, 7
    %v2522 = vsub.s32 0, %v2521
    %v2523 = vrot.slane %v2506, %v2522
    %v2524 = vlaneseq
    %v2525 = vshrl.u32 %v2524, 7
    %v2526 = vsub.s32 0, %v2525
    %v2527 = vrot.slane %v2507, %v2526
    %v2528 = vlaneseq
    %v2529 = vshrl.u32 %v2528, 7
    %v2530 = vsub.s32 0, %v2529
    %v2531 = vrot.slane %v2508, %v2530
    %v2532 = vlaneseq
    %v2533 = vshrl.u32 %v2532, 7
    %v2534 = vsub.s32 0, %v2533
    %v2535 = vrot.slane %v2509, %v2534
    %v2536 = vlaneseq
    %v2537 = vshrl.u32 %v2536, 7
    %v2538 = vsub.s32 0, %v2537
    %v2539 = vrot.slane %v2510, %v2538
    %v2540 = vlaneseq
    %v2541 = vshrl.u32 %v2540, 7
    %v2542 = vsub.s32 0, %v2541
    %v2543 = vrot.slane %v2511, %v2542
    %v2544 = vmul.f32 %v2207, %v2515
    %v2545 = vmul.f32 %v2208, %v2519
    %v2546 = vmul.f32 %v2209, %v2523
    %v2547 = vmul.f32 %v2210, %v2527
    %v2548 = vmul.f32 %v2211, %v2531
    %v2549 = vmul.f32 %v2212, %v2535
    %v2550 = vmul.f32 %v2213, %v2539
    %v2551 = vmul.f32 %v2214, %v2543
    %v2552 = vmul.f32 %v2215, %v2515
    %v2553 = vmul.f32 %v2216, %v2519
    %v2554 = vmul.f32 %v2217, %v2523
    %v2555 = vmul.f32 %v2218, %v2527
    %v2556 = vmul.f32 %v2219, %v2531
    %v2557 = vmul.f32 %v2220, %v2535
    %v2558 = vmul.f32 %v2221, %v2539
    %v2559 = vmul.f32 %v2222, %v2543
    %v2560 = vmul.f32 %v2223, %v2515
    %v2561 = vmul.f32 %v2224, %v2519
    %v2562 = vmul.f32 %v2225, %v2523
    %v2563 = vmul.f32 %v2226, %v2527
    %v2564 = vmul.f32 %v2227, %v2531
    %v2565 = vmul.f32 %v2228, %v2535
    %v2566 = vmul.f32 %v2229, %v2539
    %v2567 = vmul.f32 %v2230, %v2543
    %v2568 = vmul.f32 %v2231, %v2515
    %v2569 = vmul.f32 %v2232, %v2519
    %v2570 = vmul.f32 %v2233, %v2523
    %v2571 = vmul.f32 %v2234, %v2527
    %v2572 = vmul.f32 %v2235, %v2531
    %v2573 = vmul.f32 %v2236, %v2535
    %v2574 = vmul.f32 %v2237, %v2539
    %v2575 = vmul.f32 %v2238, %v2543
    %v2576 = vmul.f32 %v2239, %v2515
    %v2577 = vmul.f32 %v2240, %v2519
    %v2578 = vmul.f32 %v2241, %v2523
    %v2579 = vmul.f32 %v2242, %v2527
    %v2580 = vmul.f32 %v2243, %v2531
    %v2581 = vmul.f32 %v2244, %v2535
    %v2582 = vmul.f32 %v2245, %v2539
    %v2583 = vmul.f32 %v2246, %v2543
    %v2584 = vmul.f32 %v2247, %v2515
    %v2585 = vmul.f32 %v2248, %v2519
    %v2586 = vmul.f32 %v2249, %v2523
    %v2587 = vmul.f32 %v2250, %v2527
    %v2588 = vmul.f32 %v2251, %v2531
    %v2589 = vmul.f32 %v2252, %v2535
    %v2590 = vmul.f32 %v2253, %v2539
    %v2591 = vmul.f32 %v2254, %v2543
    %v2592 = vmul.f32 %v2255, %v2515
    %v2593 = vmul.f32 %v2256, %v2519
    %v2594 = vmul.f32 %v2257, %v2523
    %v2595 = vmul.f32 %v2258, %v2527
    %v2596 = vmul.f32 %v2259, %v2531
    %v2597 = vmul.f32 %v2260, %v2535
    %v2598 = vmul.f32 %v2261, %v2539
    %v2599 = vmul.f32 %v2262, %v2543
    %v2600 = vmul.f32 %v2263, %v2515
    %v2601 = vmul.f32 %v2264, %v2519
    %v2602 = vmul.f32 %v2265, %v2523
    %v2603 = vmul.f32 %v2266, %v2527
    %v2604 = vmul.f32 %v2267, %v2531
    %v2605 = vmul.f32 %v2268, %v2535
    %v2606 = vmul.f32 %v2269, %v2539
    %v2607 = vmul.f32 %v2270, %v2543
    %v2609 = vlaneseq
    %v2610 = vshrl.u32 %v2609, 7
    %v2611 = vsub.s32 0, %v2610
    %v2612 = vrot.slane %v147, %v2611
    %v2613 = vlaneseq
    %v2614 = vshrl.u32 %v2613, 7
    %v2615 = vsub.s32 1, %v2614
    %v2616 = vrot.slane %v147, %v2615
    %v2617 = vlaneseq
    %v2618 = vshrl.u32 %v2617, 7
    %v2619 = vsub.s32 2, %v2618
    %v2620 = vrot.slane %v147, %v2619
    %v2621 = vlaneseq
    %v2622 = vshrl.u32 %v2621, 7
    %v2623 = vsub.s32 3, %v2622
    %v2624 = vrot.slane %v147, %v2623
    %v2625 = vlaneseq
    %v2626 = vshrl.u32 %v2625, 7
    %v2627 = vsub.s32 4, %v2626
    %v2628 = vrot.slane %v147, %v2627
    %v2629 = vlaneseq
    %v2630 = vshrl.u32 %v2629, 7
    %v2631 = vsub.s32 5, %v2630
    %v2632 = vrot.slane %v147, %v2631
    %v2633 = vlaneseq
    %v2634 = vshrl.u32 %v2633, 7
    %v2635 = vsub.s32 6, %v2634
    %v2636 = vrot.slane %v147, %v2635
    %v2637 = vlaneseq
    %v2638 = vshrl.u32 %v2637, 7
    %v2639 = vsub.s32 7, %v2638
    %v2640 = vrot.slane %v147, %v2639
    %v2649 = vadd.f32 %v2544, %v2612
    %v2650 = vadd.f32 %v2545, %v2616
    %v2651 = vadd.f32 %v2546, %v2620
    %v2652 = vadd.f32 %v2547, %v2624
    %v2653 = vadd.f32 %v2548, %v2628
    %v2654 = vadd.f32 %v2549, %v2632
    %v2655 = vadd.f32 %v2550, %v2636
    %v2656 = vadd.f32 %v2551, %v2640
    %v2657 = vadd.f32 %v2552, %v2612
    %v2658 = vadd.f32 %v2553, %v2616
    %v2659 = vadd.f32 %v2554, %v2620
    %v2660 = vadd.f32 %v2555, %v2624
    %v2661 = vadd.f32 %v2556, %v2628
    %v2662 = vadd.f32 %v2557, %v2632
    %v2663 = vadd.f32 %v2558, %v2636
    %v2664 = vadd.f32 %v2559, %v2640
    %v2665 = vadd.f32 %v2560, %v2612
    %v2666 = vadd.f32 %v2561, %v2616
    %v2667 = vadd.f32 %v2562, %v2620
    %v2668 = vadd.f32 %v2563, %v2624
    %v2669 = vadd.f32 %v2564, %v2628
    %v2670 = vadd.f32 %v2565, %v2632
    %v2671 = vadd.f32 %v2566, %v2636
    %v2672 = vadd.f32 %v2567, %v2640
    %v2673 = vadd.f32 %v2568, %v2612
    %v2674 = vadd.f32 %v2569, %v2616
    %v2675 = vadd.f32 %v2570, %v2620
    %v2676 = vadd.f32 %v2571, %v2624
    %v2677 = vadd.f32 %v2572, %v2628
    %v2678 = vadd.f32 %v2573, %v2632
    %v2679 = vadd.f32 %v2574, %v2636
    %v2680 = vadd.f32 %v2575, %v2640
    %v2681 = vadd.f32 %v2576, %v2612
    %v2682 = vadd.f32 %v2577, %v2616
    %v2683 = vadd.f32 %v2578, %v2620
    %v2684 = vadd.f32 %v2579, %v2624
    %v2685 = vadd.f32 %v2580, %v2628
    %v2686 = vadd.f32 %v2581, %v2632
    %v2687 = vadd.f32 %v2582, %v2636
    %v2688 = vadd.f32 %v2583, %v2640
    %v2689 = vadd.f32 %v2584, %v2612
    %v2690 = vadd.f32 %v2585, %v2616
    %v2691 = vadd.f32 %v2586, %v2620
    %v2692 = vadd.f32 %v2587, %v2624
    %v2693 = vadd.f32 %v2588, %v2628
    %v2694 = vadd.f32 %v2589, %v2632
    %v2695 = vadd.f32 %v2590, %v2636
    %v2696 = vadd.f32 %v2591, %v2640
    %v2697 = vadd.f32 %v2592, %v2612
    %v2698 = vadd.f32 %v2593, %v2616
    %v2699 = vadd.f32 %v2594, %v2620
    %v2700 = vadd.f32 %v2595, %v2624
    %v2701 = vadd.f32 %v2596, %v2628
    %v2702 = vadd.f32 %v2597, %v2632
    %v2703 = vadd.f32 %v2598, %v2636
    %v2704 = vadd.f32 %v2599, %v2640
    %v2705 = vadd.f32 %v2600, %v2612
    %v2706 = vadd.f32 %v2601, %v2616
    %v2707 = vadd.f32 %v2602, %v2620
    %v2708 = vadd.f32 %v2603, %v2624
    %v2709 = vadd.f32 %v2604, %v2628
    %v2710 = vadd.f32 %v2605, %v2632
    %v2711 = vadd.f32 %v2606, %v2636
    %v2712 = vadd.f32 %v2607, %v2640
    %v2713 = vmul.f32 %v2649, 0.2
    %v2714 = vmul.f32 %v2650, 0.2
    %v2715 = vmul.f32 %v2651, 0.2
    %v2716 = vmul.f32 %v2652, 0.2
    %v2717 = vmul.f32 %v2653, 0.2
    %v2718 = vmul.f32 %v2654, 0.2
    %v2719 = vmul.f32 %v2655, 0.2
    %v2720 = vmul.f32 %v2656, 0.2
    %v2721 = vmul.f32 %v2657, 0.2
    %v2722 = vmul.f32 %v2658, 0.2
    %v2723 = vmul.f32 %v2659, 0.2
    %v2724 = vmul.f32 %v2660, 0.2
    %v2725 = vmul.f32 %v2661, 0.2
    %v2726 = vmul.f32 %v2662, 0.2
    %v2727 = vmul.f32 %v2663, 0.2
    %v2728 = vmul.f32 %v2664, 0.2
    %v2729 = vmul.f32 %v2665, 0.2
    %v2730 = vmul.f32 %v2666, 0.2
    %v2731 = vmul.f32 %v2667, 0.2
    %v2732 = vmul.f32 %v2668, 0.2
    %v2733 = vmul.f32 %v2669, 0.2
    %v2734 = vmul.f32 %v2670, 0.2
    %v2735 = vmul.f32 %v2671, 0.2
    %v2736 = vmul.f32 %v2672, 0.2
    %v2737 = vmul.f32 %v2673, 0.2
    %v2738 = vmul.f32 %v2674, 0.2
    %v2739 = vmul.f32 %v2675, 0.2
    %v2740 = vmul.f32 %v2676, 0.2
    %v2741 = vmul.f32 %v2677, 0.2
    %v2742 = vmul.f32 %v2678, 0.2
    %v2743 = vmul.f32 %v2679, 0.2
    %v2744 = vmul.f32 %v2680, 0.2
    %v2745 = vmul.f32 %v2681, 0.2
    %v2746 = vmul.f32 %v2682, 0.2
    %v2747 = vmul.f32 %v2683, 0.2
    %v2748 = vmul.f32 %v2684, 0.2
    %v2749 = vmul.f32 %v2685, 0.2
    %v2750 = vmul.f32 %v2686, 0.2
    %v2751 = vmul.f32 %v2687, 0.2
    %v2752 = vmul.f32 %v2688, 0.2
    %v2753 = vmul.f32 %v2689, 0.2
    %v2754 = vmul.f32 %v2690, 0.2
    %v2755 = vmul.f32 %v2691, 0.2
    %v2756 = vmul.f32 %v2692, 0.2
    %v2757 = vmul.f32 %v2693, 0.2
    %v2758 = vmul.f32 %v2694, 0.2
    %v2759 = vmul.f32 %v2695, 0.2
    %v2760 = vmul.f32 %v2696, 0.2
    %v2761 = vmul.f32 %v2697, 0.2
    %v2762 = vmul.f32 %v2698, 0.2
    %v2763 = vmul.f32 %v2699, 0.2
    %v2764 = vmul.f32 %v2700, 0.2
    %v2765 = vmul.f32 %v2701, 0.2
    %v2766 = vmul.f32 %v2702, 0.2
    %v2767 = vmul.f32 %v2703, 0.2
    %v2768 = vmul.f32 %v2704, 0.2
    %v2769 = vmul.f32 %v2705, 0.2
    %v2770 = vmul.f32 %v2706, 0.2
    %v2771 = vmul.f32 %v2707, 0.2
    %v2772 = vmul.f32 %v2708, 0.2
    %v2773 = vmul.f32 %v2709, 0.2
    %v2774 = vmul.f32 %v2710, 0.2
    %v2775 = vmul.f32 %v2711, 0.2
    %v2776 = vmul.f32 %v2712, 0.2
    %v2777 = vmax.f32 %v2649, %v2713
    %v2778 = vmax.f32 %v2650, %v2714
    %v2779 = vmax.f32 %v2651, %v2715
    %v2780 = vmax.f32 %v2652, %v2716
    %v2781 = vmax.f32 %v2653, %v2717
    %v2782 = vmax.f32 %v2654, %v2718
    %v2783 = vmax.f32 %v2655, %v2719
    %v2784 = vmax.f32 %v2656, %v2720
    %v2785 = vmax.f32 %v2657, %v2721
    %v2786 = vmax.f32 %v2658, %v2722
    %v2787 = vmax.f32 %v2659, %v2723
    %v2788 = vmax.f32 %v2660, %v2724
    %v2789 = vmax.f32 %v2661, %v2725
    %v2790 = vmax.f32 %v2662, %v2726
    %v2791 = vmax.f32 %v2663, %v2727
    %v2792 = vmax.f32 %v2664, %v2728
    %v2793 = vmax.f32 %v2665, %v2729
    %v2794 = vmax.f32 %v2666, %v2730
    %v2795 = vmax.f32 %v2667, %v2731
    %v2796 = vmax.f32 %v2668, %v2732
    %v2797 = vmax.f32 %v2669, %v2733
    %v2798 = vmax.f32 %v2670, %v2734
    %v2799 = vmax.f32 %v2671, %v2735
    %v2800 = vmax.f32 %v2672, %v2736
    %v2801 = vmax.f32 %v2673, %v2737
    %v2802 = vmax.f32 %v2674, %v2738
    %v2803 = vmax.f32 %v2675, %v2739
    %v2804 = vmax.f32 %v2676, %v2740
    %v2805 = vmax.f32 %v2677, %v2741
    %v2806 = vmax.f32 %v2678, %v2742
    %v2807 = vmax.f32 %v2679, %v2743
    %v2808 = vmax.f32 %v2680, %v2744
    %v2809 = vmax.f32 %v2681, %v2745
    %v2810 = vmax.f32 %v2682, %v2746
    %v2811 = vmax.f32 %v2683, %v2747
    %v2812 = vmax.f32 %v2684, %v2748
    %v2813 = vmax.f32 %v2685, %v2749
    %v2814 = vmax.f32 %v2686, %v2750
    %v2815 = vmax.f32 %v2687, %v2751
    %v2816 = vmax.f32 %v2688, %v2752
    %v2817 = vmax.f32 %v2689, %v2753
    %v2818 = vmax.f32 %v2690, %v2754
    %v2819 = vmax.f32 %v2691, %v2755
    %v2820 = vmax.f32 %v2692, %v2756
    %v2821 = vmax.f32 %v2693, %v2757
    %v2822 = vmax.f32 %v2694, %v2758
    %v2823 = vmax.f32 %v2695, %v2759
    %v2824 = vmax.f32 %v2696, %v2760
    %v2825 = vmax.f32 %v2697, %v2761
    %v2826 = vmax.f32 %v2698, %v2762
    %v2827 = vmax.f32 %v2699, %v2763
    %v2828 = vmax.f32 %v2700, %v2764
    %v2829 = vmax.f32 %v2701, %v2765
    %v2830 = vmax.f32 %v2702, %v2766
    %v2831 = vmax.f32 %v2703, %v2767
    %v2832 = vmax.f32 %v2704, %v2768
    %v2833 = vmax.f32 %v2705, %v2769
    %v2834 = vmax.f32 %v2706, %v2770
    %v2835 = vmax.f32 %v2707, %v2771
    %v2836 = vmax.f32 %v2708, %v2772
    %v2837 = vmax.f32 %v2709, %v2773
    %v2838 = vmax.f32 %v2710, %v2774
    %v2839 = vmax.f32 %v2711, %v2775
    %v2840 = vmax.f32 %v2712, %v2776
    %s2841 = smul.u32 4, 128
    %s2842 = smul.u32 %s2841, 2
    %s2843 = sshll.u32 %s2842, 4
    %2844 = dma.done %s106, %s2843
    %v2845 = vpack.c.bf16 %v2785, %v2777
    %v2846 = vpack.c.bf16 %v2786, %v2778
    %v2847 = vpack.c.bf16 %v2787, %v2779
    %v2848 = vpack.c.bf16 %v2788, %v2780
    %v2849 = vpack.c.bf16 %v2789, %v2781
    %v2850 = vpack.c.bf16 %v2790, %v2782
    %v2851 = vpack.c.bf16 %v2791, %v2783
    %v2852 = vpack.c.bf16 %v2792, %v2784
    %v2853 = vpack.c.bf16 %v2801, %v2793
    %v2854 = vpack.c.bf16 %v2802, %v2794
    %v2855 = vpack.c.bf16 %v2803, %v2795
    %v2856 = vpack.c.bf16 %v2804, %v2796
    %v2857 = vpack.c.bf16 %v2805, %v2797
    %v2858 = vpack.c.bf16 %v2806, %v2798
    %v2859 = vpack.c.bf16 %v2807, %v2799
    %v2860 = vpack.c.bf16 %v2808, %v2800
    %v2861 = vpack.c.bf16 %v2817, %v2809
    %v2862 = vpack.c.bf16 %v2818, %v2810
    %v2863 = vpack.c.bf16 %v2819, %v2811
    %v2864 = vpack.c.bf16 %v2820, %v2812
    %v2865 = vpack.c.bf16 %v2821, %v2813
    %v2866 = vpack.c.bf16 %v2822, %v2814
    %v2867 = vpack.c.bf16 %v2823, %v2815
    %v2868 = vpack.c.bf16 %v2824, %v2816
    %v2869 = vpack.c.bf16 %v2833, %v2825
    %v2870 = vpack.c.bf16 %v2834, %v2826
    %v2871 = vpack.c.bf16 %v2835, %v2827
    %v2872 = vpack.c.bf16 %v2836, %v2828
    %v2873 = vpack.c.bf16 %v2837, %v2829
    %v2874 = vpack.c.bf16 %v2838, %v2830
    %v2875 = vpack.c.bf16 %v2839, %v2831
    %v2876 = vpack.c.bf16 %v2840, %v2832
    %v2877 = vld [vmem:[#allocation4] sm:$0xff]
    %v2878 = vld [vmem:[#allocation4 + $0x8] sm:$0xff]
    %v2879 = vld [vmem:[#allocation4 + $0x10] sm:$0xff]
    %v2880 = vld [vmem:[#allocation4 + $0x18] sm:$0xff]
    %v2881 = vld [vmem:[#allocation4 + $0x20] sm:$0xff]
    %v2882 = vld [vmem:[#allocation4 + $0x28] sm:$0xff]
    %v2883 = vld [vmem:[#allocation4 + $0x30] sm:$0xff]
    %v2884 = vld [vmem:[#allocation4 + $0x38] sm:$0xff]
    %v2885 = vld [vmem:[#allocation4 + $0x40] sm:$0xff]
    %v2886 = vld [vmem:[#allocation4 + $0x48] sm:$0xff]
    %v2887 = vld [vmem:[#allocation4 + $0x50] sm:$0xff]
    %v2888 = vld [vmem:[#allocation4 + $0x58] sm:$0xff]
    %v2889 = vld [vmem:[#allocation4 + $0x60] sm:$0xff]
    %v2890 = vld [vmem:[#allocation4 + $0x68] sm:$0xff]
    %v2891 = vld [vmem:[#allocation4 + $0x70] sm:$0xff]
    %v2892 = vld [vmem:[#allocation4 + $0x78] sm:$0xff]
    %v2893 = vld [vmem:[#allocation4 + $0x80] sm:$0xff]
    %v2894 = vld [vmem:[#allocation4 + $0x88] sm:$0xff]
    %v2895 = vld [vmem:[#allocation4 + $0x90] sm:$0xff]
    %v2896 = vld [vmem:[#allocation4 + $0x98] sm:$0xff]
    %v2897 = vld [vmem:[#allocation4 + $0xa0] sm:$0xff]
    %v2898 = vld [vmem:[#allocation4 + $0xa8] sm:$0xff]
    %v2899 = vld [vmem:[#allocation4 + $0xb0] sm:$0xff]
    %v2900 = vld [vmem:[#allocation4 + $0xb8] sm:$0xff]
    %v2901 = vld [vmem:[#allocation4 + $0xc0] sm:$0xff]
    %v2902 = vld [vmem:[#allocation4 + $0xc8] sm:$0xff]
    %v2903 = vld [vmem:[#allocation4 + $0xd0] sm:$0xff]
    %v2904 = vld [vmem:[#allocation4 + $0xd8] sm:$0xff]
    %v2905 = vld [vmem:[#allocation4 + $0xe0] sm:$0xff]
    %v2906 = vld [vmem:[#allocation4 + $0xe8] sm:$0xff]
    %v2907 = vld [vmem:[#allocation4 + $0xf0] sm:$0xff]
    %v2908 = vld [vmem:[#allocation4 + $0xf8] sm:$0xff]
    %v2909 = vld [vmem:[#allocation4 + $0x100] sm:$0xff]
    %v2910 = vld [vmem:[#allocation4 + $0x108] sm:$0xff]
    %v2911 = vld [vmem:[#allocation4 + $0x110] sm:$0xff]
    %v2912 = vld [vmem:[#allocation4 + $0x118] sm:$0xff]
    %v2913 = vld [vmem:[#allocation4 + $0x120] sm:$0xff]
    %v2914 = vld [vmem:[#allocation4 + $0x128] sm:$0xff]
    %v2915 = vld [vmem:[#allocation4 + $0x130] sm:$0xff]
    %v2916 = vld [vmem:[#allocation4 + $0x138] sm:$0xff]
    %v2917 = vld [vmem:[#allocation4 + $0x140] sm:$0xff]
    %v2918 = vld [vmem:[#allocation4 + $0x148] sm:$0xff]
    %v2919 = vld [vmem:[#allocation4 + $0x150] sm:$0xff]
    %v2920 = vld [vmem:[#allocation4 + $0x158] sm:$0xff]
    %v2921 = vld [vmem:[#allocation4 + $0x160] sm:$0xff]
    %v2922 = vld [vmem:[#allocation4 + $0x168] sm:$0xff]
    %v2923 = vld [vmem:[#allocation4 + $0x170] sm:$0xff]
    %v2924 = vld [vmem:[#allocation4 + $0x178] sm:$0xff]
    %v2925 = vld [vmem:[#allocation4 + $0x180] sm:$0xff]
    %v2926 = vld [vmem:[#allocation4 + $0x188] sm:$0xff]
    %v2927 = vld [vmem:[#allocation4 + $0x190] sm:$0xff]
    %v2928 = vld [vmem:[#allocation4 + $0x198] sm:$0xff]
    %v2929 = vld [vmem:[#allocation4 + $0x1a0] sm:$0xff]
    %v2930 = vld [vmem:[#allocation4 + $0x1a8] sm:$0xff]
    %v2931 = vld [vmem:[#allocation4 + $0x1b0] sm:$0xff]
    %v2932 = vld [vmem:[#allocation4 + $0x1b8] sm:$0xff]
    %v2933 = vld [vmem:[#allocation4 + $0x1c0] sm:$0xff]
    %v2934 = vld [vmem:[#allocation4 + $0x1c8] sm:$0xff]
    %v2935 = vld [vmem:[#allocation4 + $0x1d0] sm:$0xff]
    %v2936 = vld [vmem:[#allocation4 + $0x1d8] sm:$0xff]
    %v2937 = vld [vmem:[#allocation4 + $0x1e0] sm:$0xff]
    %v2938 = vld [vmem:[#allocation4 + $0x1e8] sm:$0xff]
    %v2939 = vld [vmem:[#allocation4 + $0x1f0] sm:$0xff]
    %v2940 = vld [vmem:[#allocation4 + $0x1f8] sm:$0xff]
    %v2941 = vld [vmem:[#allocation4 + $0x200] sm:$0xff]
    %v2942 = vld [vmem:[#allocation4 + $0x208] sm:$0xff]
    %v2943 = vld [vmem:[#allocation4 + $0x210] sm:$0xff]
    %v2944 = vld [vmem:[#allocation4 + $0x218] sm:$0xff]
    %v2945 = vld [vmem:[#allocation4 + $0x220] sm:$0xff]
    %v2946 = vld [vmem:[#allocation4 + $0x228] sm:$0xff]
    %v2947 = vld [vmem:[#allocation4 + $0x230] sm:$0xff]
    %v2948 = vld [vmem:[#allocation4 + $0x238] sm:$0xff]
    %v2949 = vld [vmem:[#allocation4 + $0x240] sm:$0xff]
    %v2950 = vld [vmem:[#allocation4 + $0x248] sm:$0xff]
    %v2951 = vld [vmem:[#allocation4 + $0x250] sm:$0xff]
    %v2952 = vld [vmem:[#allocation4 + $0x258] sm:$0xff]
    %v2953 = vld [vmem:[#allocation4 + $0x260] sm:$0xff]
    %v2954 = vld [vmem:[#allocation4 + $0x268] sm:$0xff]
    %v2955 = vld [vmem:[#allocation4 + $0x270] sm:$0xff]
    %v2956 = vld [vmem:[#allocation4 + $0x278] sm:$0xff]
    %v2957 = vld [vmem:[#allocation4 + $0x280] sm:$0xff]
    %v2958 = vld [vmem:[#allocation4 + $0x288] sm:$0xff]
    %v2959 = vld [vmem:[#allocation4 + $0x290] sm:$0xff]
    %v2960 = vld [vmem:[#allocation4 + $0x298] sm:$0xff]
    %v2961 = vld [vmem:[#allocation4 + $0x2a0] sm:$0xff]
    %v2962 = vld [vmem:[#allocation4 + $0x2a8] sm:$0xff]
    %v2963 = vld [vmem:[#allocation4 + $0x2b0] sm:$0xff]
    %v2964 = vld [vmem:[#allocation4 + $0x2b8] sm:$0xff]
    %v2965 = vld [vmem:[#allocation4 + $0x2c0] sm:$0xff]
    %v2966 = vld [vmem:[#allocation4 + $0x2c8] sm:$0xff]
    %v2967 = vld [vmem:[#allocation4 + $0x2d0] sm:$0xff]
    %v2968 = vld [vmem:[#allocation4 + $0x2d8] sm:$0xff]
    %v2969 = vld [vmem:[#allocation4 + $0x2e0] sm:$0xff]
    %v2970 = vld [vmem:[#allocation4 + $0x2e8] sm:$0xff]
    %v2971 = vld [vmem:[#allocation4 + $0x2f0] sm:$0xff]
    %v2972 = vld [vmem:[#allocation4 + $0x2f8] sm:$0xff]
    %v2973 = vld [vmem:[#allocation4 + $0x300] sm:$0xff]
    %v2974 = vld [vmem:[#allocation4 + $0x308] sm:$0xff]
    %v2975 = vld [vmem:[#allocation4 + $0x310] sm:$0xff]
    %v2976 = vld [vmem:[#allocation4 + $0x318] sm:$0xff]
    %v2977 = vld [vmem:[#allocation4 + $0x320] sm:$0xff]
    %v2978 = vld [vmem:[#allocation4 + $0x328] sm:$0xff]
    %v2979 = vld [vmem:[#allocation4 + $0x330] sm:$0xff]
    %v2980 = vld [vmem:[#allocation4 + $0x338] sm:$0xff]
    %v2981 = vld [vmem:[#allocation4 + $0x340] sm:$0xff]
    %v2982 = vld [vmem:[#allocation4 + $0x348] sm:$0xff]
    %v2983 = vld [vmem:[#allocation4 + $0x350] sm:$0xff]
    %v2984 = vld [vmem:[#allocation4 + $0x358] sm:$0xff]
    %v2985 = vld [vmem:[#allocation4 + $0x360] sm:$0xff]
    %v2986 = vld [vmem:[#allocation4 + $0x368] sm:$0xff]
    %v2987 = vld [vmem:[#allocation4 + $0x370] sm:$0xff]
    %v2988 = vld [vmem:[#allocation4 + $0x378] sm:$0xff]
    %v2989 = vld [vmem:[#allocation4 + $0x380] sm:$0xff]
    %v2990 = vld [vmem:[#allocation4 + $0x388] sm:$0xff]
    %v2991 = vld [vmem:[#allocation4 + $0x390] sm:$0xff]
    %v2992 = vld [vmem:[#allocation4 + $0x398] sm:$0xff]
    %v2993 = vld [vmem:[#allocation4 + $0x3a0] sm:$0xff]
    %v2994 = vld [vmem:[#allocation4 + $0x3a8] sm:$0xff]
    %v2995 = vld [vmem:[#allocation4 + $0x3b0] sm:$0xff]
    %v2996 = vld [vmem:[#allocation4 + $0x3b8] sm:$0xff]
    %v2997 = vld [vmem:[#allocation4 + $0x3c0] sm:$0xff]
    %v2998 = vld [vmem:[#allocation4 + $0x3c8] sm:$0xff]
    %v2999 = vld [vmem:[#allocation4 + $0x3d0] sm:$0xff]
    %v3000 = vld [vmem:[#allocation4 + $0x3d8] sm:$0xff]
    %v3001 = vld [vmem:[#allocation4 + $0x3e0] sm:$0xff]
    %v3002 = vld [vmem:[#allocation4 + $0x3e8] sm:$0xff]
    %v3003 = vld [vmem:[#allocation4 + $0x3f0] sm:$0xff]
    %v3004 = vld [vmem:[#allocation4 + $0x3f8] sm:$0xff]
    %v3006 = vlaneseq
    %v3007 = vshrl.u32 %v3006, 7
    %v3008 = vsub.s32 0, %v3007
    %v3009 = vrot.slane %v148, %v3008
    %v3010 = vlaneseq
    %v3011 = vshrl.u32 %v3010, 7
    %v3012 = vsub.s32 1, %v3011
    %v3013 = vrot.slane %v148, %v3012
    %3016 = vmatprep.subr.bf16.mxu0 %v2878
    %3017 = vmatpush1.bf16.msra.mxu0 %v2877
    %3018 = vmatprep.subr.bf16.mxu0 %v2880
    %3019 = vmatpush1.bf16.msra.mxu0 %v2879
    %3020 = vmatprep.subr.bf16.mxu0 %v2882
    %3021 = vmatpush1.bf16.msra.mxu0 %v2881
    %3022 = vmatprep.subr.bf16.mxu0 %v2884
    %3023 = vmatpush1.bf16.msra.mxu0 %v2883
    %3024 = vmatprep.subr.bf16.mxu0 %v2886
    %3025 = vmatpush1.bf16.msra.mxu0 %v2885
    %3026 = vmatprep.subr.bf16.mxu0 %v2888
    %3027 = vmatpush1.bf16.msra.mxu0 %v2887
    %3028 = vmatprep.subr.bf16.mxu0 %v2890
    %3029 = vmatpush1.bf16.msra.mxu0 %v2889
    %3030 = vmatprep.subr.bf16.mxu0 %v2892
    %3031 = vmatpush1.bf16.msra.mxu0 %v2891
    %3032 = vmatprep.subr.bf16.mxu0 %v2894
    %3033 = vmatpush1.bf16.msra.mxu0 %v2893
    %3034 = vmatprep.subr.bf16.mxu0 %v2896
    %3035 = vmatpush1.bf16.msra.mxu0 %v2895
    %3036 = vmatprep.subr.bf16.mxu0 %v2898
    %3037 = vmatpush1.bf16.msra.mxu0 %v2897
    %3038 = vmatprep.subr.bf16.mxu0 %v2900
    %3039 = vmatpush1.bf16.msra.mxu0 %v2899
    %3040 = vmatprep.subr.bf16.mxu0 %v2902
    %3041 = vmatpush1.bf16.msra.mxu0 %v2901
    %3042 = vmatprep.subr.bf16.mxu0 %v2904
    %3043 = vmatpush1.bf16.msra.mxu0 %v2903
    %3044 = vmatprep.subr.bf16.mxu0 %v2906
    %3045 = vmatpush1.bf16.msra.mxu0 %v2905
    %3046 = vmatprep.subr.bf16.mxu0 %v2908
    %3047 = vmatpush1.bf16.msra.mxu0 %v2907
    %3048 = vmatprep.mubr.bf16.mxu0 %v2846
    %3049 = vmatmul.mubr.bf16.gmra.mrb[0].mxu0 %v2845
    %v3050 = vpop.f32.mrb[0].mxu0
    %v3051 = vadd.f32 %v3009, %v3050
    %v3052 = vpop.f32.mrb[0].mxu0
    %v3053 = vadd.f32 %v3013, %v3052
    %v3054 = vpop.f32.mrb[0].mxu0
    %v3055 = vadd.f32 %v3009, %v3054
    %v3056 = vpop.f32.mrb[0].mxu0
    %v3057 = vadd.f32 %v3013, %v3056
    %3058 = vmatprep.mubr.bf16.mxu0 %v2854
    %3059 = vmatmul.mubr.bf16.gmra.mrb[0].mxu0 %v2853
    %v3060 = vpop.f32.mrb[0].mxu0
    %v3061 = vadd.f32 %v3009, %v3060
    %v3062 = vpop.f32.mrb[0].mxu0
    %v3063 = vadd.f32 %v3013, %v3062
    %v3064 = vpop.f32.mrb[0].mxu0
    %v3065 = vadd.f32 %v3009, %v3064
    %v3066 = vpop.f32.mrb[0].mxu0
    %v3067 = vadd.f32 %v3013, %v3066
    %3068 = vmatprep.mubr.bf16.mxu0 %v2862
    %3069 = vmatmul.mubr.bf16.gmra.mrb[0].mxu0 %v2861
    %v3070 = vpop.f32.mrb[0].mxu0
    %v3071 = vadd.f32 %v3009, %v3070
    %v3072 = vpop.f32.mrb[0].mxu0
    %v3073 = vadd.f32 %v3013, %v3072
    %v3074 = vpop.f32.mrb[0].mxu0
    %v3075 = vadd.f32 %v3009, %v3074
    %v3076 = vpop.f32.mrb[0].mxu0
    %v3077 = vadd.f32 %v3013, %v3076
    %3078 = vmatprep.mubr.bf16.mxu0 %v2870
    %3079 = vmatmul.mubr.bf16.gmra.mrb[0].mxu0 %v2869
    %v3080 = vpop.f32.mrb[0].mxu0
    %v3081 = vadd.f32 %v3009, %v3080
    %v3082 = vpop.f32.mrb[0].mxu0
    %v3083 = vadd.f32 %v3013, %v3082
    %v3084 = vpop.f32.mrb[0].mxu0
    %v3085 = vadd.f32 %v3009, %v3084
    %v3086 = vpop.f32.mrb[0].mxu0
    %v3087 = vadd.f32 %v3013, %v3086
    %3088 = vdwg.mxu0
    %3089 = vmatprep.subr.bf16.mxu0 %v2910
    %3090 = vmatpush1.bf16.msra.mxu0 %v2909
    %3091 = vmatprep.subr.bf16.mxu0 %v2912
    %3092 = vmatpush1.bf16.msra.mxu0 %v2911
    %3093 = vmatprep.subr.bf16.mxu0 %v2914
    %3094 = vmatpush1.bf16.msra.mxu0 %v2913
    %3095 = vmatprep.subr.bf16.mxu0 %v2916
    %3096 = vmatpush1.bf16.msra.mxu0 %v2915
    %3097 = vmatprep.subr.bf16.mxu0 %v2918
    %3098 = vmatpush1.bf16.msra.mxu0 %v2917
    %3099 = vmatprep.subr.bf16.mxu0 %v2920
    %3100 = vmatpush1.bf16.msra.mxu0 %v2919
    %3101 = vmatprep.subr.bf16.mxu0 %v2922
    %3102 = vmatpush1.bf16.msra.mxu0 %v2921
    %3103 = vmatprep.subr.bf16.mxu0 %v2924
    %3104 = vmatpush1.bf16.msra.mxu0 %v2923
    %3105 = vmatprep.subr.bf16.mxu0 %v2926
    %3106 = vmatpush1.bf16.msra.mxu0 %v2925
    %3107 = vmatprep.subr.bf16.mxu0 %v2928
    %3108 = vmatpush1.bf16.msra.mxu0 %v2927
    %3109 = vmatprep.subr.bf16.mxu0 %v2930
    %3110 = vmatpush1.bf16.msra.mxu0 %v2929
    %3111 = vmatprep.subr.bf16.mxu0 %v2932
    %3112 = vmatpush1.bf16.msra.mxu0 %v2931
    %3113 = vmatprep.subr.bf16.mxu0 %v2934
    %3114 = vmatpush1.bf16.msra.mxu0 %v2933
    %3115 = vmatprep.subr.bf16.mxu0 %v2936
    %3116 = vmatpush1.bf16.msra.mxu0 %v2935
    %3117 = vmatprep.subr.bf16.mxu0 %v2938
    %3118 = vmatpush1.bf16.msra.mxu0 %v2937
    %3119 = vmatprep.subr.bf16.mxu0 %v2940
    %3120 = vmatpush1.bf16.msra.mxu0 %v2939
    %3121 = vmatprep.mubr.bf16.mxu0 %v2848
    %3122 = vmatmul.mubr.bf16.gmra.mrb[0].mxu0 %v2847
    %v3123 = vpop.f32.mrb[0].mxu0
    %v3124 = vadd.f32 %v3051, %v3123
    %v3125 = vpop.f32.mrb[0].mxu0
    %v3126 = vadd.f32 %v3053, %v3125
    %v3127 = vpop.f32.mrb[0].mxu0
    %v3128 = vadd.f32 %v3055, %v3127
    %v3129 = vpop.f32.mrb[0].mxu0
    %v3130 = vadd.f32 %v3057, %v3129
    %3131 = vmatprep.mubr.bf16.mxu0 %v2856
    %3132 = vmatmul.mubr.bf16.gmra.mrb[0].mxu0 %v2855
    %v3133 = vpop.f32.mrb[0].mxu0
    %v3134 = vadd.f32 %v3061, %v3133
    %v3135 = vpop.f32.mrb[0].mxu0
    %v3136 = vadd.f32 %v3063, %v3135
    %v3137 = vpop.f32.mrb[0].mxu0
    %v3138 = vadd.f32 %v3065, %v3137
    %v3139 = vpop.f32.mrb[0].mxu0
    %v3140 = vadd.f32 %v3067, %v3139
    %3141 = vmatprep.mubr.bf16.mxu0 %v2864
    %3142 = vmatmul.mubr.bf16.gmra.mrb[0].mxu0 %v2863
    %v3143 = vpop.f32.mrb[0].mxu0
    %v3144 = vadd.f32 %v3071, %v3143
    %v3145 = vpop.f32.mrb[0].mxu0
    %v3146 = vadd.f32 %v3073, %v3145
    %v3147 = vpop.f32.mrb[0].mxu0
    %v3148 = vadd.f32 %v3075, %v3147
    %v3149 = vpop.f32.mrb[0].mxu0
    %v3150 = vadd.f32 %v3077, %v3149
    %3151 = vmatprep.mubr.bf16.mxu0 %v2872
    %3152 = vmatmul.mubr.bf16.gmra.mrb[0].mxu0 %v2871
    %v3153 = vpop.f32.mrb[0].mxu0
    %v3154 = vadd.f32 %v3081, %v3153
    %v3155 = vpop.f32.mrb[0].mxu0
    %v3156 = vadd.f32 %v3083, %v3155
    %v3157 = vpop.f32.mrb[0].mxu0
    %v3158 = vadd.f32 %v3085, %v3157
    %v3159 = vpop.f32.mrb[0].mxu0
    %v3160 = vadd.f32 %v3087, %v3159
    %3161 = vdwg.mxu0
    %3162 = vmatprep.subr.bf16.mxu0 %v2942
    %3163 = vmatpush1.bf16.msra.mxu0 %v2941
    %3164 = vmatprep.subr.bf16.mxu0 %v2944
    %3165 = vmatpush1.bf16.msra.mxu0 %v2943
    %3166 = vmatprep.subr.bf16.mxu0 %v2946
    %3167 = vmatpush1.bf16.msra.mxu0 %v2945
    %3168 = vmatprep.subr.bf16.mxu0 %v2948
    %3169 = vmatpush1.bf16.msra.mxu0 %v2947
    %3170 = vmatprep.subr.bf16.mxu0 %v2950
    %3171 = vmatpush1.bf16.msra.mxu0 %v2949
    %3172 = vmatprep.subr.bf16.mxu0 %v2952
    %3173 = vmatpush1.bf16.msra.mxu0 %v2951
    %3174 = vmatprep.subr.bf16.mxu0 %v2954
    %3175 = vmatpush1.bf16.msra.mxu0 %v2953
    %3176 = vmatprep.subr.bf16.mxu0 %v2956
    %3177 = vmatpush1.bf16.msra.mxu0 %v2955
    %3178 = vmatprep.subr.bf16.mxu0 %v2958
    %3179 = vmatpush1.bf16.msra.mxu0 %v2957
    %3180 = vmatprep.subr.bf16.mxu0 %v2960
    %3181 = vmatpush1.bf16.msra.mxu0 %v2959
    %3182 = vmatprep.subr.bf16.mxu0 %v2962
    %3183 = vmatpush1.bf16.msra.mxu0 %v2961
    %3184 = vmatprep.subr.bf16.mxu0 %v2964
    %3185 = vmatpush1.bf16.msra.mxu0 %v2963
    %3186 = vmatprep.subr.bf16.mxu0 %v2966
    %3187 = vmatpush1.bf16.msra.mxu0 %v2965
    %3188 = vmatprep.subr.bf16.mxu0 %v2968
    %3189 = vmatpush1.bf16.msra.mxu0 %v2967
    %3190 = vmatprep.subr.bf16.mxu0 %v2970
    %3191 = vmatpush1.bf16.msra.mxu0 %v2969
    %3192 = vmatprep.subr.bf16.mxu0 %v2972
    %3193 = vmatpush1.bf16.msra.mxu0 %v2971
    %3194 = vmatprep.mubr.bf16.mxu0 %v2850
    %3195 = vmatmul.mubr.bf16.gmra.mrb[0].mxu0 %v2849
    %v3196 = vpop.f32.mrb[0].mxu0
    %v3197 = vadd.f32 %v3124, %v3196
    %v3198 = vpop.f32.mrb[0].mxu0
    %v3199 = vadd.f32 %v3126, %v3198
    %v3200 = vpop.f32.mrb[0].mxu0
    %v3201 = vadd.f32 %v3128, %v3200
    %v3202 = vpop.f32.mrb[0].mxu0
    %v3203 = vadd.f32 %v3130, %v3202
    %3204 = vmatprep.mubr.bf16.mxu0 %v2858
    %3205 = vmatmul.mubr.bf16.gmra.mrb[0].mxu0 %v2857
    %v3206 = vpop.f32.mrb[0].mxu0
    %v3207 = vadd.f32 %v3134, %v3206
    %v3208 = vpop.f32.mrb[0].mxu0
    %v3209 = vadd.f32 %v3136, %v3208
    %v3210 = vpop.f32.mrb[0].mxu0
    %v3211 = vadd.f32 %v3138, %v3210
    %v3212 = vpop.f32.mrb[0].mxu0
    %v3213 = vadd.f32 %v3140, %v3212
    %3214 = vmatprep.mubr.bf16.mxu0 %v2866
    %3215 = vmatmul.mubr.bf16.gmra.mrb[0].mxu0 %v2865
    %v3216 = vpop.f32.mrb[0].mxu0
    %v3217 = vadd.f32 %v3144, %v3216
    %v3218 = vpop.f32.mrb[0].mxu0
    %v3219 = vadd.f32 %v3146, %v3218
    %v3220 = vpop.f32.mrb[0].mxu0
    %v3221 = vadd.f32 %v3148, %v3220
    %v3222 = vpop.f32.mrb[0].mxu0
    %v3223 = vadd.f32 %v3150, %v3222
    %3224 = vmatprep.mubr.bf16.mxu0 %v2874
    %3225 = vmatmul.mubr.bf16.gmra.mrb[0].mxu0 %v2873
    %v3226 = vpop.f32.mrb[0].mxu0
    %v3227 = vadd.f32 %v3154, %v3226
    %v3228 = vpop.f32.mrb[0].mxu0
    %v3229 = vadd.f32 %v3156, %v3228
    %v3230 = vpop.f32.mrb[0].mxu0
    %v3231 = vadd.f32 %v3158, %v3230
    %v3232 = vpop.f32.mrb[0].mxu0
    %v3233 = vadd.f32 %v3160, %v3232
    %3234 = vdwg.mxu0
    %3235 = vmatprep.subr.bf16.mxu0 %v2974
    %3236 = vmatpush1.bf16.msra.mxu0 %v2973
    %3237 = vmatprep.subr.bf16.mxu0 %v2976
    %3238 = vmatpush1.bf16.msra.mxu0 %v2975
    %3239 = vmatprep.subr.bf16.mxu0 %v2978
    %3240 = vmatpush1.bf16.msra.mxu0 %v2977
    %3241 = vmatprep.subr.bf16.mxu0 %v2980
    %3242 = vmatpush1.bf16.msra.mxu0 %v2979
    %3243 = vmatprep.subr.bf16.mxu0 %v2982
    %3244 = vmatpush1.bf16.msra.mxu0 %v2981
    %3245 = vmatprep.subr.bf16.mxu0 %v2984
    %3246 = vmatpush1.bf16.msra.mxu0 %v2983
    %3247 = vmatprep.subr.bf16.mxu0 %v2986
    %3248 = vmatpush1.bf16.msra.mxu0 %v2985
    %3249 = vmatprep.subr.bf16.mxu0 %v2988
    %3250 = vmatpush1.bf16.msra.mxu0 %v2987
    %3251 = vmatprep.subr.bf16.mxu0 %v2990
    %3252 = vmatpush1.bf16.msra.mxu0 %v2989
    %3253 = vmatprep.subr.bf16.mxu0 %v2992
    %3254 = vmatpush1.bf16.msra.mxu0 %v2991
    %3255 = vmatprep.subr.bf16.mxu0 %v2994
    %3256 = vmatpush1.bf16.msra.mxu0 %v2993
    %3257 = vmatprep.subr.bf16.mxu0 %v2996
    %3258 = vmatpush1.bf16.msra.mxu0 %v2995
    %3259 = vmatprep.subr.bf16.mxu0 %v2998
    %3260 = vmatpush1.bf16.msra.mxu0 %v2997
    %3261 = vmatprep.subr.bf16.mxu0 %v3000
    %3262 = vmatpush1.bf16.msra.mxu0 %v2999
    %3263 = vmatprep.subr.bf16.mxu0 %v3002
    %3264 = vmatpush1.bf16.msra.mxu0 %v3001
    %3265 = vmatprep.subr.bf16.mxu0 %v3004
    %3266 = vmatpush1.bf16.msra.mxu0 %v3003
    %3267 = vmatprep.mubr.bf16.mxu0 %v2852
    %3268 = vmatmul.mubr.bf16.gmra.mrb[0].mxu0 %v2851
    %v3269 = vpop.f32.mrb[0].mxu0
    %v3270 = vadd.f32 %v3197, %v3269
    %v3271 = vpop.f32.mrb[0].mxu0
    %v3272 = vadd.f32 %v3199, %v3271
    %v3273 = vpop.f32.mrb[0].mxu0
    %v3274 = vadd.f32 %v3201, %v3273
    %v3275 = vpop.f32.mrb[0].mxu0
    %v3276 = vadd.f32 %v3203, %v3275
    %3277 = vmatprep.mubr.bf16.mxu0 %v2860
    %3278 = vmatmul.mubr.bf16.gmra.mrb[0].mxu0 %v2859
    %v3279 = vpop.f32.mrb[0].mxu0
    %v3280 = vadd.f32 %v3207, %v3279
    %v3281 = vpop.f32.mrb[0].mxu0
    %v3282 = vadd.f32 %v3209, %v3281
    %v3283 = vpop.f32.mrb[0].mxu0
    %v3284 = vadd.f32 %v3211, %v3283
    %v3285 = vpop.f32.mrb[0].mxu0
    %v3286 = vadd.f32 %v3213, %v3285
    %3287 = vmatprep.mubr.bf16.mxu0 %v2868
    %3288 = vmatmul.mubr.bf16.gmra.mrb[0].mxu0 %v2867
    %v3289 = vpop.f32.mrb[0].mxu0
    %v3290 = vadd.f32 %v3217, %v3289
    %v3291 = vpop.f32.mrb[0].mxu0
    %v3292 = vadd.f32 %v3219, %v3291
    %v3293 = vpop.f32.mrb[0].mxu0
    %v3294 = vadd.f32 %v3221, %v3293
    %v3295 = vpop.f32.mrb[0].mxu0
    %v3296 = vadd.f32 %v3223, %v3295
    %3297 = vmatprep.mubr.bf16.mxu0 %v2876
    %3298 = vmatmul.mubr.bf16.gmra.mrb[0].mxu0 %v2875
    %v3299 = vpop.f32.mrb[0].mxu0
    %v3300 = vadd.f32 %v3227, %v3299
    %v3301 = vpop.f32.mrb[0].mxu0
    %v3302 = vadd.f32 %v3229, %v3301
    %v3303 = vpop.f32.mrb[0].mxu0
    %v3304 = vadd.f32 %v3231, %v3303
    %v3305 = vpop.f32.mrb[0].mxu0
    %v3306 = vadd.f32 %v3233, %v3305
    %3307 = vdwg.mxu0
    %v3308 = vtanh.pop %v3270
    %v3309 = vtanh.pop %v3272
    %v3310 = vtanh.pop %v3274
    %v3311 = vtanh.pop %v3276
    %v3312 = vtanh.pop %v3280
    %v3313 = vtanh.pop %v3282
    %v3314 = vtanh.pop %v3284
    %v3315 = vtanh.pop %v3286
    %v3316 = vtanh.pop %v3290
    %v3317 = vtanh.pop %v3292
    %v3318 = vtanh.pop %v3294
    %v3319 = vtanh.pop %v3296
    %v3320 = vtanh.pop %v3300
    %v3321 = vtanh.pop %v3302
    %v3322 = vtanh.pop %v3304
    %v3323 = vtanh.pop %v3306
    %3324 = vst [vmem:[#allocation9] sm:$0xff] %v3308
    %3325 = vst [vmem:[#allocation9 + $0x8] sm:$0xff] %v3309
    %3326 = vst [vmem:[#allocation9 + $0x10] sm:$0xff] %v3310
    %3327 = vst [vmem:[#allocation9 + $0x18] sm:$0xff] %v3311
    %3328 = vst [vmem:[#allocation9 + $0x20] sm:$0xff] %v3312
    %3329 = vst [vmem:[#allocation9 + $0x28] sm:$0xff] %v3313
    %3330 = vst [vmem:[#allocation9 + $0x30] sm:$0xff] %v3314
    %3331 = vst [vmem:[#allocation9 + $0x38] sm:$0xff] %v3315
    %3332 = vst [vmem:[#allocation9 + $0x40] sm:$0xff] %v3316
    %3333 = vst [vmem:[#allocation9 + $0x48] sm:$0xff] %v3317
    %3334 = vst [vmem:[#allocation9 + $0x50] sm:$0xff] %v3318
    %3335 = vst [vmem:[#allocation9 + $0x58] sm:$0xff] %v3319
    %3336 = vst [vmem:[#allocation9 + $0x60] sm:$0xff] %v3320
    %3337 = vst [vmem:[#allocation9 + $0x68] sm:$0xff] %v3321
    %3338 = vst [vmem:[#allocation9 + $0x70] sm:$0xff] %v3322
    %3339 = vst [vmem:[#allocation9 + $0x78] sm:$0xff] %v3323
    // Predicated region
    $region22: #{tpu_custom_call.1} parent=1 // pred_check
      _
    $region23: #{tpu_custom_call.1} parent=1 // pred_check_branch
      %3341 = sbr.rel (0) target = $region25
    $region24: #{tpu_custom_call.1} parent=1 // pred_region
      %s3343 = ssub.s32 2048, 2048
      %3344 = vsyncadd [#allocation8], %s3343
      %s3345 = sshll.u32 [#allocation9], 4
      %s3346 = int_to_ptr.vmem [resolvable:$true] %s3345
      %3351 = dma.vmem_to_hbm [thread:$0]  %s3346, 2048, %s7, [#allocation8], 256, 256, 16
    $region25: #{tpu_custom_call.1} parent=1 // pred_fallthru
      _
    // Predicated region
    $region26: #{tpu_custom_call.1} parent=1 // pred_check
      _
    $region27: #{tpu_custom_call.1} parent=1 // pred_check_branch
      %3353 = sbr.rel (0) target = $region29
    $region28: #{tpu_custom_call.1} parent=1 // pred_region
      %3354 = dma.done [#allocation8], 2048
    $region29: #{tpu_custom_call.1} parent=1 // pred_fallthru
      _
    %3355 = vsyncpa [#allocation7], 1
    %3356 = vsyncpa [#allocation8], 1
  %3357 = vsyncmov [#allocation5]
  %s3358 = vpop.sfrf %3357
  %p3359 = scmp.eq.s32.totalorder %s3358, 0
  %p3360 = pneg %p3359
  %3362 = shalt.err (%p3360)
  %s3363 = scalar_lea.sflag [#allocation5], 1
  %3364 = vsyncmov %s3363
  %s3365 = vpop.sfrf %3364
  %p3366 = scmp.eq.s32.totalorder %s3365, 0
  %p3367 = pneg %p3366
  %3369 = shalt.err (%p3367)
  %s3370 = scalar_lea.sflag [#allocation5], 2
  %3371 = vsyncmov %s3370
  %s3372 = vpop.sfrf %3371
  %p3373 = scmp.eq.s32.totalorder %s3372, 0
  %p3374 = pneg %p3373
  %3376 = shalt.err (%p3374)

</llo_original>
